<compile_context>
chip_gen: v7x
topology: tpu7x:2x2x1
jax: 0.10.0
libtpu: 0.0.40
codegen_flags: <defaults>
</compile_context>

<pallas_src>
import jax
import jax.numpy as jnp
import numpy as np
from jax import lax
from jax.experimental import pallas as pl
from jax.experimental.pallas import tpu as pltpu

KERNEL_SIZE = 5
N_GROUPS = 8
EPS = 1e-5


def _mish(x):
    # x * tanh(softplus(x)) via a single exp:
    #   a = exp(-|x|)
    #   x >= 0: tanh(softplus(x)) = (1 + 2a) / (1 + 2a + 2a^2)
    #   x <  0: tanh(softplus(x)) = a(a + 2) / (a(a + 2) + 2)
    a = jnp.exp(-jnp.abs(x))
    num = jnp.where(x >= 0, 1.0 + 2.0 * a, a * (a + 2.0))
    den = num + jnp.where(x >= 0, 2.0 * a * a, 2.0)
    return x * num / den


def _groupnorm_mish(h2d, m_ref, mt_ref, gamma_ref, beta_ref, bt_tile, horizon, group_size):
    """GroupNorm over (H x group channels) per batch element (biased var), then Mish.

    h2d: [BT*H, C] float32.  Returns [BT, H, C] float32.
    """
    C = h2d.shape[-1]
    h3 = h2d.reshape(bt_tile, horizon, C)
    inv_n = 1.0 / float(horizon * group_size)
    csum = jnp.sum(h3, axis=1)                       # [BT, C]  sublane reduce
    csum2 = jnp.sum(h3 * h3, axis=1)                 # [BT, C]
    # fused one-hot group reduce: [csum; csum2] @ M -> [2*BT, G]
    sg = jnp.dot(jnp.concatenate([csum, csum2], axis=0), m_ref[...],
                 preferred_element_type=jnp.float32) * inv_n
    mean_g = sg[:bt_tile]
    # NOTE: E[x^2]-E[x]^2 in f32 (fine at this scale; fragile for huge activations).
    inv_g = lax.rsqrt(sg[bt_tile:] - mean_g * mean_g + EPS)
    # fused one-hot broadcast back to channels: [mean; rstd] @ M^T -> [2*BT, C]
    gc = jnp.dot(jnp.concatenate([mean_g, inv_g], axis=0), mt_ref[...],
                 preferred_element_type=jnp.float32)
    # fold normalize + scale + shift into one per-channel affine (y = h*a + b)
    a = gc[bt_tile:] * gamma_ref[...]                # [BT, C]
    b = beta_ref[...] - gc[:bt_tile] * a             # [BT, C]
    return _mish(h3 * a[:, None, :] + b[:, None, :])


def _make_kernel(*, bt_tile, horizon, cin, cout, ksize, group_size, compute_dtype,
                 residual_identity):
    pad = ksize // 2
    M = bt_tile * horizon

    def kernel(xcol_ref, x_ref, t_ref,
               w1_ref, b1_ref, g1_ref, be1_ref,
               wt_ref, bt_ref,
               w2_ref, b2_ref, g2_ref, be2_ref,
               *rest):
        if residual_identity:
            m_ref, mt_ref, out_ref = rest
        else:
            wr_ref, br_ref, m_ref, mt_ref, out_ref = rest

        # ---- residual branch first, staged into out_ref (keeps live ranges short) ----
        if residual_identity:
            out_ref[...] = x_ref[...].astype(out_ref.dtype)          # nn.Identity()
        else:
            res = jnp.dot(x_ref[...].reshape(M, cin), wr_ref[...],
                          preferred_element_type=jnp.float32) + br_ref[...]
            out_ref[...] = res.reshape(bt_tile, horizon, cout).astype(out_ref.dtype)

        # ---- block 0: conv1d as ONE matmul on the wrapper-built im2col slab ----------
        xcol = xcol_ref[...].reshape(M, ksize * cin)                 # compute_dtype
        h0 = jnp.dot(xcol, w1_ref[...],
                     preferred_element_type=jnp.float32) + b1_ref[...]      # [M, Cout] f32
        h0 = _groupnorm_mish(h0, m_ref, mt_ref, g1_ref, be1_ref,
                             bt_tile, horizon, group_size)                   # [BT, H, Cout]

        # ---- time mlp: mish -> linear -> broadcast over horizon (tiny, kept f32) -----
        tfeat = _mish(t_ref[:, 0, :].astype(jnp.float32))                    # [BT, E]
        temb = jnp.dot(tfeat, wt_ref[...], preferred_element_type=jnp.float32) + bt_ref[...]
        h1 = (h0 + temb[:, None, :]).reshape(M, cout)                        # [M, Cout] f32

        # ---- block 1: conv1d as K tap-accumulated matmuls on rolled/masked h1 --------
        hl = lax.broadcasted_iota(jnp.int32, (M, cout), 0) % horizon         # local row idx
        acc = jnp.zeros((M, cout), jnp.float32) + b2_ref[...]
        for k in range(ksize):
            sh = k - pad                                  # tap k reads h1[row + sh]
            if sh == 0:
                tap = h1
            else:
                tap = pltpu.roll(h1, (-sh) % M, 0)        # row i <- h1[i + sh] (circular)
                valid = jnp.logical_and(hl + sh >= 0, hl + sh < horizon)
                tap = jnp.where(valid, tap, 0.0)          # zero batch-boundary/wrap rows
            acc = acc + jnp.dot(tap.astype(compute_dtype), w2_ref[k],
                                preferred_element_type=jnp.float32)
        h2 = _groupnorm_mish(acc, m_ref, mt_ref, g2_ref, be2_ref,
                             bt_tile, horizon, group_size)                   # [BT, H, Cout]

        out_ref[...] = (out_ref[...].astype(jnp.float32) + h2).astype(out_ref.dtype)

    return kernel


def _pick_batch_tile(batch, horizon):
    # Smallest batch tile giving M = BT*H >= 256 (fills the 256-wide MXU); otherwise the
    # whole batch in one fat step (fewer ~0.35us per-step overheads).  Multi-step grids
    # stay 'parallel' so v7x's two TensorCores share the batch axis.
    for bt in range(1, batch + 1):
        if batch % bt == 0 and bt * horizon >= 256:
            return bt
    return batch


def residual_temporal_block(x_nch, t, params, *, ksize=KERNEL_SIZE, n_groups=N_GROUPS,
                            batch_tile=None, compute_dtype=jnp.bfloat16):
    """x_nch: [B, Cin, H] (PyTorch NCH), t: [B, E] -> out: [B, Cout, H]."""
    B, Cin, H = x_nch.shape
    E = t.shape[1]
    Cout = params["w1"].shape[-1]
    assert Cout % n_groups == 0
    # TODO(synk): pad the horizon to a sublane multiple for general H (demo uses H % 8 == 0).
    assert H % 8 == 0
    # NOTE: Cout that is a multiple of 128 keeps every store in the kernel lane-dense.
    if batch_tile is None:
        batch_tile = _pick_batch_tile(B, H)
    BT = batch_tile
    assert B % BT == 0
    group_size = Cout // n_groups
    pad = ksize // 2
    residual_identity = params.get("wr", None) is None
    if residual_identity:
        assert Cin == Cout

    x = jnp.transpose(x_nch, (0, 2, 1))                    # [B, H, Cin] channels-last
    t3 = t[:, None, :].astype(jnp.float32)                 # [B, 1, E]

    # Wrapper-side im2col for conv0 (pure pad+concat layout plumbing) -> lane-dense
    # kernel loads and zero in-kernel fill stores:
    #   xcol[b, h, k*Cin + ci] = x[b, h + k - pad, ci]   (zero out of range)
    xp = jnp.pad(x, ((0, 0), (pad, pad), (0, 0)))
    xcol = jnp.concatenate([xp[:, k:k + H, :] for k in range(ksize)],
                           axis=-1).astype(compute_dtype)  # [B, H, K*Cin]
    x_res = x if residual_identity else x.astype(compute_dtype)

    # conv0 weight as a single 2-D im2col weight (row index = k*Cin + ci),
    # conv1 weight kept per-tap [K, Cout, Cout] for the roll-accumulate form.
    w1c = params["w1"].reshape(ksize * Cin, Cout).astype(compute_dtype)
    w2s = params["w2"].astype(compute_dtype)

    # group-membership one-hot matrix (and transpose) for the GroupNorm reduce
    gidx = np.repeat(np.arange(n_groups), group_size)
    Mh = np.zeros((Cout, n_groups), np.float32)
    Mh[np.arange(Cout), gidx] = 1.0
    Mj = jnp.asarray(Mh)
    MTj = jnp.asarray(np.ascontiguousarray(Mh.T))

    weight_args = [w1c, params["b1"], params["g1"], params["be1"],
                   params["wt"], params["bt"],
                   w2s, params["b2"], params["g2"], params["be2"]]
    if not residual_identity:
        weight_args += [params["wr"].astype(compute_dtype), params["br"]]
    weight_args += [Mj, MTj]

    def full_spec(arr):
        return pl.BlockSpec(arr.shape, lambda b, _nd=arr.ndim: (0,) * _nd)

    # TODO(synk): pin constant-index weight specs to pipeline_mode=pl.Buffered(1) once
    # single-buffering is confirmed; weights are small here so 2x buffering is cheap.
    in_specs = ([pl.BlockSpec((BT, H, ksize * Cin), lambda b: (b, 0, 0)),
                 pl.BlockSpec((BT, H, Cin), lambda b: (b, 0, 0)),
                 pl.BlockSpec((BT, 1, E), lambda b: (b, 0, 0))]
                + [full_spec(a) for a in weight_args])

    kernel = _make_kernel(bt_tile=BT, horizon=H, cin=Cin, cout=Cout, ksize=ksize,
                          group_size=group_size, compute_dtype=compute_dtype,
                          residual_identity=residual_identity)

    # explicit VMEM budget: double-buffered data blocks + 2x weights, floored at the
    # 32 MiB scoped default and capped below v7x's 64 MiB physical VMEM.
    block_bytes = (xcol.dtype.itemsize * BT * H * ksize * Cin
                   + x_res.dtype.itemsize * BT * H * Cin
                   + 4 * BT * E
                   + x_nch.dtype.itemsize * BT * H * Cout)
    weight_bytes = sum(int(a.size) * a.dtype.itemsize for a in weight_args)
    vmem_limit = int(min(60 * 2**20,
                         max(32 * 2**20, 2 * (2 * block_bytes + 2 * weight_bytes))))

    out = pl.pallas_call(
        kernel,
        out_shape=jax.ShapeDtypeStruct((B, H, Cout), x_nch.dtype),
        grid_spec=pltpu.PrefetchScalarGridSpec(
            num_scalar_prefetch=0,
            grid=(B // BT,),
            in_specs=in_specs,
            out_specs=pl.BlockSpec((BT, H, Cout), lambda b: (b, 0, 0))),
        compiler_params=pltpu.CompilerParams(
            dimension_semantics=("parallel",),
            vmem_limit_bytes=vmem_limit),
    )(xcol, x_res, t3, *weight_args)

    return jnp.transpose(out, (0, 2, 1))                   # back to [B, Cout, H]


def init_params(key, inp_channels, out_channels, embed_dim, ksize=KERNEL_SIZE):
    ks = jax.random.split(key, 8)

    def u(k, shape, fan_in):
        bound = 1.0 / np.sqrt(fan_in)
        return jax.random.uniform(k, shape, jnp.float32, -bound, bound)

    if inp_channels == out_channels:     # nn.Identity() residual branch
        wr, br = None, None
    else:                                # nn.Conv1d(inp, out, 1)
        wr = u(ks[6], (inp_channels, out_channels), inp_channels)
        br = u(ks[7], (1, out_channels), inp_channels)

    return dict(
        # conv weights as [K, Cin, Cout]  (w_jax[k, ci, co] == w_torch[co, ci, k])
        w1=u(ks[0], (ksize, inp_channels, out_channels), inp_channels * ksize),
        b1=u(ks[1], (1, out_channels), inp_channels * ksize),
        g1=jnp.ones((1, out_channels), jnp.float32),
        be1=jnp.zeros((1, out_channels), jnp.float32),
        wt=u(ks[2], (embed_dim, out_channels), embed_dim),
        bt=u(ks[3], (1, out_channels), embed_dim),
        w2=u(ks[4], (ksize, out_channels, out_channels), out_channels * ksize),
        b2=u(ks[5], (1, out_channels), out_channels * ksize),
        g2=jnp.ones((1, out_channels), jnp.float32),
        be2=jnp.zeros((1, out_channels), jnp.float32),
        wr=wr, br=br,
    )


def _ref_forward(x_nch, t, params, n_groups=N_GROUPS, ksize=KERNEL_SIZE):
    """Pure-JAX reference (same math, channels-last internally, standard mish form)."""
    x = jnp.transpose(x_nch, (0, 2, 1))

    def conv(xbhc, w, b):
        B, H, _ = xbhc.shape
        pad = ksize // 2
        xp = jnp.pad(xbhc, ((0, 0), (pad, pad), (0, 0)))
        acc = 0.0
        for k in range(ksize):
            acc = acc + jnp.einsum("bhi,io->bho", xp[:, k:k + H], w[k])
        return acc + b

    def gn_mish(h, gamma, beta):
        B, H, C = h.shape
        g = h.reshape(B, H, n_groups, C // n_groups)
        mean = g.mean(axis=(1, 3), keepdims=True)
        var = g.var(axis=(1, 3), keepdims=True)
        y = ((g - mean) / jnp.sqrt(var + EPS)).reshape(B, H, C)
        y = y * gamma + beta
        return y * jnp.tanh(jax.nn.softplus(y))

    h0 = gn_mish(conv(x, params["w1"], params["b1"]), params["g1"], params["be1"])
    temb = (t * jnp.tanh(jax.nn.softplus(t))) @ params["wt"] + params["bt"]
    h1 = h0 + temb[:, None, :]
    h2 = gn_mish(conv(h1, params["w2"], params["b2"]), params["g2"], params["be2"])
    if params.get("wr", None) is None:
        res = x
    else:
        res = jnp.einsum("bhi,io->bho", x, params["wr"]) + params["br"]
    return jnp.transpose(h2 + res, (0, 2, 1))


if __name__ == "__main__":
    key = jax.random.PRNGKey(0)
    k1, k2 = jax.random.split(key)

    # Case 1: Cin != Cout (1x1 residual conv).  Cout=128 keeps every store lane-dense.
    B, Cin, Cout, E, H = 4, 16, 128, 32, 32
    kx, kt, kp = jax.random.split(k1, 3)
    x = jax.random.normal(kx, (B, Cin, H), jnp.float32)    # [batch, inp_channels, horizon]
    t = jax.random.normal(kt, (B, E), jnp.float32)         # [batch, embed_dim]
    params = init_params(kp, Cin, Cout, E)
    ref = _ref_forward(x, t, params)

    # f32 matmul operands: tight check against the pure-JAX reference.
    out_f32 = jax.block_until_ready(
        residual_temporal_block(x, t, params, compute_dtype=jnp.float32))
    assert out_f32.shape == (B, Cout, H)
    np.testing.assert_allclose(np.asarray(out_f32), np.asarray(ref), atol=5e-4, rtol=5e-4)

    # Default perf path: bf16 matmul operands, f32 accumulation / GroupNorm (looser tol).
    out_bf16 = jax.block_until_ready(residual_temporal_block(x, t, params))
    np.testing.assert_allclose(np.asarray(out_bf16), np.asarray(ref), atol=5e-2, rtol=5e-2)

    # Case 2: Cin == Cout -> identity residual; 1x1 matmul and wr DMA skipped in-kernel.
    B2, C2, H2 = 2, 128, 16
    kx2, kt2, kp2 = jax.random.split(k2, 3)
    x2 = jax.random.normal(kx2, (B2, C2, H2), jnp.float32)
    t2 = jax.random.normal(kt2, (B2, E), jnp.float32)
    params2 = init_params(kp2, C2, C2, E)
    out2 = jax.block_until_ready(
        residual_temporal_block(x2, t2, params2, compute_dtype=jnp.float32))
    ref2 = _ref_forward(x2, t2, params2)
    np.testing.assert_allclose(np.asarray(out2), np.asarray(ref2), atol=5e-4, rtol=5e-4)

    print("KERNEL_OK")
</pallas_src>

<mosaic_0001>
module attributes {stable_mosaic.version = 11 : i64} {
  func.func @kernel(%arg0: i32, %arg1: memref<4x32x80xf32, #tpu.memory_space<vmem>>, %arg2: memref<4x32x16xf32, #tpu.memory_space<vmem>>, %arg3: memref<4x1x32xf32, #tpu.memory_space<vmem>>, %arg4: memref<80x128xf32, #tpu.memory_space<vmem>>, %arg5: memref<1x128xf32, #tpu.memory_space<vmem>>, %arg6: memref<1x128xf32, #tpu.memory_space<vmem>>, %arg7: memref<1x128xf32, #tpu.memory_space<vmem>>, %arg8: memref<32x128xf32, #tpu.memory_space<vmem>>, %arg9: memref<1x128xf32, #tpu.memory_space<vmem>>, %arg10: memref<5x128x128xf32, #tpu.memory_space<vmem>>, %arg11: memref<1x128xf32, #tpu.memory_space<vmem>>, %arg12: memref<1x128xf32, #tpu.memory_space<vmem>>, %arg13: memref<1x128xf32, #tpu.memory_space<vmem>>, %arg14: memref<16x128xf32, #tpu.memory_space<vmem>>, %arg15: memref<1x128xf32, #tpu.memory_space<vmem>>, %arg16: memref<128x8xf32, #tpu.memory_space<vmem>>, %arg17: memref<8x128xf32, #tpu.memory_space<vmem>>, %arg18: memref<4x32x128xf32, #tpu.memory_space<vmem>>) attributes {dimension_semantics = [#tpu.dimension_semantics<parallel>], iteration_bounds = array<i64: 1>, scalar_prefetch = 0 : i64, scratch_operands = 0 : i64, tpu.core_type = #tpu.core_type<tc>, window_params = [{transform_indices = @transform_0, window_bounds = array<i64: 4, 32, 80>}, {transform_indices = @transform_1, window_bounds = array<i64: 4, 32, 16>}, {transform_indices = @transform_2, window_bounds = array<i64: 4, 1, 32>}, {pipeline_mode = #tpu.pipeline_mode<synchronous>, transform_indices = @transform_3, window_bounds = array<i64: 80, 128>}, {pipeline_mode = #tpu.pipeline_mode<synchronous>, transform_indices = @transform_4, window_bounds = array<i64: 1, 128>}, {pipeline_mode = #tpu.pipeline_mode<synchronous>, transform_indices = @transform_5, window_bounds = array<i64: 1, 128>}, {pipeline_mode = #tpu.pipeline_mode<synchronous>, transform_indices = @transform_6, window_bounds = array<i64: 1, 128>}, {pipeline_mode = #tpu.pipeline_mode<synchronous>, transform_indices = @transform_7, window_bounds = array<i64: 32, 128>}, {pipeline_mode = #tpu.pipeline_mode<synchronous>, transform_indices = @transform_8, window_bounds = array<i64: 1, 128>}, {pipeline_mode = #tpu.pipeline_mode<synchronous>, transform_indices = @transform_9, window_bounds = array<i64: 5, 128, 128>}, {pipeline_mode = #tpu.pipeline_mode<synchronous>, transform_indices = @transform_10, window_bounds = array<i64: 1, 128>}, {pipeline_mode = #tpu.pipeline_mode<synchronous>, transform_indices = @transform_11, window_bounds = array<i64: 1, 128>}, {pipeline_mode = #tpu.pipeline_mode<synchronous>, transform_indices = @transform_12, window_bounds = array<i64: 1, 128>}, {pipeline_mode = #tpu.pipeline_mode<synchronous>, transform_indices = @transform_13, window_bounds = array<i64: 16, 128>}, {pipeline_mode = #tpu.pipeline_mode<synchronous>, transform_indices = @transform_14, window_bounds = array<i64: 1, 128>}, {pipeline_mode = #tpu.pipeline_mode<synchronous>, transform_indices = @transform_15, window_bounds = array<i64: 128, 8>}, {pipeline_mode = #tpu.pipeline_mode<synchronous>, transform_indices = @transform_16, window_bounds = array<i64: 8, 128>}, {transform_indices = @transform_17, window_bounds = array<i64: 4, 32, 128>}]} {
    %c0 = arith.constant 0 : index
    %c0_0 = arith.constant 0 : index
    %c0_1 = arith.constant 0 : index
    %0 = vector.load %arg2[%c0, %c0_0, %c0_1] : memref<4x32x16xf32, #tpu.memory_space<vmem>>, vector<4x32x16xf32>
    %1 = vector.shape_cast %0 : vector<4x32x16xf32> to vector<128x16xf32>
    %c0_2 = arith.constant 0 : index
    %c0_3 = arith.constant 0 : index
    %2 = vector.load %arg14[%c0_2, %c0_3] : memref<16x128xf32, #tpu.memory_space<vmem>>, vector<16x128xf32>
    %cst = arith.constant dense<0.000000e+00> : vector<128x128xf32>
    %3 = tpu.matmul %1, %2, %cst {dimension_numbers = #tpu.dot_dimension_numbers<[1], [0], [0], [1], [0, 0, 1, 1], [], []>} : vector<128x16xf32>, vector<16x128xf32>, vector<128x128xf32> -> vector<128x128xf32>
    %c0_4 = arith.constant 0 : index
    %c0_5 = arith.constant 0 : index
    %4 = vector.load %arg15[%c0_4, %c0_5] : memref<1x128xf32, #tpu.memory_space<vmem>>, vector<1x128xf32>
    %5 = vector.broadcast %4 : vector<1x128xf32> to vector<128x128xf32>
    %6 = arith.addf %3, %5 : vector<128x128xf32>
    %7 = vector.shape_cast %6 : vector<128x128xf32> to vector<4x32x128xf32>
    %c0_6 = arith.constant 0 : index
    %c0_7 = arith.constant 0 : index
    %c0_8 = arith.constant 0 : index
    %8 = vector.load %arg18[%c0_6, %c0_7, %c0_8] : memref<4x32x128xf32, #tpu.memory_space<vmem>>, vector<4x32x128xf32>
    tpu.vector_store %arg18[%c0_6, %c0_7, %c0_8], %7 {strides = array<i32>} : memref<4x32x128xf32, #tpu.memory_space<vmem>>, vector<4x32x128xf32>,
    %c0_9 = arith.constant 0 : index
    %c0_10 = arith.constant 0 : index
    %c0_11 = arith.constant 0 : index
    %9 = vector.load %arg1[%c0_9, %c0_10, %c0_11] : memref<4x32x80xf32, #tpu.memory_space<vmem>>, vector<4x32x80xf32>
    %10 = vector.shape_cast %9 : vector<4x32x80xf32> to vector<128x80xf32>
    %c0_12 = arith.constant 0 : index
    %c0_13 = arith.constant 0 : index
    %11 = vector.load %arg4[%c0_12, %c0_13] : memref<80x128xf32, #tpu.memory_space<vmem>>, vector<80x128xf32>
    %cst_14 = arith.constant dense<0.000000e+00> : vector<128x128xf32>
    %12 = tpu.matmul %10, %11, %cst_14 {dimension_numbers = #tpu.dot_dimension_numbers<[1], [0], [0], [1], [0, 0, 1, 1], [], []>} : vector<128x80xf32>, vector<80x128xf32>, vector<128x128xf32> -> vector<128x128xf32>
    %c0_15 = arith.constant 0 : index
    %c0_16 = arith.constant 0 : index
    %13 = vector.load %arg5[%c0_15, %c0_16] : memref<1x128xf32, #tpu.memory_space<vmem>>, vector<1x128xf32>
    %14 = vector.broadcast %13 : vector<1x128xf32> to vector<128x128xf32>
    %15 = arith.addf %12, %14 : vector<128x128xf32>
    %16 = vector.shape_cast %15 : vector<128x128xf32> to vector<4x32x128xf32>
    %cst_17 = arith.constant dense<0.000000e+00> : vector<4x128xf32>
    %17 = vector.multi_reduction <add>, %16, %cst_17 [1] : vector<4x32x128xf32> to vector<4x128xf32>
    %18 = arith.mulf %16, %16 : vector<4x32x128xf32>
    %cst_18 = arith.constant dense<0.000000e+00> : vector<4x128xf32>
    %19 = vector.multi_reduction <add>, %18, %cst_18 [1] : vector<4x32x128xf32> to vector<4x128xf32>
    %20 = tpu.concatenate %17, %19 in 0 : vector<4x128xf32>, vector<4x128xf32> -> vector<8x128xf32>
    %c0_19 = arith.constant 0 : index
    %c0_20 = arith.constant 0 : index
    %21 = vector.load %arg16[%c0_19, %c0_20] : memref<128x8xf32, #tpu.memory_space<vmem>>, vector<128x8xf32>
    %cst_21 = arith.constant dense<0.000000e+00> : vector<8x8xf32>
    %22 = tpu.matmul %20, %21, %cst_21 {dimension_numbers = #tpu.dot_dimension_numbers<[1], [0], [0], [1], [0, 0, 1, 1], [], []>} : vector<8x128xf32>, vector<128x8xf32>, vector<8x8xf32> -> vector<8x8xf32>
    %cst_22 = arith.constant 0.001953125 : f32
    %23 = vector.broadcast %cst_22 : f32 to vector<8x8xf32>
    %24 = arith.mulf %22, %23 : vector<8x8xf32>
    %25 = vector.extract_strided_slice %24 {offsets = [0, 0], sizes = [4, 8], strides = [1, 1]} : vector<8x8xf32> to vector<4x8xf32>
    %26 = vector.extract_strided_slice %24 {offsets = [4, 0], sizes = [4, 8], strides = [1, 1]} : vector<8x8xf32> to vector<4x8xf32>
    %27 = arith.mulf %25, %25 : vector<4x8xf32>
    %28 = arith.subf %26, %27 : vector<4x8xf32>
    %cst_23 = arith.constant 9.99999974E-6 : f32
    %29 = vector.broadcast %cst_23 : f32 to vector<4x8xf32>
    %30 = arith.addf %28, %29 : vector<4x8xf32>
    %31 = math.rsqrt %30 : vector<4x8xf32>
    %32 = tpu.concatenate %25, %31 in 0 : vector<4x8xf32>, vector<4x8xf32> -> vector<8x8xf32>
    %c0_24 = arith.constant 0 : index
    %c0_25 = arith.constant 0 : index
    %33 = vector.load %arg17[%c0_24, %c0_25] : memref<8x128xf32, #tpu.memory_space<vmem>>, vector<8x128xf32>
    %cst_26 = arith.constant dense<0.000000e+00> : vector<8x128xf32>
    %34 = tpu.matmul %32, %33, %cst_26 {dimension_numbers = #tpu.dot_dimension_numbers<[1], [0], [0], [1], [0, 0, 1, 1], [], []>} : vector<8x8xf32>, vector<8x128xf32>, vector<8x128xf32> -> vector<8x128xf32>
    %35 = vector.extract_strided_slice %34 {offsets = [4, 0], sizes = [4, 128], strides = [1, 1]} : vector<8x128xf32> to vector<4x128xf32>
    %c0_27 = arith.constant 0 : index
    %c0_28 = arith.constant 0 : index
    %36 = vector.load %arg6[%c0_27, %c0_28] : memref<1x128xf32, #tpu.memory_space<vmem>>, vector<1x128xf32>
    %37 = vector.broadcast %36 : vector<1x128xf32> to vector<4x128xf32>
    %38 = arith.mulf %35, %37 : vector<4x128xf32>
    %c0_29 = arith.constant 0 : index
    %c0_30 = arith.constant 0 : index
    %39 = vector.load %arg7[%c0_29, %c0_30] : memref<1x128xf32, #tpu.memory_space<vmem>>, vector<1x128xf32>
    %40 = vector.extract_strided_slice %34 {offsets = [0, 0], sizes = [4, 128], strides = [1, 1]} : vector<8x128xf32> to vector<4x128xf32>
    %41 = arith.mulf %40, %38 : vector<4x128xf32>
    %42 = vector.broadcast %39 : vector<1x128xf32> to vector<4x128xf32>
    %43 = arith.subf %42, %41 : vector<4x128xf32>
    %44 = vector.shape_cast %38 : vector<4x128xf32> to vector<4x1x128xf32>
    %45 = vector.broadcast %44 : vector<4x1x128xf32> to vector<4x32x128xf32>
    %46 = arith.mulf %16, %45 : vector<4x32x128xf32>
    %47 = vector.shape_cast %43 : vector<4x128xf32> to vector<4x1x128xf32>
    %48 = vector.broadcast %47 : vector<4x1x128xf32> to vector<4x32x128xf32>
    %49 = arith.addf %46, %48 : vector<4x32x128xf32>
    %50 = math.absf %49 : vector<4x32x128xf32>
    %cst_31 = arith.constant 0.000000e+00 : f32
    %51 = vector.broadcast %cst_31 : f32 to vector<4x32x128xf32>
    %52 = arith.subf %51, %50 : vector<4x32x128xf32>
    %53 = math.exp %52 : vector<4x32x128xf32>
    %cst_32 = arith.constant 0.000000e+00 : f32
    %54 = vector.broadcast %cst_32 : f32 to vector<4x32x128xf32>
    %55 = arith.cmpf oge, %49, %54 : vector<4x32x128xf32>
    %cst_33 = arith.constant 2.000000e+00 : f32
    %56 = vector.broadcast %cst_33 : f32 to vector<4x32x128xf32>
    %57 = arith.mulf %56, %53 : vector<4x32x128xf32>
    %cst_34 = arith.constant 1.000000e+00 : f32
    %58 = vector.broadcast %cst_34 : f32 to vector<4x32x128xf32>
    %59 = arith.addf %58, %57 : vector<4x32x128xf32>
    %cst_35 = arith.constant 2.000000e+00 : f32
    %60 = vector.broadcast %cst_35 : f32 to vector<4x32x128xf32>
    %61 = arith.addf %53, %60 : vector<4x32x128xf32>
    %62 = arith.mulf %53, %61 : vector<4x32x128xf32>
    %63 = arith.select %55, %59, %62 : vector<4x32x128xi1>, vector<4x32x128xf32>
    %cst_36 = arith.constant 0.000000e+00 : f32
    %64 = vector.broadcast %cst_36 : f32 to vector<4x32x128xf32>
    %65 = arith.cmpf oge, %49, %64 : vector<4x32x128xf32>
    %cst_37 = arith.constant 2.000000e+00 : f32
    %66 = vector.broadcast %cst_37 : f32 to vector<4x32x128xf32>
    %67 = arith.mulf %66, %53 : vector<4x32x128xf32>
    %68 = arith.mulf %67, %53 : vector<4x32x128xf32>
    %cst_38 = arith.constant 2.000000e+00 : f32
    %69 = vector.broadcast %cst_38 : f32 to vector<4x32x128xf32>
    %70 = arith.select %65, %68, %69 : vector<4x32x128xi1>, vector<4x32x128xf32>
    %71 = arith.addf %63, %70 : vector<4x32x128xf32>
    %72 = arith.mulf %49, %63 : vector<4x32x128xf32>
    %73 = arith.divf %72, %71 : vector<4x32x128xf32>
    %c0_39 = arith.constant 0 : index
    %c0_40 = arith.constant 0 : index
    %c0_41 = arith.constant 0 : index
    %74 = vector.load %arg3[%c0_39, %c0_40, %c0_41] : memref<4x1x32xf32, #tpu.memory_space<vmem>>, vector<4x1x32xf32>
    %75 = vector.shape_cast %74 : vector<4x1x32xf32> to vector<4x32xf32>
    %76 = math.absf %75 : vector<4x32xf32>
    %cst_42 = arith.constant 0.000000e+00 : f32
    %77 = vector.broadcast %cst_42 : f32 to vector<4x32xf32>
    %78 = arith.subf %77, %76 : vector<4x32xf32>
    %79 = math.exp %78 : vector<4x32xf32>
    %cst_43 = arith.constant 0.000000e+00 : f32
    %80 = vector.broadcast %cst_43 : f32 to vector<4x32xf32>
    %81 = arith.cmpf oge, %75, %80 : vector<4x32xf32>
    %cst_44 = arith.constant 2.000000e+00 : f32
    %82 = vector.broadcast %cst_44 : f32 to vector<4x32xf32>
    %83 = arith.mulf %82, %79 : vector<4x32xf32>
    %cst_45 = arith.constant 1.000000e+00 : f32
    %84 = vector.broadcast %cst_45 : f32 to vector<4x32xf32>
    %85 = arith.addf %84, %83 : vector<4x32xf32>
    %cst_46 = arith.constant 2.000000e+00 : f32
    %86 = vector.broadcast %cst_46 : f32 to vector<4x32xf32>
    %87 = arith.addf %79, %86 : vector<4x32xf32>
    %88 = arith.mulf %79, %87 : vector<4x32xf32>
    %89 = arith.select %81, %85, %88 : vector<4x32xi1>, vector<4x32xf32>
    %cst_47 = arith.constant 0.000000e+00 : f32
    %90 = vector.broadcast %cst_47 : f32 to vector<4x32xf32>
    %91 = arith.cmpf oge, %75, %90 : vector<4x32xf32>
    %cst_48 = arith.constant 2.000000e+00 : f32
    %92 = vector.broadcast %cst_48 : f32 to vector<4x32xf32>
    %93 = arith.mulf %92, %79 : vector<4x32xf32>
    %94 = arith.mulf %93, %79 : vector<4x32xf32>
    %cst_49 = arith.constant 2.000000e+00 : f32
    %95 = vector.broadcast %cst_49 : f32 to vector<4x32xf32>
    %96 = arith.select %91, %94, %95 : vector<4x32xi1>, vector<4x32xf32>
    %97 = arith.addf %89, %96 : vector<4x32xf32>
    %98 = arith.mulf %75, %89 : vector<4x32xf32>
    %99 = arith.divf %98, %97 : vector<4x32xf32>
    %c0_50 = arith.constant 0 : index
    %c0_51 = arith.constant 0 : index
    %100 = vector.load %arg8[%c0_50, %c0_51] : memref<32x128xf32, #tpu.memory_space<vmem>>, vector<32x128xf32>
    %cst_52 = arith.constant dense<0.000000e+00> : vector<4x128xf32>
    %101 = tpu.matmul %99, %100, %cst_52 {dimension_numbers = #tpu.dot_dimension_numbers<[1], [0], [0], [1], [0, 0, 1, 1], [], []>} : vector<4x32xf32>, vector<32x128xf32>, vector<4x128xf32> -> vector<4x128xf32>
    %c0_53 = arith.constant 0 : index
    %c0_54 = arith.constant 0 : index
    %102 = vector.load %arg9[%c0_53, %c0_54] : memref<1x128xf32, #tpu.memory_space<vmem>>, vector<1x128xf32>
    %103 = vector.broadcast %102 : vector<1x128xf32> to vector<4x128xf32>
    %104 = arith.addf %101, %103 : vector<4x128xf32>
    %105 = vector.shape_cast %104 : vector<4x128xf32> to vector<4x1x128xf32>
    %106 = vector.broadcast %105 : vector<4x1x128xf32> to vector<4x32x128xf32>
    %107 = arith.addf %73, %106 : vector<4x32x128xf32>
    %108 = vector.shape_cast %107 : vector<4x32x128xf32> to vector<128x128xf32>
    %109 = tpu.iota {dimensions = array<i32: 0>} : vector<128x128xi32>
    %c32_i32 = arith.constant 32 : i32
    %c0_i32 = arith.constant 0 : i32
    %110 = arith.cmpi eq, %c32_i32, %c0_i32 : i32
    %c1_i32 = arith.constant 1 : i32
    %111 = arith.select %110, %c1_i32, %c32_i32 : i32
    %112 = vector.broadcast %111 : i32 to vector<128x128xi32>
    %113 = arith.remsi %109, %112 : vector<128x128xi32>
    %c0_i32_55 = arith.constant 0 : i32
    %114 = vector.broadcast %c0_i32_55 : i32 to vector<128x128xi32>
    %115 = arith.cmpi ne, %113, %114 : vector<128x128xi32>
    %c0_i32_56 = arith.constant 0 : i32
    %116 = vector.broadcast %c0_i32_56 : i32 to vector<128x128xi32>
    %117 = arith.cmpi slt, %113, %116 : vector<128x128xi32>
    %c0_i32_57 = arith.constant 0 : i32
    %118 = arith.cmpi slt, %111, %c0_i32_57 : i32
    %119 = vector.broadcast %118 : i1 to vector<128x128xi1>
    %120 = vector.broadcast %119 : vector<128x128xi1> to vector<128x128xi1>
    %121 = arith.xori %117, %120 : vector<128x128xi1>
    %122 = arith.andi %121, %115 : vector<128x128xi1>
    %123 = vector.broadcast %111 : i32 to vector<128x128xi32>
    %124 = arith.addi %113, %123 : vector<128x128xi32>
    %125 = arith.select %122, %124, %113 : vector<128x128xi1>, vector<128x128xi32>
    %cst_58 = arith.constant 0.000000e+00 : f32
    %126 = vector.broadcast %cst_58 : f32 to vector<128x128xf32>
    %c0_59 = arith.constant 0 : index
    %c0_60 = arith.constant 0 : index
    %127 = vector.load %arg11[%c0_59, %c0_60] : memref<1x128xf32, #tpu.memory_space<vmem>>, vector<1x128xf32>
    %128 = vector.broadcast %127 : vector<1x128xf32> to vector<128x128xf32>
    %129 = arith.addf %126, %128 : vector<128x128xf32>
    %c2_i32 = arith.constant 2 : i32
    %130 = tpu.dynamic_rotate %108 by %c2_i32 dim 0 : vector<128x128xf32>, i32 -> vector<128x128xf32>
    %c-2_i32 = arith.constant -2 : i32
    %131 = vector.broadcast %c-2_i32 : i32 to vector<128x128xi32>
    %132 = arith.addi %125, %131 : vector<128x128xi32>
    %c0_i32_61 = arith.constant 0 : i32
    %133 = vector.broadcast %c0_i32_61 : i32 to vector<128x128xi32>
    %134 = arith.cmpi sge, %132, %133 : vector<128x128xi32>
    %c-2_i32_62 = arith.constant -2 : i32
    %135 = vector.broadcast %c-2_i32_62 : i32 to vector<128x128xi32>
    %136 = arith.addi %125, %135 : vector<128x128xi32>
    %c32_i32_63 = arith.constant 32 : i32
    %137 = vector.broadcast %c32_i32_63 : i32 to vector<128x128xi32>
    %138 = arith.cmpi slt, %136, %137 : vector<128x128xi32>
    %139 = arith.andi %134, %138 : vector<128x128xi1>
    %cst_64 = arith.constant 0.000000e+00 : f32
    %140 = vector.broadcast %cst_64 : f32 to vector<128x128xf32>
    %141 = arith.select %139, %130, %140 : vector<128x128xi1>, vector<128x128xf32>
    %c0_65 = arith.constant 0 : index
    %c0_66 = arith.constant 0 : index
    %c0_67 = arith.constant 0 : index
    %142 = vector.load %arg10[%c0_65, %c0_66, %c0_67] : memref<5x128x128xf32, #tpu.memory_space<vmem>>, vector<1x128x128xf32>
    %143 = vector.shape_cast %142 : vector<1x128x128xf32> to vector<128x128xf32>
    %cst_68 = arith.constant dense<0.000000e+00> : vector<128x128xf32>
    %144 = tpu.matmul %141, %143, %cst_68 {dimension_numbers = #tpu.dot_dimension_numbers<[1], [0], [0], [1], [0, 0, 1, 1], [], []>} : vector<128x128xf32>, vector<128x128xf32>, vector<128x128xf32> -> vector<128x128xf32>
    %145 = arith.addf %129, %144 : vector<128x128xf32>
    %c1_i32_69 = arith.constant 1 : i32
    %146 = tpu.dynamic_rotate %108 by %c1_i32_69 dim 0 : vector<128x128xf32>, i32 -> vector<128x128xf32>
    %c-1_i32 = arith.constant -1 : i32
    %147 = vector.broadcast %c-1_i32 : i32 to vector<128x128xi32>
    %148 = arith.addi %125, %147 : vector<128x128xi32>
    %c0_i32_70 = arith.constant 0 : i32
    %149 = vector.broadcast %c0_i32_70 : i32 to vector<128x128xi32>
    %150 = arith.cmpi sge, %148, %149 : vector<128x128xi32>
    %c-1_i32_71 = arith.constant -1 : i32
    %151 = vector.broadcast %c-1_i32_71 : i32 to vector<128x128xi32>
    %152 = arith.addi %125, %151 : vector<128x128xi32>
    %c32_i32_72 = arith.constant 32 : i32
    %153 = vector.broadcast %c32_i32_72 : i32 to vector<128x128xi32>
    %154 = arith.cmpi slt, %152, %153 : vector<128x128xi32>
    %155 = arith.andi %150, %154 : vector<128x128xi1>
    %cst_73 = arith.constant 0.000000e+00 : f32
    %156 = vector.broadcast %cst_73 : f32 to vector<128x128xf32>
    %157 = arith.select %155, %146, %156 : vector<128x128xi1>, vector<128x128xf32>
    %c1 = arith.constant 1 : index
    %c0_74 = arith.constant 0 : index
    %c0_75 = arith.constant 0 : index
    %158 = vector.load %arg10[%c1, %c0_74, %c0_75] : memref<5x128x128xf32, #tpu.memory_space<vmem>>, vector<1x128x128xf32>
    %159 = vector.shape_cast %158 : vector<1x128x128xf32> to vector<128x128xf32>
    %cst_76 = arith.constant dense<0.000000e+00> : vector<128x128xf32>
    %160 = tpu.matmul %157, %159, %cst_76 {dimension_numbers = #tpu.dot_dimension_numbers<[1], [0], [0], [1], [0, 0, 1, 1], [], []>} : vector<128x128xf32>, vector<128x128xf32>, vector<128x128xf32> -> vector<128x128xf32>
    %161 = arith.addf %145, %160 : vector<128x128xf32>
    %c2 = arith.constant 2 : index
    %c0_77 = arith.constant 0 : index
    %c0_78 = arith.constant 0 : index
    %162 = vector.load %arg10[%c2, %c0_77, %c0_78] : memref<5x128x128xf32, #tpu.memory_space<vmem>>, vector<1x128x128xf32>
    %163 = vector.shape_cast %162 : vector<1x128x128xf32> to vector<128x128xf32>
    %cst_79 = arith.constant dense<0.000000e+00> : vector<128x128xf32>
    %164 = tpu.matmul %108, %163, %cst_79 {dimension_numbers = #tpu.dot_dimension_numbers<[1], [0], [0], [1], [0, 0, 1, 1], [], []>} : vector<128x128xf32>, vector<128x128xf32>, vector<128x128xf32> -> vector<128x128xf32>
    %165 = arith.addf %161, %164 : vector<128x128xf32>
    %c127_i32 = arith.constant 127 : i32
    %166 = tpu.dynamic_rotate %108 by %c127_i32 dim 0 : vector<128x128xf32>, i32 -> vector<128x128xf32>
    %c1_i32_80 = arith.constant 1 : i32
    %167 = vector.broadcast %c1_i32_80 : i32 to vector<128x128xi32>
    %168 = arith.addi %125, %167 : vector<128x128xi32>
    %c0_i32_81 = arith.constant 0 : i32
    %169 = vector.broadcast %c0_i32_81 : i32 to vector<128x128xi32>
    %170 = arith.cmpi sge, %168, %169 : vector<128x128xi32>
    %c1_i32_82 = arith.constant 1 : i32
    %171 = vector.broadcast %c1_i32_82 : i32 to vector<128x128xi32>
    %172 = arith.addi %125, %171 : vector<128x128xi32>
    %c32_i32_83 = arith.constant 32 : i32
    %173 = vector.broadcast %c32_i32_83 : i32 to vector<128x128xi32>
    %174 = arith.cmpi slt, %172, %173 : vector<128x128xi32>
    %175 = arith.andi %170, %174 : vector<128x128xi1>
    %cst_84 = arith.constant 0.000000e+00 : f32
    %176 = vector.broadcast %cst_84 : f32 to vector<128x128xf32>
    %177 = arith.select %175, %166, %176 : vector<128x128xi1>, vector<128x128xf32>
    %c3 = arith.constant 3 : index
    %c0_85 = arith.constant 0 : index
    %c0_86 = arith.constant 0 : index
    %178 = vector.load %arg10[%c3, %c0_85, %c0_86] : memref<5x128x128xf32, #tpu.memory_space<vmem>>, vector<1x128x128xf32>
    %179 = vector.shape_cast %178 : vector<1x128x128xf32> to vector<128x128xf32>
    %cst_87 = arith.constant dense<0.000000e+00> : vector<128x128xf32>
    %180 = tpu.matmul %177, %179, %cst_87 {dimension_numbers = #tpu.dot_dimension_numbers<[1], [0], [0], [1], [0, 0, 1, 1], [], []>} : vector<128x128xf32>, vector<128x128xf32>, vector<128x128xf32> -> vector<128x128xf32>
    %181 = arith.addf %165, %180 : vector<128x128xf32>
    %c126_i32 = arith.constant 126 : i32
    %182 = tpu.dynamic_rotate %108 by %c126_i32 dim 0 : vector<128x128xf32>, i32 -> vector<128x128xf32>
    %c2_i32_88 = arith.constant 2 : i32
    %183 = vector.broadcast %c2_i32_88 : i32 to vector<128x128xi32>
    %184 = arith.addi %125, %183 : vector<128x128xi32>
    %c0_i32_89 = arith.constant 0 : i32
    %185 = vector.broadcast %c0_i32_89 : i32 to vector<128x128xi32>
    %186 = arith.cmpi sge, %184, %185 : vector<128x128xi32>
    %c2_i32_90 = arith.constant 2 : i32
    %187 = vector.broadcast %c2_i32_90 : i32 to vector<128x128xi32>
    %188 = arith.addi %125, %187 : vector<128x128xi32>
    %c32_i32_91 = arith.constant 32 : i32
    %189 = vector.broadcast %c32_i32_91 : i32 to vector<128x128xi32>
    %190 = arith.cmpi slt, %188, %189 : vector<128x128xi32>
    %191 = arith.andi %186, %190 : vector<128x128xi1>
    %cst_92 = arith.constant 0.000000e+00 : f32
    %192 = vector.broadcast %cst_92 : f32 to vector<128x128xf32>
    %193 = arith.select %191, %182, %192 : vector<128x128xi1>, vector<128x128xf32>
    %c4 = arith.constant 4 : index
    %c0_93 = arith.constant 0 : index
    %c0_94 = arith.constant 0 : index
    %194 = vector.load %arg10[%c4, %c0_93, %c0_94] : memref<5x128x128xf32, #tpu.memory_space<vmem>>, vector<1x128x128xf32>
    %195 = vector.shape_cast %194 : vector<1x128x128xf32> to vector<128x128xf32>
    %cst_95 = arith.constant dense<0.000000e+00> : vector<128x128xf32>
    %196 = tpu.matmul %193, %195, %cst_95 {dimension_numbers = #tpu.dot_dimension_numbers<[1], [0], [0], [1], [0, 0, 1, 1], [], []>} : vector<128x128xf32>, vector<128x128xf32>, vector<128x128xf32> -> vector<128x128xf32>
    %197 = arith.addf %181, %196 : vector<128x128xf32>
    %198 = vector.shape_cast %197 : vector<128x128xf32> to vector<4x32x128xf32>
    %cst_96 = arith.constant dense<0.000000e+00> : vector<4x128xf32>
    %199 = vector.multi_reduction <add>, %198, %cst_96 [1] : vector<4x32x128xf32> to vector<4x128xf32>
    %200 = arith.mulf %198, %198 : vector<4x32x128xf32>
    %cst_97 = arith.constant dense<0.000000e+00> : vector<4x128xf32>
    %201 = vector.multi_reduction <add>, %200, %cst_97 [1] : vector<4x32x128xf32> to vector<4x128xf32>
    %202 = tpu.concatenate %199, %201 in 0 : vector<4x128xf32>, vector<4x128xf32> -> vector<8x128xf32>
    %c0_98 = arith.constant 0 : index
    %c0_99 = arith.constant 0 : index
    %203 = vector.load %arg16[%c0_98, %c0_99] : memref<128x8xf32, #tpu.memory_space<vmem>>, vector<128x8xf32>
    %cst_100 = arith.constant dense<0.000000e+00> : vector<8x8xf32>
    %204 = tpu.matmul %202, %203, %cst_100 {dimension_numbers = #tpu.dot_dimension_numbers<[1], [0], [0], [1], [0, 0, 1, 1], [], []>} : vector<8x128xf32>, vector<128x8xf32>, vector<8x8xf32> -> vector<8x8xf32>
    %cst_101 = arith.constant 0.001953125 : f32
    %205 = vector.broadcast %cst_101 : f32 to vector<8x8xf32>
    %206 = arith.mulf %204, %205 : vector<8x8xf32>
    %207 = vector.extract_strided_slice %206 {offsets = [0, 0], sizes = [4, 8], strides = [1, 1]} : vector<8x8xf32> to vector<4x8xf32>
    %208 = vector.extract_strided_slice %206 {offsets = [4, 0], sizes = [4, 8], strides = [1, 1]} : vector<8x8xf32> to vector<4x8xf32>
    %209 = arith.mulf %207, %207 : vector<4x8xf32>
    %210 = arith.subf %208, %209 : vector<4x8xf32>
    %cst_102 = arith.constant 9.99999974E-6 : f32
    %211 = vector.broadcast %cst_102 : f32 to vector<4x8xf32>
    %212 = arith.addf %210, %211 : vector<4x8xf32>
    %213 = math.rsqrt %212 : vector<4x8xf32>
    %214 = tpu.concatenate %207, %213 in 0 : vector<4x8xf32>, vector<4x8xf32> -> vector<8x8xf32>
    %c0_103 = arith.constant 0 : index
    %c0_104 = arith.constant 0 : index
    %215 = vector.load %arg17[%c0_103, %c0_104] : memref<8x128xf32, #tpu.memory_space<vmem>>, vector<8x128xf32>
    %cst_105 = arith.constant dense<0.000000e+00> : vector<8x128xf32>
    %216 = tpu.matmul %214, %215, %cst_105 {dimension_numbers = #tpu.dot_dimension_numbers<[1], [0], [0], [1], [0, 0, 1, 1], [], []>} : vector<8x8xf32>, vector<8x128xf32>, vector<8x128xf32> -> vector<8x128xf32>
    %217 = vector.extract_strided_slice %216 {offsets = [4, 0], sizes = [4, 128], strides = [1, 1]} : vector<8x128xf32> to vector<4x128xf32>
    %c0_106 = arith.constant 0 : index
    %c0_107 = arith.constant 0 : index
    %218 = vector.load %arg12[%c0_106, %c0_107] : memref<1x128xf32, #tpu.memory_space<vmem>>, vector<1x128xf32>
    %219 = vector.broadcast %218 : vector<1x128xf32> to vector<4x128xf32>
    %220 = arith.mulf %217, %219 : vector<4x128xf32>
    %c0_108 = arith.constant 0 : index
    %c0_109 = arith.constant 0 : index
    %221 = vector.load %arg13[%c0_108, %c0_109] : memref<1x128xf32, #tpu.memory_space<vmem>>, vector<1x128xf32>
    %222 = vector.extract_strided_slice %216 {offsets = [0, 0], sizes = [4, 128], strides = [1, 1]} : vector<8x128xf32> to vector<4x128xf32>
    %223 = arith.mulf %222, %220 : vector<4x128xf32>
    %224 = vector.broadcast %221 : vector<1x128xf32> to vector<4x128xf32>
    %225 = arith.subf %224, %223 : vector<4x128xf32>
    %226 = vector.shape_cast %220 : vector<4x128xf32> to vector<4x1x128xf32>
    %227 = vector.broadcast %226 : vector<4x1x128xf32> to vector<4x32x128xf32>
    %228 = arith.mulf %198, %227 : vector<4x32x128xf32>
    %229 = vector.shape_cast %225 : vector<4x128xf32> to vector<4x1x128xf32>
    %230 = vector.broadcast %229 : vector<4x1x128xf32> to vector<4x32x128xf32>
    %231 = arith.addf %228, %230 : vector<4x32x128xf32>
    %232 = math.absf %231 : vector<4x32x128xf32>
    %cst_110 = arith.constant 0.000000e+00 : f32
    %233 = vector.broadcast %cst_110 : f32 to vector<4x32x128xf32>
    %234 = arith.subf %233, %232 : vector<4x32x128xf32>
    %235 = math.exp %234 : vector<4x32x128xf32>
    %cst_111 = arith.constant 0.000000e+00 : f32
    %236 = vector.broadcast %cst_111 : f32 to vector<4x32x128xf32>
    %237 = arith.cmpf oge, %231, %236 : vector<4x32x128xf32>
    %cst_112 = arith.constant 2.000000e+00 : f32
    %238 = vector.broadcast %cst_112 : f32 to vector<4x32x128xf32>
    %239 = arith.mulf %238, %235 : vector<4x32x128xf32>
    %cst_113 = arith.constant 1.000000e+00 : f32
    %240 = vector.broadcast %cst_113 : f32 to vector<4x32x128xf32>
    %241 = arith.addf %240, %239 : vector<4x32x128xf32>
    %cst_114 = arith.constant 2.000000e+00 : f32
    %242 = vector.broadcast %cst_114 : f32 to vector<4x32x128xf32>
    %243 = arith.addf %235, %242 : vector<4x32x128xf32>
    %244 = arith.mulf %235, %243 : vector<4x32x128xf32>
    %245 = arith.select %237, %241, %244 : vector<4x32x128xi1>, vector<4x32x128xf32>
    %cst_115 = arith.constant 0.000000e+00 : f32
    %246 = vector.broadcast %cst_115 : f32 to vector<4x32x128xf32>
    %247 = arith.cmpf oge, %231, %246 : vector<4x32x128xf32>
    %cst_116 = arith.constant 2.000000e+00 : f32
    %248 = vector.broadcast %cst_116 : f32 to vector<4x32x128xf32>
    %249 = arith.mulf %248, %235 : vector<4x32x128xf32>
    %250 = arith.mulf %249, %235 : vector<4x32x128xf32>
    %cst_117 = arith.constant 2.000000e+00 : f32
    %251 = vector.broadcast %cst_117 : f32 to vector<4x32x128xf32>
    %252 = arith.select %247, %250, %251 : vector<4x32x128xi1>, vector<4x32x128xf32>
    %253 = arith.addf %245, %252 : vector<4x32x128xf32>
    %254 = arith.mulf %231, %245 : vector<4x32x128xf32>
    %255 = arith.divf %254, %253 : vector<4x32x128xf32>
    %c0_118 = arith.constant 0 : index
    %c0_119 = arith.constant 0 : index
    %c0_120 = arith.constant 0 : index
    %256 = vector.load %arg18[%c0_118, %c0_119, %c0_120] : memref<4x32x128xf32, #tpu.memory_space<vmem>>, vector<4x32x128xf32>
    %257 = arith.addf %256, %255 : vector<4x32x128xf32>
    %c0_121 = arith.constant 0 : index
    %c0_122 = arith.constant 0 : index
    %c0_123 = arith.constant 0 : index
    %258 = vector.load %arg18[%c0_121, %c0_122, %c0_123] : memref<4x32x128xf32, #tpu.memory_space<vmem>>, vector<4x32x128xf32>
    tpu.vector_store %arg18[%c0_121, %c0_122, %c0_123], %257 {strides = array<i32>} : memref<4x32x128xf32, #tpu.memory_space<vmem>>, vector<4x32x128xf32>,
    return
  }
  func.func @transform_0(%arg0: i32) -> (i32, i32, i32) {
    %c0_i32 = arith.constant 0 : i32
    %c0_i32_0 = arith.constant 0 : i32
    %c0_i32_1 = arith.constant 0 : i32
    return %arg0, %c0_i32, %c0_i32_0 : i32, i32, i32
  }
  func.func @transform_1(%arg0: i32) -> (i32, i32, i32) {
    %c0_i32 = arith.constant 0 : i32
    %c0_i32_0 = arith.constant 0 : i32
    %c0_i32_1 = arith.constant 0 : i32
    return %arg0, %c0_i32, %c0_i32_0 : i32, i32, i32
  }
  func.func @transform_2(%arg0: i32) -> (i32, i32, i32) {
    %c0_i32 = arith.constant 0 : i32
    %c0_i32_0 = arith.constant 0 : i32
    %c0_i32_1 = arith.constant 0 : i32
    return %arg0, %c0_i32, %c0_i32_0 : i32, i32, i32
  }
  func.func @transform_3(%arg0: i32) -> (i32, i32) {
    %c0_i32 = arith.constant 0 : i32
    %c0_i32_0 = arith.constant 0 : i32
    %c0_i32_1 = arith.constant 0 : i32
    return %c0_i32, %c0_i32_0 : i32, i32
  }
  func.func @transform_4(%arg0: i32) -> (i32, i32) {
    %c0_i32 = arith.constant 0 : i32
    %c0_i32_0 = arith.constant 0 : i32
    %c0_i32_1 = arith.constant 0 : i32
    return %c0_i32, %c0_i32_0 : i32, i32
  }
  func.func @transform_5(%arg0: i32) -> (i32, i32) {
    %c0_i32 = arith.constant 0 : i32
    %c0_i32_0 = arith.constant 0 : i32
    %c0_i32_1 = arith.constant 0 : i32
    return %c0_i32, %c0_i32_0 : i32, i32
  }
  func.func @transform_6(%arg0: i32) -> (i32, i32) {
    %c0_i32 = arith.constant 0 : i32
    %c0_i32_0 = arith.constant 0 : i32
    %c0_i32_1 = arith.constant 0 : i32
    return %c0_i32, %c0_i32_0 : i32, i32
  }
  func.func @transform_7(%arg0: i32) -> (i32, i32) {
    %c0_i32 = arith.constant 0 : i32
    %c0_i32_0 = arith.constant 0 : i32
    %c0_i32_1 = arith.constant 0 : i32
    return %c0_i32, %c0_i32_0 : i32, i32
  }
  func.func @transform_8(%arg0: i32) -> (i32, i32) {
    %c0_i32 = arith.constant 0 : i32
    %c0_i32_0 = arith.constant 0 : i32
    %c0_i32_1 = arith.constant 0 : i32
    return %c0_i32, %c0_i32_0 : i32, i32
  }
  func.func @transform_9(%arg0: i32) -> (i32, i32, i32) {
    %c0_i32 = arith.constant 0 : i32
    %c0_i32_0 = arith.constant 0 : i32
    %c0_i32_1 = arith.constant 0 : i32
    %c0_i32_2 = arith.constant 0 : i32
    return %c0_i32, %c0_i32_0, %c0_i32_1 : i32, i32, i32
  }
  func.func @transform_10(%arg0: i32) -> (i32, i32) {
    %c0_i32 = arith.constant 0 : i32
    %c0_i32_0 = arith.constant 0 : i32
    %c0_i32_1 = arith.constant 0 : i32
    return %c0_i32, %c0_i32_0 : i32, i32
  }
  func.func @transform_11(%arg0: i32) -> (i32, i32) {
    %c0_i32 = arith.constant 0 : i32
    %c0_i32_0 = arith.constant 0 : i32
    %c0_i32_1 = arith.constant 0 : i32
    return %c0_i32, %c0_i32_0 : i32, i32
  }
  func.func @transform_12(%arg0: i32) -> (i32, i32) {
    %c0_i32 = arith.constant 0 : i32
    %c0_i32_0 = arith.constant 0 : i32
    %c0_i32_1 = arith.constant 0 : i32
    return %c0_i32, %c0_i32_0 : i32, i32
  }
  func.func @transform_13(%arg0: i32) -> (i32, i32) {
    %c0_i32 = arith.constant 0 : i32
    %c0_i32_0 = arith.constant 0 : i32
    %c0_i32_1 = arith.constant 0 : i32
    return %c0_i32, %c0_i32_0 : i32, i32
  }
  func.func @transform_14(%arg0: i32) -> (i32, i32) {
    %c0_i32 = arith.constant 0 : i32
    %c0_i32_0 = arith.constant 0 : i32
    %c0_i32_1 = arith.constant 0 : i32
    return %c0_i32, %c0_i32_0 : i32, i32
  }
  func.func @transform_15(%arg0: i32) -> (i32, i32) {
    %c0_i32 = arith.constant 0 : i32
    %c0_i32_0 = arith.constant 0 : i32
    %c0_i32_1 = arith.constant 0 : i32
    return %c0_i32, %c0_i32_0 : i32, i32
  }
  func.func @transform_16(%arg0: i32) -> (i32, i32) {
    %c0_i32 = arith.constant 0 : i32
    %c0_i32_0 = arith.constant 0 : i32
    %c0_i32_1 = arith.constant 0 : i32
    return %c0_i32, %c0_i32_0 : i32, i32
  }
  func.func @transform_17(%arg0: i32) -> (i32, i32, i32) {
    %c0_i32 = arith.constant 0 : i32
    %c0_i32_0 = arith.constant 0 : i32
    %c0_i32_1 = arith.constant 0 : i32
    return %arg0, %c0_i32, %c0_i32_0 : i32, i32, i32
  }
}

</mosaic_0001>

<llo_original>
// kernel: tpu_custom_call.1
$region0: #{tpu_custom_call.1}
  #allocation0 [shape = 'u32[]', space=smem, size = 0x4, offset = 0x4, fixed_abs, tag = 'smem constant byte address 0x4 - core index']
  #allocation1 [shape = 'u32[144,128]{1,0:T(1,128)}', space=vmem, size = 0x12000, scoped, tag = 'internal scratch']
  %s0 = inlined_call_operand.vmem [shape: f32[4,32,80], index: 0, kind: input, shape index: {}]
  %s1 = inlined_call_operand.vmem [shape: f32[4,32,16], index: 1, kind: input, shape index: {}]
  %s2 = inlined_call_operand.vmem [shape: f32[4,1,32], index: 2, kind: input, shape index: {}]
  %s3 = inlined_call_operand.vmem [shape: f32[80,128], index: 3, kind: input, shape index: {}]
  %s4 = inlined_call_operand.vmem [shape: f32[1,128], index: 4, kind: input, shape index: {}]
  %s5 = inlined_call_operand.vmem [shape: f32[1,128], index: 5, kind: input, shape index: {}]
  %s6 = inlined_call_operand.vmem [shape: f32[1,128], index: 6, kind: input, shape index: {}]
  %s7 = inlined_call_operand.vmem [shape: f32[32,128], index: 7, kind: input, shape index: {}]
  %s8 = inlined_call_operand.vmem [shape: f32[1,128], index: 8, kind: input, shape index: {}]
  %s9 = inlined_call_operand.hbm [shape: f32[5,128,128], index: 9, kind: input, shape index: {}]
  %s10 = inlined_call_operand.vmem [shape: f32[1,128], index: 10, kind: input, shape index: {}]
  %s11 = inlined_call_operand.vmem [shape: f32[1,128], index: 11, kind: input, shape index: {}]
  %s12 = inlined_call_operand.vmem [shape: f32[1,128], index: 12, kind: input, shape index: {}]
  %s13 = inlined_call_operand.vmem [shape: f32[16,128], index: 13, kind: input, shape index: {}]
  %s14 = inlined_call_operand.vmem [shape: f32[1,128], index: 14, kind: input, shape index: {}]
  %s15 = inlined_call_operand.vmem [shape: f32[128,8], index: 15, kind: input, shape index: {}]
  %s16 = inlined_call_operand.vmem [shape: f32[8,128], index: 16, kind: input, shape index: {}]
  %s17 = inlined_call_operand.hbm [shape: f32[4,32,128], index: 17, kind: output, shape index: {}]
  %s18 = sld [smem:[#allocation0]]
  $region82: #{tpu_custom_call.1} parent=0
    _
  %s20 = ssub.s32 1, %s18
  %s21 = scalar_select 0, %s20, %s18
  $region1: #{tpu_custom_call.1} parent=0
    #allocation2 [shape = 'u8[327680]{0}', space=vmem, size = 0x50000, scoped, tag = 'input window, operand 9, single buffered']
    #allocation3 [shape = 's32[1]{0}', space=sflag, size = 0x4, scoped, tag = 'scoped memory for tpu_custom_call.1']
    #allocation4 [shape = 's32[1]{0}', space=sflag, size = 0x4, scoped, tag = 'scoped memory for tpu_custom_call.1']
    #allocation5 [shape = 'u8[65536]{0}', space=vmem, size = 0x10000, scoped, tag = 'output window, operand 0, single buffered']
    %22 = vsyncpa [#allocation3], 0
    %23 = vsyncpa [#allocation4], 0
    // Predicated region
    $region2: #{tpu_custom_call.1} parent=1 // pred_check
      _
    $region3: #{tpu_custom_call.1} parent=1 // pred_check_branch
      %25 = sbr.rel (0) target = $region5
    $region4: #{tpu_custom_call.1} parent=1 // pred_region
      _
    $region5: #{tpu_custom_call.1} parent=1 // pred_fallthru
      _
    // Predicated region
    $region6: #{tpu_custom_call.1} parent=1 // pred_check
      _
    $region7: #{tpu_custom_call.1} parent=1 // pred_check_branch
      %27 = sbr.rel (0) target = $region9
    $region8: #{tpu_custom_call.1} parent=1 // pred_region
      _
    $region9: #{tpu_custom_call.1} parent=1 // pred_fallthru
      _
    // Predicated region
    $region10: #{tpu_custom_call.1} parent=1 // pred_check
      _
    $region11: #{tpu_custom_call.1} parent=1 // pred_check_branch
      %29 = sbr.rel (0) target = $region13
    $region12: #{tpu_custom_call.1} parent=1 // pred_region
      _
    $region13: #{tpu_custom_call.1} parent=1 // pred_fallthru
      _
    // Predicated region
    $region14: #{tpu_custom_call.1} parent=1 // pred_check
      _
    $region15: #{tpu_custom_call.1} parent=1 // pred_check_branch
      %31 = sbr.rel (0) target = $region17
    $region16: #{tpu_custom_call.1} parent=1 // pred_region
      _
    $region17: #{tpu_custom_call.1} parent=1 // pred_fallthru
      _
    // Predicated region
    $region18: #{tpu_custom_call.1} parent=1 // pred_check
      _
    $region19: #{tpu_custom_call.1} parent=1 // pred_check_branch
      %33 = sbr.rel (0) target = $region21
    $region20: #{tpu_custom_call.1} parent=1 // pred_region
      _
    $region21: #{tpu_custom_call.1} parent=1 // pred_fallthru
      _
    // Predicated region
    $region22: #{tpu_custom_call.1} parent=1 // pred_check
      _
    $region23: #{tpu_custom_call.1} parent=1 // pred_check_branch
      %35 = sbr.rel (0) target = $region25
    $region24: #{tpu_custom_call.1} parent=1 // pred_region
      _
    $region25: #{tpu_custom_call.1} parent=1 // pred_fallthru
      _
    // Predicated region
    $region26: #{tpu_custom_call.1} parent=1 // pred_check
      _
    $region27: #{tpu_custom_call.1} parent=1 // pred_check_branch
      %37 = sbr.rel (0) target = $region29
    $region28: #{tpu_custom_call.1} parent=1 // pred_region
      _
    $region29: #{tpu_custom_call.1} parent=1 // pred_fallthru
      _
    // Predicated region
    $region30: #{tpu_custom_call.1} parent=1 // pred_check
      _
    $region31: #{tpu_custom_call.1} parent=1 // pred_check_branch
      %39 = sbr.rel (0) target = $region33
    $region32: #{tpu_custom_call.1} parent=1 // pred_region
      _
    $region33: #{tpu_custom_call.1} parent=1 // pred_fallthru
      _
    // Predicated region
    $region34: #{tpu_custom_call.1} parent=1 // pred_check
      _
    $region35: #{tpu_custom_call.1} parent=1 // pred_check_branch
      %41 = sbr.rel (0) target = $region37
    $region36: #{tpu_custom_call.1} parent=1 // pred_region
      _
    $region37: #{tpu_custom_call.1} parent=1 // pred_fallthru
      _
    // Predicated region
    $region38: #{tpu_custom_call.1} parent=1 // pred_check
      _
    $region39: #{tpu_custom_call.1} parent=1 // pred_check_branch
      %43 = sbr.rel (0) target = $region41
    $region40: #{tpu_custom_call.1} parent=1 // pred_region
      %s45 = ssub.s32 10240, 10240
      %46 = vsyncadd [#allocation3], %s45
      %s47 = sshll.u32 [#allocation2], 4
      %s48 = int_to_ptr.vmem [resolvable:$true] %s47
      %53 = dma.hbm_to_vmem [thread:$0]  %s9, 10240, %s48, [#allocation3], 128, 128, 8
    $region41: #{tpu_custom_call.1} parent=1 // pred_fallthru
      _
    // Predicated region
    $region42: #{tpu_custom_call.1} parent=1 // pred_check
      _
    $region43: #{tpu_custom_call.1} parent=1 // pred_check_branch
      %55 = sbr.rel (0) target = $region45
    $region44: #{tpu_custom_call.1} parent=1 // pred_region
      _
    $region45: #{tpu_custom_call.1} parent=1 // pred_fallthru
      _
    // Predicated region
    $region46: #{tpu_custom_call.1} parent=1 // pred_check
      _
    $region47: #{tpu_custom_call.1} parent=1 // pred_check_branch
      %57 = sbr.rel (0) target = $region49
    $region48: #{tpu_custom_call.1} parent=1 // pred_region
      _
    $region49: #{tpu_custom_call.1} parent=1 // pred_fallthru
      _
    // Predicated region
    $region50: #{tpu_custom_call.1} parent=1 // pred_check
      _
    $region51: #{tpu_custom_call.1} parent=1 // pred_check_branch
      %59 = sbr.rel (0) target = $region53
    $region52: #{tpu_custom_call.1} parent=1 // pred_region
      _
    $region53: #{tpu_custom_call.1} parent=1 // pred_fallthru
      _
    // Predicated region
    $region54: #{tpu_custom_call.1} parent=1 // pred_check
      _
    $region55: #{tpu_custom_call.1} parent=1 // pred_check_branch
      %61 = sbr.rel (0) target = $region57
    $region56: #{tpu_custom_call.1} parent=1 // pred_region
      _
    $region57: #{tpu_custom_call.1} parent=1 // pred_fallthru
      _
    // Predicated region
    $region58: #{tpu_custom_call.1} parent=1 // pred_check
      _
    $region59: #{tpu_custom_call.1} parent=1 // pred_check_branch
      %63 = sbr.rel (0) target = $region61
    $region60: #{tpu_custom_call.1} parent=1 // pred_region
      _
    $region61: #{tpu_custom_call.1} parent=1 // pred_fallthru
      _
    // Predicated region
    $region62: #{tpu_custom_call.1} parent=1 // pred_check
      _
    $region63: #{tpu_custom_call.1} parent=1 // pred_check_branch
      %65 = sbr.rel (0) target = $region65
    $region64: #{tpu_custom_call.1} parent=1 // pred_region
      _
    $region65: #{tpu_custom_call.1} parent=1 // pred_fallthru
      _
    // Predicated region
    $region66: #{tpu_custom_call.1} parent=1 // pred_check
      _
    $region67: #{tpu_custom_call.1} parent=1 // pred_check_branch
      %67 = sbr.rel (0) target = $region69
    $region68: #{tpu_custom_call.1} parent=1 // pred_region
      _
    $region69: #{tpu_custom_call.1} parent=1 // pred_fallthru
      _
    // Predicated region
    $region70: #{tpu_custom_call.1} parent=1 // pred_check
      _
    $region71: #{tpu_custom_call.1} parent=1 // pred_check_branch
      %69 = sbr.rel (0) target = $region73
    $region72: #{tpu_custom_call.1} parent=1 // pred_region
      %70 = dma.done [#allocation3], 10240
    $region73: #{tpu_custom_call.1} parent=1 // pred_fallthru
      _
    %v71 = vld [vmem:[%s1] sm:$0xff]
    %v72 = vld [vmem:[%s1 + $0x8] sm:$0xff]
    %v73 = vld [vmem:[%s1 + $0x10] sm:$0xff]
    %v74 = vld [vmem:[%s1 + $0x18] sm:$0xff]
    %v75 = vld [vmem:[%s1 + $0x20] sm:$0xff]
    %v76 = vld [vmem:[%s1 + $0x28] sm:$0xff]
    %v77 = vld [vmem:[%s1 + $0x30] sm:$0xff]
    %v78 = vld [vmem:[%s1 + $0x38] sm:$0xff]
    %v79 = vld [vmem:[%s1 + $0x40] sm:$0xff]
    %v80 = vld [vmem:[%s1 + $0x48] sm:$0xff]
    %v81 = vld [vmem:[%s1 + $0x50] sm:$0xff]
    %v82 = vld [vmem:[%s1 + $0x58] sm:$0xff]
    %v83 = vld [vmem:[%s1 + $0x60] sm:$0xff]
    %v84 = vld [vmem:[%s1 + $0x68] sm:$0xff]
    %v85 = vld [vmem:[%s1 + $0x70] sm:$0xff]
    %v86 = vld [vmem:[%s1 + $0x78] sm:$0xff]
    %v87 = vld [vmem:[%s13] sm:$0xff]
    %v88 = vld [vmem:[%s13 + $0x8] sm:$0xff]
    %v89 = vld [vmem:[%s14] sm:$0x1]
    %v91 = vlaneseq
    %v92 = vshrl.u32 %v91, 7
    %v93 = vsub.s32 0, %v92
    %v94 = vrot.slane %v89, %v93
    %vm96 = vcmask 130048
    %v98 = vsel %vm96, %v71, 0
    %v101 = vsel %vm96, %v72, 0
    %v104 = vsel %vm96, %v73, 0
    %v107 = vsel %vm96, %v74, 0
    %v110 = vsel %vm96, %v75, 0
    %v113 = vsel %vm96, %v76, 0
    %v116 = vsel %vm96, %v77, 0
    %v119 = vsel %vm96, %v78, 0
    %v122 = vsel %vm96, %v79, 0
    %v125 = vsel %vm96, %v80, 0
    %v128 = vsel %vm96, %v81, 0
    %v131 = vsel %vm96, %v82, 0
    %v134 = vsel %vm96, %v83, 0
    %v137 = vsel %vm96, %v84, 0
    %v140 = vsel %vm96, %v85, 0
    %v143 = vsel %vm96, %v86, 0
    %145 = vmatprep.subr.mxu0 0.0
    %146 = vmatpush1.msra.mxu0 %v87
    %147 = vmatprep.subr.mxu0 0.0
    %148 = vmatpush1.msra.mxu0 %v88
    %149 = vmatprep.subr.mxu0 0.0
    %150 = vmatpush1.msra.mxu0 0.0
    %151 = vmatprep.subr.mxu0 0.0
    %152 = vmatpush1.msra.mxu0 0.0
    %153 = vmatprep.subr.mxu0 0.0
    %154 = vmatpush1.msra.mxu0 0.0
    %155 = vmatprep.subr.mxu0 0.0
    %156 = vmatpush1.msra.mxu0 0.0
    %157 = vmatprep.subr.mxu0 0.0
    %158 = vmatpush1.msra.mxu0 0.0
    %159 = vmatprep.subr.mxu0 0.0
    %160 = vmatpush1.msra.mxu0 0.0
    %161 = vmatprep.subr.mxu0 0.0
    %162 = vmatpush1.msra.mxu0 0.0
    %163 = vmatprep.subr.mxu0 0.0
    %164 = vmatpush1.msra.mxu0 0.0
    %165 = vmatprep.subr.mxu0 0.0
    %166 = vmatpush1.msra.mxu0 0.0
    %167 = vmatprep.subr.mxu0 0.0
    %168 = vmatpush1.msra.mxu0 0.0
    %169 = vmatprep.subr.mxu0 0.0
    %170 = vmatpush1.msra.mxu0 0.0
    %171 = vmatprep.subr.mxu0 0.0
    %172 = vmatpush1.msra.mxu0 0.0
    %173 = vmatprep.subr.mxu0 0.0
    %174 = vmatpush1.msra.mxu0 0.0
    %175 = vmatprep.subr.mxu0 0.0
    %176 = vmatpush1.msra.mxu0 0.0
    %177 = vmatprep.subr.mxu0 0.0
    %178 = vmatpush1.msra.mxu0 0.0
    %179 = vmatprep.subr.mxu0 0.0
    %180 = vmatpush1.msra.mxu0 0.0
    %181 = vmatprep.subr.mxu0 0.0
    %182 = vmatpush1.msra.mxu0 0.0
    %183 = vmatprep.subr.mxu0 0.0
    %184 = vmatpush1.msra.mxu0 0.0
    %185 = vmatprep.subr.mxu0 0.0
    %186 = vmatpush1.msra.mxu0 0.0
    %187 = vmatprep.subr.mxu0 0.0
    %188 = vmatpush1.msra.mxu0 0.0
    %189 = vmatprep.subr.mxu0 0.0
    %190 = vmatpush1.msra.mxu0 0.0
    %191 = vmatprep.subr.mxu0 0.0
    %192 = vmatpush1.msra.mxu0 0.0
    %193 = vmatprep.subr.mxu0 0.0
    %194 = vmatpush1.msra.mxu0 0.0
    %195 = vmatprep.subr.mxu0 0.0
    %196 = vmatpush1.msra.mxu0 0.0
    %197 = vmatprep.subr.mxu0 0.0
    %198 = vmatpush1.msra.mxu0 0.0
    %199 = vmatprep.subr.mxu0 0.0
    %200 = vmatpush1.msra.mxu0 0.0
    %201 = vmatprep.subr.mxu0 0.0
    %202 = vmatpush1.msra.mxu0 0.0
    %203 = vmatprep.subr.mxu0 0.0
    %204 = vmatpush1.msra.mxu0 0.0
    %205 = vmatprep.subr.mxu0 0.0
    %206 = vmatpush1.msra.mxu0 0.0
    %207 = vmatprep.subr.mxu0 0.0
    %208 = vmatpush1.msra.mxu0 0.0
    %209 = vmatprep.mubr.f32.mxu0 0.0
    %210 = vmatmul.mubr.f32.gmra.mrb[0].mxu0 %v98
    %v211 = vpop.f32.mrb[0].mxu0
    %v212 = vadd.f32 %v94, %v211
    %v213 = vpop.f32.mrb[0].mxu0
    %214 = vmatprep.mubr.f32.mxu0 0.0
    %215 = vmatmul.mubr.f32.gmra.mrb[0].mxu0 %v101
    %v216 = vpop.f32.mrb[0].mxu0
    %v217 = vadd.f32 %v94, %v216
    %v218 = vpop.f32.mrb[0].mxu0
    %219 = vmatprep.mubr.f32.mxu0 0.0
    %220 = vmatmul.mubr.f32.gmra.mrb[0].mxu0 %v104
    %v221 = vpop.f32.mrb[0].mxu0
    %v222 = vadd.f32 %v94, %v221
    %v223 = vpop.f32.mrb[0].mxu0
    %224 = vmatprep.mubr.f32.mxu0 0.0
    %225 = vmatmul.mubr.f32.gmra.mrb[0].mxu0 %v107
    %v226 = vpop.f32.mrb[0].mxu0
    %v227 = vadd.f32 %v94, %v226
    %v228 = vpop.f32.mrb[0].mxu0
    %229 = vmatprep.mubr.f32.mxu0 0.0
    %230 = vmatmul.mubr.f32.gmra.mrb[0].mxu0 %v110
    %v231 = vpop.f32.mrb[0].mxu0
    %v232 = vadd.f32 %v94, %v231
    %v233 = vpop.f32.mrb[0].mxu0
    %234 = vmatprep.mubr.f32.mxu0 0.0
    %235 = vmatmul.mubr.f32.gmra.mrb[0].mxu0 %v113
    %v236 = vpop.f32.mrb[0].mxu0
    %v237 = vadd.f32 %v94, %v236
    %v238 = vpop.f32.mrb[0].mxu0
    %239 = vmatprep.mubr.f32.mxu0 0.0
    %240 = vmatmul.mubr.f32.gmra.mrb[0].mxu0 %v116
    %v241 = vpop.f32.mrb[0].mxu0
    %v242 = vadd.f32 %v94, %v241
    %v243 = vpop.f32.mrb[0].mxu0
    %244 = vmatprep.mubr.f32.mxu0 0.0
    %245 = vmatmul.mubr.f32.gmra.mrb[0].mxu0 %v119
    %v246 = vpop.f32.mrb[0].mxu0
    %v247 = vadd.f32 %v94, %v246
    %v248 = vpop.f32.mrb[0].mxu0
    %249 = vmatprep.mubr.f32.mxu0 0.0
    %250 = vmatmul.mubr.f32.gmra.mrb[0].mxu0 %v122
    %v251 = vpop.f32.mrb[0].mxu0
    %v252 = vadd.f32 %v94, %v251
    %v253 = vpop.f32.mrb[0].mxu0
    %254 = vmatprep.mubr.f32.mxu0 0.0
    %255 = vmatmul.mubr.f32.gmra.mrb[0].mxu0 %v125
    %v256 = vpop.f32.mrb[0].mxu0
    %v257 = vadd.f32 %v94, %v256
    %v258 = vpop.f32.mrb[0].mxu0
    %259 = vmatprep.mubr.f32.mxu0 0.0
    %260 = vmatmul.mubr.f32.gmra.mrb[0].mxu0 %v128
    %v261 = vpop.f32.mrb[0].mxu0
    %v262 = vadd.f32 %v94, %v261
    %v263 = vpop.f32.mrb[0].mxu0
    %264 = vmatprep.mubr.f32.mxu0 0.0
    %265 = vmatmul.mubr.f32.gmra.mrb[0].mxu0 %v131
    %v266 = vpop.f32.mrb[0].mxu0
    %v267 = vadd.f32 %v94, %v266
    %v268 = vpop.f32.mrb[0].mxu0
    %269 = vmatprep.mubr.f32.mxu0 0.0
    %270 = vmatmul.mubr.f32.gmra.mrb[0].mxu0 %v134
    %v271 = vpop.f32.mrb[0].mxu0
    %v272 = vadd.f32 %v94, %v271
    %v273 = vpop.f32.mrb[0].mxu0
    %274 = vmatprep.mubr.f32.mxu0 0.0
    %275 = vmatmul.mubr.f32.gmra.mrb[0].mxu0 %v137
    %v276 = vpop.f32.mrb[0].mxu0
    %v277 = vadd.f32 %v94, %v276
    %v278 = vpop.f32.mrb[0].mxu0
    %279 = vmatprep.mubr.f32.mxu0 0.0
    %280 = vmatmul.mubr.f32.gmra.mrb[0].mxu0 %v140
    %v281 = vpop.f32.mrb[0].mxu0
    %v282 = vadd.f32 %v94, %v281
    %v283 = vpop.f32.mrb[0].mxu0
    %284 = vmatprep.mubr.f32.mxu0 0.0
    %285 = vmatmul.mubr.f32.gmra.mrb[0].mxu0 %v143
    %v286 = vpop.f32.mrb[0].mxu0
    %v287 = vadd.f32 %v94, %v286
    %v288 = vpop.f32.mrb[0].mxu0
    %289 = vdwg.mxu0
    %290 = vst [vmem:[#allocation5] sm:$0xff] %v212
    %291 = vst [vmem:[#allocation5 + $0x8] sm:$0xff] %v217
    %292 = vst [vmem:[#allocation5 + $0x10] sm:$0xff] %v222
    %293 = vst [vmem:[#allocation5 + $0x18] sm:$0xff] %v227
    %294 = vst [vmem:[#allocation5 + $0x20] sm:$0xff] %v232
    %295 = vst [vmem:[#allocation5 + $0x28] sm:$0xff] %v237
    %296 = vst [vmem:[#allocation5 + $0x30] sm:$0xff] %v242
    %297 = vst [vmem:[#allocation5 + $0x38] sm:$0xff] %v247
    %298 = vst [vmem:[#allocation5 + $0x40] sm:$0xff] %v252
    %299 = vst [vmem:[#allocation5 + $0x48] sm:$0xff] %v257
    %300 = vst [vmem:[#allocation5 + $0x50] sm:$0xff] %v262
    %301 = vst [vmem:[#allocation5 + $0x58] sm:$0xff] %v267
    %302 = vst [vmem:[#allocation5 + $0x60] sm:$0xff] %v272
    %303 = vst [vmem:[#allocation5 + $0x68] sm:$0xff] %v277
    %304 = vst [vmem:[#allocation5 + $0x70] sm:$0xff] %v282
    %305 = vst [vmem:[#allocation5 + $0x78] sm:$0xff] %v287
    %v306 = vld [vmem:[%s0] sm:$0xff]
    %v307 = vld [vmem:[%s0 + $0x8] sm:$0xff]
    %v308 = vld [vmem:[%s0 + $0x10] sm:$0xff]
    %v309 = vld [vmem:[%s0 + $0x18] sm:$0xff]
    %v310 = vld [vmem:[%s0 + $0x20] sm:$0xff]
    %v311 = vld [vmem:[%s0 + $0x28] sm:$0xff]
    %v312 = vld [vmem:[%s0 + $0x30] sm:$0xff]
    %v313 = vld [vmem:[%s0 + $0x38] sm:$0xff]
    %v314 = vld [vmem:[%s0 + $0x40] sm:$0xff]
    %v315 = vld [vmem:[%s0 + $0x48] sm:$0xff]
    %v316 = vld [vmem:[%s0 + $0x50] sm:$0xff]
    %v317 = vld [vmem:[%s0 + $0x58] sm:$0xff]
    %v318 = vld [vmem:[%s0 + $0x60] sm:$0xff]
    %v319 = vld [vmem:[%s0 + $0x68] sm:$0xff]
    %v320 = vld [vmem:[%s0 + $0x70] sm:$0xff]
    %v321 = vld [vmem:[%s0 + $0x78] sm:$0xff]
    %v322 = vld [vmem:[%s3] sm:$0xff]
    %v323 = vld [vmem:[%s3 + $0x8] sm:$0xff]
    %v324 = vld [vmem:[%s3 + $0x10] sm:$0xff]
    %v325 = vld [vmem:[%s3 + $0x18] sm:$0xff]
    %v326 = vld [vmem:[%s3 + $0x20] sm:$0xff]
    %v327 = vld [vmem:[%s3 + $0x28] sm:$0xff]
    %v328 = vld [vmem:[%s3 + $0x30] sm:$0xff]
    %v329 = vld [vmem:[%s3 + $0x38] sm:$0xff]
    %v330 = vld [vmem:[%s3 + $0x40] sm:$0xff]
    %v331 = vld [vmem:[%s3 + $0x48] sm:$0xff]
    %v332 = vld [vmem:[%s4] sm:$0x1]
    %v334 = vlaneseq
    %v335 = vshrl.u32 %v334, 7
    %v336 = vsub.s32 0, %v335
    %v337 = vrot.slane %v332, %v336
    %vm339 = vcmask 654336
    %v341 = vsel %vm339, %v306, 0
    %v344 = vsel %vm339, %v307, 0
    %v347 = vsel %vm339, %v308, 0
    %v350 = vsel %vm339, %v309, 0
    %v353 = vsel %vm339, %v310, 0
    %v356 = vsel %vm339, %v311, 0
    %v359 = vsel %vm339, %v312, 0
    %v362 = vsel %vm339, %v313, 0
    %v365 = vsel %vm339, %v314, 0
    %v368 = vsel %vm339, %v315, 0
    %v371 = vsel %vm339, %v316, 0
    %v374 = vsel %vm339, %v317, 0
    %v377 = vsel %vm339, %v318, 0
    %v380 = vsel %vm339, %v319, 0
    %v383 = vsel %vm339, %v320, 0
    %v386 = vsel %vm339, %v321, 0
    %388 = vmatprep.subr.mxu0 0.0
    %389 = vmatpush1.msra.mxu0 %v322
    %390 = vmatprep.subr.mxu0 0.0
    %391 = vmatpush1.msra.mxu0 %v323
    %392 = vmatprep.subr.mxu0 0.0
    %393 = vmatpush1.msra.mxu0 %v324
    %394 = vmatprep.subr.mxu0 0.0
    %395 = vmatpush1.msra.mxu0 %v325
    %396 = vmatprep.subr.mxu0 0.0
    %397 = vmatpush1.msra.mxu0 %v326
    %398 = vmatprep.subr.mxu0 0.0
    %399 = vmatpush1.msra.mxu0 %v327
    %400 = vmatprep.subr.mxu0 0.0
    %401 = vmatpush1.msra.mxu0 %v328
    %402 = vmatprep.subr.mxu0 0.0
    %403 = vmatpush1.msra.mxu0 %v329
    %404 = vmatprep.subr.mxu0 0.0
    %405 = vmatpush1.msra.mxu0 %v330
    %406 = vmatprep.subr.mxu0 0.0
    %407 = vmatpush1.msra.mxu0 %v331
    %408 = vmatprep.subr.mxu0 0.0
    %409 = vmatpush1.msra.mxu0 0.0
    %410 = vmatprep.subr.mxu0 0.0
    %411 = vmatpush1.msra.mxu0 0.0
    %412 = vmatprep.subr.mxu0 0.0
    %413 = vmatpush1.msra.mxu0 0.0
    %414 = vmatprep.subr.mxu0 0.0
    %415 = vmatpush1.msra.mxu0 0.0
    %416 = vmatprep.subr.mxu0 0.0
    %417 = vmatpush1.msra.mxu0 0.0
    %418 = vmatprep.subr.mxu0 0.0
    %419 = vmatpush1.msra.mxu0 0.0
    %420 = vmatprep.subr.mxu0 0.0
    %421 = vmatpush1.msra.mxu0 0.0
    %422 = vmatprep.subr.mxu0 0.0
    %423 = vmatpush1.msra.mxu0 0.0
    %424 = vmatprep.subr.mxu0 0.0
    %425 = vmatpush1.msra.mxu0 0.0
    %426 = vmatprep.subr.mxu0 0.0
    %427 = vmatpush1.msra.mxu0 0.0
    %428 = vmatprep.subr.mxu0 0.0
    %429 = vmatpush1.msra.mxu0 0.0
    %430 = vmatprep.subr.mxu0 0.0
    %431 = vmatpush1.msra.mxu0 0.0
    %432 = vmatprep.subr.mxu0 0.0
    %433 = vmatpush1.msra.mxu0 0.0
    %434 = vmatprep.subr.mxu0 0.0
    %435 = vmatpush1.msra.mxu0 0.0
    %436 = vmatprep.subr.mxu0 0.0
    %437 = vmatpush1.msra.mxu0 0.0
    %438 = vmatprep.subr.mxu0 0.0
    %439 = vmatpush1.msra.mxu0 0.0
    %440 = vmatprep.subr.mxu0 0.0
    %441 = vmatpush1.msra.mxu0 0.0
    %442 = vmatprep.subr.mxu0 0.0
    %443 = vmatpush1.msra.mxu0 0.0
    %444 = vmatprep.subr.mxu0 0.0
    %445 = vmatpush1.msra.mxu0 0.0
    %446 = vmatprep.subr.mxu0 0.0
    %447 = vmatpush1.msra.mxu0 0.0
    %448 = vmatprep.subr.mxu0 0.0
    %449 = vmatpush1.msra.mxu0 0.0
    %450 = vmatprep.subr.mxu0 0.0
    %451 = vmatpush1.msra.mxu0 0.0
    %452 = vmatprep.mubr.f32.mxu0 0.0
    %453 = vmatmul.mubr.f32.gmra.mrb[0].mxu0 %v341
    %v454 = vpop.f32.mrb[0].mxu0
    %v455 = vadd.f32 %v337, %v454
    %v456 = vpop.f32.mrb[0].mxu0
    %457 = vmatprep.mubr.f32.mxu0 0.0
    %458 = vmatmul.mubr.f32.gmra.mrb[0].mxu0 %v344
    %v459 = vpop.f32.mrb[0].mxu0
    %v460 = vadd.f32 %v337, %v459
    %v461 = vpop.f32.mrb[0].mxu0
    %462 = vmatprep.mubr.f32.mxu0 0.0
    %463 = vmatmul.mubr.f32.gmra.mrb[0].mxu0 %v347
    %v464 = vpop.f32.mrb[0].mxu0
    %v465 = vadd.f32 %v337, %v464
    %v466 = vpop.f32.mrb[0].mxu0
    %467 = vmatprep.mubr.f32.mxu0 0.0
    %468 = vmatmul.mubr.f32.gmra.mrb[0].mxu0 %v350
    %v469 = vpop.f32.mrb[0].mxu0
    %v470 = vadd.f32 %v337, %v469
    %v471 = vpop.f32.mrb[0].mxu0
    %472 = vmatprep.mubr.f32.mxu0 0.0
    %473 = vmatmul.mubr.f32.gmra.mrb[0].mxu0 %v353
    %v474 = vpop.f32.mrb[0].mxu0
    %v475 = vadd.f32 %v337, %v474
    %v476 = vpop.f32.mrb[0].mxu0
    %477 = vmatprep.mubr.f32.mxu0 0.0
    %478 = vmatmul.mubr.f32.gmra.mrb[0].mxu0 %v356
    %v479 = vpop.f32.mrb[0].mxu0
    %v480 = vadd.f32 %v337, %v479
    %v481 = vpop.f32.mrb[0].mxu0
    %482 = vmatprep.mubr.f32.mxu0 0.0
    %483 = vmatmul.mubr.f32.gmra.mrb[0].mxu0 %v359
    %v484 = vpop.f32.mrb[0].mxu0
    %v485 = vadd.f32 %v337, %v484
    %v486 = vpop.f32.mrb[0].mxu0
    %487 = vmatprep.mubr.f32.mxu0 0.0
    %488 = vmatmul.mubr.f32.gmra.mrb[0].mxu0 %v362
    %v489 = vpop.f32.mrb[0].mxu0
    %v490 = vadd.f32 %v337, %v489
    %v491 = vpop.f32.mrb[0].mxu0
    %492 = vmatprep.mubr.f32.mxu0 0.0
    %493 = vmatmul.mubr.f32.gmra.mrb[0].mxu0 %v365
    %v494 = vpop.f32.mrb[0].mxu0
    %v495 = vadd.f32 %v337, %v494
    %v496 = vpop.f32.mrb[0].mxu0
    %497 = vmatprep.mubr.f32.mxu0 0.0
    %498 = vmatmul.mubr.f32.gmra.mrb[0].mxu0 %v368
    %v499 = vpop.f32.mrb[0].mxu0
    %v500 = vadd.f32 %v337, %v499
    %v501 = vpop.f32.mrb[0].mxu0
    %502 = vmatprep.mubr.f32.mxu0 0.0
    %503 = vmatmul.mubr.f32.gmra.mrb[0].mxu0 %v371
    %v504 = vpop.f32.mrb[0].mxu0
    %v505 = vadd.f32 %v337, %v504
    %v506 = vpop.f32.mrb[0].mxu0
    %507 = vmatprep.mubr.f32.mxu0 0.0
    %508 = vmatmul.mubr.f32.gmra.mrb[0].mxu0 %v374
    %v509 = vpop.f32.mrb[0].mxu0
    %v510 = vadd.f32 %v337, %v509
    %v511 = vpop.f32.mrb[0].mxu0
    %512 = vmatprep.mubr.f32.mxu0 0.0
    %513 = vmatmul.mubr.f32.gmra.mrb[0].mxu0 %v377
    %v514 = vpop.f32.mrb[0].mxu0
    %v515 = vadd.f32 %v337, %v514
    %v516 = vpop.f32.mrb[0].mxu0
    %517 = vmatprep.mubr.f32.mxu0 0.0
    %518 = vmatmul.mubr.f32.gmra.mrb[0].mxu0 %v380
    %v519 = vpop.f32.mrb[0].mxu0
    %v520 = vadd.f32 %v337, %v519
    %v521 = vpop.f32.mrb[0].mxu0
    %522 = vmatprep.mubr.f32.mxu0 0.0
    %523 = vmatmul.mubr.f32.gmra.mrb[0].mxu0 %v383
    %v524 = vpop.f32.mrb[0].mxu0
    %v525 = vadd.f32 %v337, %v524
    %v526 = vpop.f32.mrb[0].mxu0
    %527 = vmatprep.mubr.f32.mxu0 0.0
    %528 = vmatmul.mubr.f32.gmra.mrb[0].mxu0 %v386
    %v529 = vpop.f32.mrb[0].mxu0
    %v530 = vadd.f32 %v337, %v529
    %v531 = vpop.f32.mrb[0].mxu0
    %532 = vdwg.mxu0
    %v533 = vadd.f32 %v455, %v460
    %v534 = vadd.f32 %v533, %v465
    %v535 = vadd.f32 %v534, %v470
    %v536 = vrot.slane %v535, 4
    %v537 = vadd.f32 %v535, %v536
    %v538 = vrot.slane %v537, 2
    %v539 = vadd.f32 %v537, %v538
    %v540 = vrot.slane %v539, 1
    %v541 = vadd.f32 %v539, %v540
    %v542 = vadd.f32 %v475, %v480
    %v543 = vadd.f32 %v542, %v485
    %v544 = vadd.f32 %v543, %v490
    %v545 = vrot.slane %v544, 4
    %v546 = vadd.f32 %v544, %v545
    %v547 = vrot.slane %v546, 2
    %v548 = vadd.f32 %v546, %v547
    %v549 = vrot.slane %v548, 1
    %v550 = vadd.f32 %v548, %v549
    %v551 = vadd.f32 %v495, %v500
    %v552 = vadd.f32 %v551, %v505
    %v553 = vadd.f32 %v552, %v510
    %v554 = vrot.slane %v553, 4
    %v555 = vadd.f32 %v553, %v554
    %v556 = vrot.slane %v555, 2
    %v557 = vadd.f32 %v555, %v556
    %v558 = vrot.slane %v557, 1
    %v559 = vadd.f32 %v557, %v558
    %v560 = vadd.f32 %v515, %v520
    %v561 = vadd.f32 %v560, %v525
    %v562 = vadd.f32 %v561, %v530
    %v563 = vrot.slane %v562, 4
    %v564 = vadd.f32 %v562, %v563
    %v565 = vrot.slane %v564, 2
    %v566 = vadd.f32 %v564, %v565
    %v567 = vrot.slane %v566, 1
    %v568 = vadd.f32 %v566, %v567
    %v569 = vmul.f32 %v455, %v455
    %v570 = vmul.f32 %v460, %v460
    %v571 = vmul.f32 %v465, %v465
    %v572 = vmul.f32 %v470, %v470
    %v573 = vmul.f32 %v475, %v475
    %v574 = vmul.f32 %v480, %v480
    %v575 = vmul.f32 %v485, %v485
    %v576 = vmul.f32 %v490, %v490
    %v577 = vmul.f32 %v495, %v495
    %v578 = vmul.f32 %v500, %v500
    %v579 = vmul.f32 %v505, %v505
    %v580 = vmul.f32 %v510, %v510
    %v581 = vmul.f32 %v515, %v515
    %v582 = vmul.f32 %v520, %v520
    %v583 = vmul.f32 %v525, %v525
    %v584 = vmul.f32 %v530, %v530
    %v585 = vadd.f32 %v569, %v570
    %v586 = vadd.f32 %v585, %v571
    %v587 = vadd.f32 %v586, %v572
    %v588 = vrot.slane %v587, 4
    %v589 = vadd.f32 %v587, %v588
    %v590 = vrot.slane %v589, 2
    %v591 = vadd.f32 %v589, %v590
    %v592 = vrot.slane %v591, 1
    %v593 = vadd.f32 %v591, %v592
    %v594 = vadd.f32 %v573, %v574
    %v595 = vadd.f32 %v594, %v575
    %v596 = vadd.f32 %v595, %v576
    %v597 = vrot.slane %v596, 4
    %v598 = vadd.f32 %v596, %v597
    %v599 = vrot.slane %v598, 2
    %v600 = vadd.f32 %v598, %v599
    %v601 = vrot.slane %v600, 1
    %v602 = vadd.f32 %v600, %v601
    %v603 = vadd.f32 %v577, %v578
    %v604 = vadd.f32 %v603, %v579
    %v605 = vadd.f32 %v604, %v580
    %v606 = vrot.slane %v605, 4
    %v607 = vadd.f32 %v605, %v606
    %v608 = vrot.slane %v607, 2
    %v609 = vadd.f32 %v607, %v608
    %v610 = vrot.slane %v609, 1
    %v611 = vadd.f32 %v609, %v610
    %v612 = vadd.f32 %v581, %v582
    %v613 = vadd.f32 %v612, %v583
    %v614 = vadd.f32 %v613, %v584
    %v615 = vrot.slane %v614, 4
    %v616 = vadd.f32 %v614, %v615
    %v617 = vrot.slane %v616, 2
    %v618 = vadd.f32 %v616, %v617
    %v619 = vrot.slane %v618, 1
    %v620 = vadd.f32 %v618, %v619
    %vm625 = vcmask 1041409
    %v626 = vsel %vm625, %v550, %v541
    %vm627 = vcmask 1042434
    %v628 = vsel %vm627, %v559, %v626
    %vm629 = vcmask 1043459
    %v630 = vsel %vm629, %v568, %v628
    %vm636 = vcmask 1045509
    %v637 = vsel %vm636, %v602, %v593
    %vm638 = vcmask 1046534
    %v639 = vsel %vm638, %v611, %v637
    %vm640 = vcmask 1047559
    %v641 = vsel %vm640, %v620, %v639
    %vm643 = vcmask 1043456
    %v644 = vsel %vm643, %v630, %v641
    %v645 = vld [vmem:[%s15] sm:$0xff]
    %v646 = vld [vmem:[%s15 + $0x8] sm:$0xff]
    %v647 = vld [vmem:[%s15 + $0x10] sm:$0xff]
    %v648 = vld [vmem:[%s15 + $0x18] sm:$0xff]
    %v649 = vld [vmem:[%s15 + $0x20] sm:$0xff]
    %v650 = vld [vmem:[%s15 + $0x28] sm:$0xff]
    %v651 = vld [vmem:[%s15 + $0x30] sm:$0xff]
    %v652 = vld [vmem:[%s15 + $0x38] sm:$0xff]
    %v653 = vld [vmem:[%s15 + $0x40] sm:$0xff]
    %v654 = vld [vmem:[%s15 + $0x48] sm:$0xff]
    %v655 = vld [vmem:[%s15 + $0x50] sm:$0xff]
    %v656 = vld [vmem:[%s15 + $0x58] sm:$0xff]
    %v657 = vld [vmem:[%s15 + $0x60] sm:$0xff]
    %v658 = vld [vmem:[%s15 + $0x68] sm:$0xff]
    %v659 = vld [vmem:[%s15 + $0x70] sm:$0xff]
    %v660 = vld [vmem:[%s15 + $0x78] sm:$0xff]
    %661 = vmatprep.subr.mxu0 0.0
    %662 = vmatpush1.msra.mxu0 %v645
    %663 = vmatprep.subr.mxu0 0.0
    %664 = vmatpush1.msra.mxu0 %v646
    %665 = vmatprep.subr.mxu0 0.0
    %666 = vmatpush1.msra.mxu0 %v647
    %667 = vmatprep.subr.mxu0 0.0
    %668 = vmatpush1.msra.mxu0 %v648
    %669 = vmatprep.subr.mxu0 0.0
    %670 = vmatpush1.msra.mxu0 %v649
    %671 = vmatprep.subr.mxu0 0.0
    %672 = vmatpush1.msra.mxu0 %v650
    %673 = vmatprep.subr.mxu0 0.0
    %674 = vmatpush1.msra.mxu0 %v651
    %675 = vmatprep.subr.mxu0 0.0
    %676 = vmatpush1.msra.mxu0 %v652
    %677 = vmatprep.subr.mxu0 0.0
    %678 = vmatpush1.msra.mxu0 %v653
    %679 = vmatprep.subr.mxu0 0.0
    %680 = vmatpush1.msra.mxu0 %v654
    %681 = vmatprep.subr.mxu0 0.0
    %682 = vmatpush1.msra.mxu0 %v655
    %683 = vmatprep.subr.mxu0 0.0
    %684 = vmatpush1.msra.mxu0 %v656
    %685 = vmatprep.subr.mxu0 0.0
    %686 = vmatpush1.msra.mxu0 %v657
    %687 = vmatprep.subr.mxu0 0.0
    %688 = vmatpush1.msra.mxu0 %v658
    %689 = vmatprep.subr.mxu0 0.0
    %690 = vmatpush1.msra.mxu0 %v659
    %691 = vmatprep.subr.mxu0 0.0
    %692 = vmatpush1.msra.mxu0 %v660
    %693 = vmatprep.subr.mxu0 0.0
    %694 = vmatpush1.msra.mxu0 0.0
    %695 = vmatprep.subr.mxu0 0.0
    %696 = vmatpush1.msra.mxu0 0.0
    %697 = vmatprep.subr.mxu0 0.0
    %698 = vmatpush1.msra.mxu0 0.0
    %699 = vmatprep.subr.mxu0 0.0
    %700 = vmatpush1.msra.mxu0 0.0
    %701 = vmatprep.subr.mxu0 0.0
    %702 = vmatpush1.msra.mxu0 0.0
    %703 = vmatprep.subr.mxu0 0.0
    %704 = vmatpush1.msra.mxu0 0.0
    %705 = vmatprep.subr.mxu0 0.0
    %706 = vmatpush1.msra.mxu0 0.0
    %707 = vmatprep.subr.mxu0 0.0
    %708 = vmatpush1.msra.mxu0 0.0
    %709 = vmatprep.subr.mxu0 0.0
    %710 = vmatpush1.msra.mxu0 0.0
    %711 = vmatprep.subr.mxu0 0.0
    %712 = vmatpush1.msra.mxu0 0.0
    %713 = vmatprep.subr.mxu0 0.0
    %714 = vmatpush1.msra.mxu0 0.0
    %715 = vmatprep.subr.mxu0 0.0
    %716 = vmatpush1.msra.mxu0 0.0
    %717 = vmatprep.subr.mxu0 0.0
    %718 = vmatpush1.msra.mxu0 0.0
    %719 = vmatprep.subr.mxu0 0.0
    %720 = vmatpush1.msra.mxu0 0.0
    %721 = vmatprep.subr.mxu0 0.0
    %722 = vmatpush1.msra.mxu0 0.0
    %723 = vmatprep.subr.mxu0 0.0
    %724 = vmatpush1.msra.mxu0 0.0
    %725 = vmatprep.mubr.f32.mxu0 0.0
    %726 = vmatmul.mubr.f32.gmra.mrb[0].mxu0 %v644
    %v727 = vpop.f32.mrb[0].mxu0
    %v728 = vadd.f32 0.0, %v727
    %v729 = vpop.f32.mrb[0].mxu0
    %730 = vdwg.mxu0
    %v731 = vmul.f32 %v728, 0.001953125
    %v732 = vmul.f32 %v731, %v731
    %v734 = vrot.slane %v732, 4
    %v736 = vsub.f32 %v731, %v734
    %v737 = vadd.f32 %v736, 1e-05
    %v738 = vrsqrt.pop %v737
    %v739 = vsel %vm643, %v731, %v738
    %v740 = vld [vmem:[%s16] sm:$0xff]
    %vm741 = vcmask 64512
    %v743 = vsel %vm741, %v739, 0
    %745 = vmatprep.subr.mxu0 0.0
    %746 = vmatpush1.msra.mxu0 %v740
    %747 = vmatprep.subr.mxu0 0.0
    %748 = vmatpush1.msra.mxu0 0.0
    %749 = vmatprep.subr.mxu0 0.0
    %750 = vmatpush1.msra.mxu0 0.0
    %751 = vmatprep.subr.mxu0 0.0
    %752 = vmatpush1.msra.mxu0 0.0
    %753 = vmatprep.subr.mxu0 0.0
    %754 = vmatpush1.msra.mxu0 0.0
    %755 = vmatprep.subr.mxu0 0.0
    %756 = vmatpush1.msra.mxu0 0.0
    %757 = vmatprep.subr.mxu0 0.0
    %758 = vmatpush1.msra.mxu0 0.0
    %759 = vmatprep.subr.mxu0 0.0
    %760 = vmatpush1.msra.mxu0 0.0
    %761 = vmatprep.subr.mxu0 0.0
    %762 = vmatpush1.msra.mxu0 0.0
    %763 = vmatprep.subr.mxu0 0.0
    %764 = vmatpush1.msra.mxu0 0.0
    %765 = vmatprep.subr.mxu0 0.0
    %766 = vmatpush1.msra.mxu0 0.0
    %767 = vmatprep.subr.mxu0 0.0
    %768 = vmatpush1.msra.mxu0 0.0
    %769 = vmatprep.subr.mxu0 0.0
    %770 = vmatpush1.msra.mxu0 0.0
    %771 = vmatprep.subr.mxu0 0.0
    %772 = vmatpush1.msra.mxu0 0.0
    %773 = vmatprep.subr.mxu0 0.0
    %774 = vmatpush1.msra.mxu0 0.0
    %775 = vmatprep.subr.mxu0 0.0
    %776 = vmatpush1.msra.mxu0 0.0
    %777 = vmatprep.subr.mxu0 0.0
    %778 = vmatpush1.msra.mxu0 0.0
    %779 = vmatprep.subr.mxu0 0.0
    %780 = vmatpush1.msra.mxu0 0.0
    %781 = vmatprep.subr.mxu0 0.0
    %782 = vmatpush1.msra.mxu0 0.0
    %783 = vmatprep.subr.mxu0 0.0
    %784 = vmatpush1.msra.mxu0 0.0
    %785 = vmatprep.subr.mxu0 0.0
    %786 = vmatpush1.msra.mxu0 0.0
    %787 = vmatprep.subr.mxu0 0.0
    %788 = vmatpush1.msra.mxu0 0.0
    %789 = vmatprep.subr.mxu0 0.0
    %790 = vmatpush1.msra.mxu0 0.0
    %791 = vmatprep.subr.mxu0 0.0
    %792 = vmatpush1.msra.mxu0 0.0
    %793 = vmatprep.subr.mxu0 0.0
    %794 = vmatpush1.msra.mxu0 0.0
    %795 = vmatprep.subr.mxu0 0.0
    %796 = vmatpush1.msra.mxu0 0.0
    %797 = vmatprep.subr.mxu0 0.0
    %798 = vmatpush1.msra.mxu0 0.0
    %799 = vmatprep.subr.mxu0 0.0
    %800 = vmatpush1.msra.mxu0 0.0
    %801 = vmatprep.subr.mxu0 0.0
    %802 = vmatpush1.msra.mxu0 0.0
    %803 = vmatprep.subr.mxu0 0.0
    %804 = vmatpush1.msra.mxu0 0.0
    %805 = vmatprep.subr.mxu0 0.0
    %806 = vmatpush1.msra.mxu0 0.0
    %807 = vmatprep.subr.mxu0 0.0
    %808 = vmatpush1.msra.mxu0 0.0
    %809 = vmatprep.mubr.f32.mxu0 0.0
    %810 = vmatmul.mubr.f32.gmra.mrb[0].mxu0 %v743
    %v811 = vpop.f32.mrb[0].mxu0
    %v812 = vadd.f32 0.0, %v811
    %v813 = vpop.f32.mrb[0].mxu0
    %814 = vdwg.mxu0
    %v815 = vld [vmem:[%s5] sm:$0x1]
    %v817 = vlaneseq
    %v818 = vshrl.u32 %v817, 7
    %v819 = vsub.s32 0, %v818
    %v820 = vrot.slane %v815, %v819
    %v822 = vmul.f32 %v812, %v820
    %v823 = vld [vmem:[%s6] sm:$0x1]
    %v825 = vrot.slane %v822, 4
    %v827 = vmul.f32 %v812, %v825
    %v829 = vlaneseq
    %v830 = vshrl.u32 %v829, 7
    %v831 = vsub.s32 0, %v830
    %v832 = vrot.slane %v823, %v831
    %v834 = vsub.f32 %v832, %v827
    %v835 = vcombine.high %v822, %v822
    %v837 = vunpack.c.l.s4 1966171168
    %v838 = vunpack.c.0.s8 %v837
    %v839 = vlaneseq
    %v840 = vshrl.u32 %v839, 7
    %v841 = vsub.s32 %v838, %v840
    %v842 = vrot.slane %v835, %v841
    %v843 = vcombine.high %v842, %v842
    %v845 = vunpack.c.l.s4 1966171168
    %v846 = vunpack.c.0.s8 %v845
    %v847 = vlaneseq
    %v848 = vshrl.u32 %v847, 7
    %v849 = vsub.s32 %v846, %v848
    %v850 = vrot.slane %v842, %v849
    %v852 = vunpack.c.l.s4 1966171168
    %v853 = vunpack.c.0.s8 %v852
    %v854 = vlaneseq
    %v855 = vshrl.u32 %v854, 7
    %v856 = vsub.s32 %v853, %v855
    %v857 = vrot.slane %v843, %v856
    %v858 = vcombine.high %v850, %v850
    %v859 = vcombine.high %v857, %v857
    %v860 = vlaneseq
    %v861 = vshrl.u32 %v860, 7
    %v862 = vsub.s32 0, %v861
    %v863 = vrot.slane %v850, %v862
    %v864 = vlaneseq
    %v865 = vshrl.u32 %v864, 7
    %v866 = vsub.s32 0, %v865
    %v867 = vrot.slane %v857, %v866
    %v868 = vlaneseq
    %v869 = vshrl.u32 %v868, 7
    %v870 = vsub.s32 0, %v869
    %v871 = vrot.slane %v858, %v870
    %v872 = vlaneseq
    %v873 = vshrl.u32 %v872, 7
    %v874 = vsub.s32 0, %v873
    %v875 = vrot.slane %v859, %v874
    %v880 = vmul.f32 %v455, %v863
    %v881 = vmul.f32 %v460, %v863
    %v882 = vmul.f32 %v465, %v863
    %v883 = vmul.f32 %v470, %v863
    %v884 = vmul.f32 %v475, %v867
    %v885 = vmul.f32 %v480, %v867
    %v886 = vmul.f32 %v485, %v867
    %v887 = vmul.f32 %v490, %v867
    %v888 = vmul.f32 %v495, %v871
    %v889 = vmul.f32 %v500, %v871
    %v890 = vmul.f32 %v505, %v871
    %v891 = vmul.f32 %v510, %v871
    %v892 = vmul.f32 %v515, %v875
    %v893 = vmul.f32 %v520, %v875
    %v894 = vmul.f32 %v525, %v875
    %v895 = vmul.f32 %v530, %v875
    %v898 = vunpack.c.l.s4 1966171168
    %v899 = vunpack.c.0.s8 %v898
    %v900 = vlaneseq
    %v901 = vshrl.u32 %v900, 7
    %v902 = vsub.s32 %v899, %v901
    %v903 = vrot.slane %v834, %v902
    %v904 = vcombine.high %v903, %v903
    %v906 = vunpack.c.l.s4 1966171168
    %v907 = vunpack.c.0.s8 %v906
    %v908 = vlaneseq
    %v909 = vshrl.u32 %v908, 7
    %v910 = vsub.s32 %v907, %v909
    %v911 = vrot.slane %v903, %v910
    %v913 = vunpack.c.l.s4 1966171168
    %v914 = vunpack.c.0.s8 %v913
    %v915 = vlaneseq
    %v916 = vshrl.u32 %v915, 7
    %v917 = vsub.s32 %v914, %v916
    %v918 = vrot.slane %v904, %v917
    %v919 = vcombine.high %v911, %v911
    %v920 = vcombine.high %v918, %v918
    %v921 = vlaneseq
    %v922 = vshrl.u32 %v921, 7
    %v923 = vsub.s32 0, %v922
    %v924 = vrot.slane %v911, %v923
    %v925 = vlaneseq
    %v926 = vshrl.u32 %v925, 7
    %v927 = vsub.s32 0, %v926
    %v928 = vrot.slane %v918, %v927
    %v929 = vlaneseq
    %v930 = vshrl.u32 %v929, 7
    %v931 = vsub.s32 0, %v930
    %v932 = vrot.slane %v919, %v931
    %v933 = vlaneseq
    %v934 = vshrl.u32 %v933, 7
    %v935 = vsub.s32 0, %v934
    %v936 = vrot.slane %v920, %v935
    %v941 = vadd.f32 %v880, %v924
    %v942 = vadd.f32 %v881, %v924
    %v943 = vadd.f32 %v882, %v924
    %v944 = vadd.f32 %v883, %v924
    %v945 = vadd.f32 %v884, %v928
    %v946 = vadd.f32 %v885, %v928
    %v947 = vadd.f32 %v886, %v928
    %v948 = vadd.f32 %v887, %v928
    %v949 = vadd.f32 %v888, %v932
    %v950 = vadd.f32 %v889, %v932
    %v951 = vadd.f32 %v890, %v932
    %v952 = vadd.f32 %v891, %v932
    %v953 = vadd.f32 %v892, %v936
    %v954 = vadd.f32 %v893, %v936
    %v955 = vadd.f32 %v894, %v936
    %v956 = vadd.f32 %v895, %v936
    %v957 = vand.u32 2147483647, %v941
    %v958 = vand.u32 2147483647, %v942
    %v959 = vand.u32 2147483647, %v943
    %v960 = vand.u32 2147483647, %v944
    %v961 = vand.u32 2147483647, %v945
    %v962 = vand.u32 2147483647, %v946
    %v963 = vand.u32 2147483647, %v947
    %v964 = vand.u32 2147483647, %v948
    %v965 = vand.u32 2147483647, %v949
    %v966 = vand.u32 2147483647, %v950
    %v967 = vand.u32 2147483647, %v951
    %v968 = vand.u32 2147483647, %v952
    %v969 = vand.u32 2147483647, %v953
    %v970 = vand.u32 2147483647, %v954
    %v971 = vand.u32 2147483647, %v955
    %v972 = vand.u32 2147483647, %v956
    %v973 = vsub.f32 0.0, %v957
    %v974 = vsub.f32 0.0, %v958
    %v975 = vsub.f32 0.0, %v959
    %v976 = vsub.f32 0.0, %v960
    %v977 = vsub.f32 0.0, %v961
    %v978 = vsub.f32 0.0, %v962
    %v979 = vsub.f32 0.0, %v963
    %v980 = vsub.f32 0.0, %v964
    %v981 = vsub.f32 0.0, %v965
    %v982 = vsub.f32 0.0, %v966
    %v983 = vsub.f32 0.0, %v967
    %v984 = vsub.f32 0.0, %v968
    %v985 = vsub.f32 0.0, %v969
    %v986 = vsub.f32 0.0, %v970
    %v987 = vsub.f32 0.0, %v971
    %v988 = vsub.f32 0.0, %v972
    %v989 = vmul.f32 %v973, 1.442695
    %v990 = vpow.pop %v989
    %v991 = vmul.f32 %v974, 1.442695
    %v992 = vpow.pop %v991
    %v993 = vmul.f32 %v975, 1.442695
    %v994 = vpow.pop %v993
    %v995 = vmul.f32 %v976, 1.442695
    %v996 = vpow.pop %v995
    %v997 = vmul.f32 %v977, 1.442695
    %v998 = vpow.pop %v997
    %v999 = vmul.f32 %v978, 1.442695
    %v1000 = vpow.pop %v999
    %v1001 = vmul.f32 %v979, 1.442695
    %v1002 = vpow.pop %v1001
    %v1003 = vmul.f32 %v980, 1.442695
    %v1004 = vpow.pop %v1003
    %v1005 = vmul.f32 %v981, 1.442695
    %v1006 = vpow.pop %v1005
    %v1007 = vmul.f32 %v982, 1.442695
    %v1008 = vpow.pop %v1007
    %v1009 = vmul.f32 %v983, 1.442695
    %v1010 = vpow.pop %v1009
    %v1011 = vmul.f32 %v984, 1.442695
    %v1012 = vpow.pop %v1011
    %v1013 = vmul.f32 %v985, 1.442695
    %v1014 = vpow.pop %v1013
    %v1015 = vmul.f32 %v986, 1.442695
    %v1016 = vpow.pop %v1015
    %v1017 = vmul.f32 %v987, 1.442695
    %v1018 = vpow.pop %v1017
    %v1019 = vmul.f32 %v988, 1.442695
    %v1020 = vpow.pop %v1019
    %vm1021 = vcmp.ge.f32.partialorder %v941, 0.0
    %vm1022 = vcmp.ge.f32.partialorder %v942, 0.0
    %vm1023 = vcmp.ge.f32.partialorder %v943, 0.0
    %vm1024 = vcmp.ge.f32.partialorder %v944, 0.0
    %vm1025 = vcmp.ge.f32.partialorder %v945, 0.0
    %vm1026 = vcmp.ge.f32.partialorder %v946, 0.0
    %vm1027 = vcmp.ge.f32.partialorder %v947, 0.0
    %vm1028 = vcmp.ge.f32.partialorder %v948, 0.0
    %vm1029 = vcmp.ge.f32.partialorder %v949, 0.0
    %vm1030 = vcmp.ge.f32.partialorder %v950, 0.0
    %vm1031 = vcmp.ge.f32.partialorder %v951, 0.0
    %vm1032 = vcmp.ge.f32.partialorder %v952, 0.0
    %vm1033 = vcmp.ge.f32.partialorder %v953, 0.0
    %vm1034 = vcmp.ge.f32.partialorder %v954, 0.0
    %vm1035 = vcmp.ge.f32.partialorder %v955, 0.0
    %vm1036 = vcmp.ge.f32.partialorder %v956, 0.0
    %v1037 = vmul.f32 %v990, 2.0
    %v1038 = vmul.f32 %v992, 2.0
    %v1039 = vmul.f32 %v994, 2.0
    %v1040 = vmul.f32 %v996, 2.0
    %v1041 = vmul.f32 %v998, 2.0
    %v1042 = vmul.f32 %v1000, 2.0
    %v1043 = vmul.f32 %v1002, 2.0
    %v1044 = vmul.f32 %v1004, 2.0
    %v1045 = vmul.f32 %v1006, 2.0
    %v1046 = vmul.f32 %v1008, 2.0
    %v1047 = vmul.f32 %v1010, 2.0
    %v1048 = vmul.f32 %v1012, 2.0
    %v1049 = vmul.f32 %v1014, 2.0
    %v1050 = vmul.f32 %v1016, 2.0
    %v1051 = vmul.f32 %v1018, 2.0
    %v1052 = vmul.f32 %v1020, 2.0
    %v1053 = vadd.f32 %v1037, 1.0
    %v1054 = vadd.f32 %v1038, 1.0
    %v1055 = vadd.f32 %v1039, 1.0
    %v1056 = vadd.f32 %v1040, 1.0
    %v1057 = vadd.f32 %v1041, 1.0
    %v1058 = vadd.f32 %v1042, 1.0
    %v1059 = vadd.f32 %v1043, 1.0
    %v1060 = vadd.f32 %v1044, 1.0
    %v1061 = vadd.f32 %v1045, 1.0
    %v1062 = vadd.f32 %v1046, 1.0
    %v1063 = vadd.f32 %v1047, 1.0
    %v1064 = vadd.f32 %v1048, 1.0
    %v1065 = vadd.f32 %v1049, 1.0
    %v1066 = vadd.f32 %v1050, 1.0
    %v1067 = vadd.f32 %v1051, 1.0
    %v1068 = vadd.f32 %v1052, 1.0
    %v1069 = vadd.f32 %v990, 2.0
    %v1070 = vadd.f32 %v992, 2.0
    %v1071 = vadd.f32 %v994, 2.0
    %v1072 = vadd.f32 %v996, 2.0
    %v1073 = vadd.f32 %v998, 2.0
    %v1074 = vadd.f32 %v1000, 2.0
    %v1075 = vadd.f32 %v1002, 2.0
    %v1076 = vadd.f32 %v1004, 2.0
    %v1077 = vadd.f32 %v1006, 2.0
    %v1078 = vadd.f32 %v1008, 2.0
    %v1079 = vadd.f32 %v1010, 2.0
    %v1080 = vadd.f32 %v1012, 2.0
    %v1081 = vadd.f32 %v1014, 2.0
    %v1082 = vadd.f32 %v1016, 2.0
    %v1083 = vadd.f32 %v1018, 2.0
    %v1084 = vadd.f32 %v1020, 2.0
    %v1085 = vmul.f32 %v990, %v1069
    %v1086 = vmul.f32 %v992, %v1070
    %v1087 = vmul.f32 %v994, %v1071
    %v1088 = vmul.f32 %v996, %v1072
    %v1089 = vmul.f32 %v998, %v1073
    %v1090 = vmul.f32 %v1000, %v1074
    %v1091 = vmul.f32 %v1002, %v1075
    %v1092 = vmul.f32 %v1004, %v1076
    %v1093 = vmul.f32 %v1006, %v1077
    %v1094 = vmul.f32 %v1008, %v1078
    %v1095 = vmul.f32 %v1010, %v1079
    %v1096 = vmul.f32 %v1012, %v1080
    %v1097 = vmul.f32 %v1014, %v1081
    %v1098 = vmul.f32 %v1016, %v1082
    %v1099 = vmul.f32 %v1018, %v1083
    %v1100 = vmul.f32 %v1020, %v1084
    %v1101 = vsel %vm1021, %v1053, %v1085
    %v1102 = vsel %vm1022, %v1054, %v1086
    %v1103 = vsel %vm1023, %v1055, %v1087
    %v1104 = vsel %vm1024, %v1056, %v1088
    %v1105 = vsel %vm1025, %v1057, %v1089
    %v1106 = vsel %vm1026, %v1058, %v1090
    %v1107 = vsel %vm1027, %v1059, %v1091
    %v1108 = vsel %vm1028, %v1060, %v1092
    %v1109 = vsel %vm1029, %v1061, %v1093
    %v1110 = vsel %vm1030, %v1062, %v1094
    %v1111 = vsel %vm1031, %v1063, %v1095
    %v1112 = vsel %vm1032, %v1064, %v1096
    %v1113 = vsel %vm1033, %v1065, %v1097
    %v1114 = vsel %vm1034, %v1066, %v1098
    %v1115 = vsel %vm1035, %v1067, %v1099
    %v1116 = vsel %vm1036, %v1068, %v1100
    %v1117 = vmul.f32 %v1037, %v990
    %v1118 = vmul.f32 %v1038, %v992
    %v1119 = vmul.f32 %v1039, %v994
    %v1120 = vmul.f32 %v1040, %v996
    %v1121 = vmul.f32 %v1041, %v998
    %v1122 = vmul.f32 %v1042, %v1000
    %v1123 = vmul.f32 %v1043, %v1002
    %v1124 = vmul.f32 %v1044, %v1004
    %v1125 = vmul.f32 %v1045, %v1006
    %v1126 = vmul.f32 %v1046, %v1008
    %v1127 = vmul.f32 %v1047, %v1010
    %v1128 = vmul.f32 %v1048, %v1012
    %v1129 = vmul.f32 %v1049, %v1014
    %v1130 = vmul.f32 %v1050, %v1016
    %v1131 = vmul.f32 %v1051, %v1018
    %v1132 = vmul.f32 %v1052, %v1020
    %v1133 = vsel %vm1021, %v1117, 2.0
    %v1134 = vsel %vm1022, %v1118, 2.0
    %v1135 = vsel %vm1023, %v1119, 2.0
    %v1136 = vsel %vm1024, %v1120, 2.0
    %v1137 = vsel %vm1025, %v1121, 2.0
    %v1138 = vsel %vm1026, %v1122, 2.0
    %v1139 = vsel %vm1027, %v1123, 2.0
    %v1140 = vsel %vm1028, %v1124, 2.0
    %v1141 = vsel %vm1029, %v1125, 2.0
    %v1142 = vsel %vm1030, %v1126, 2.0
    %v1143 = vsel %vm1031, %v1127, 2.0
    %v1144 = vsel %vm1032, %v1128, 2.0
    %v1145 = vsel %vm1033, %v1129, 2.0
    %v1146 = vsel %vm1034, %v1130, 2.0
    %v1147 = vsel %vm1035, %v1131, 2.0
    %v1148 = vsel %vm1036, %v1132, 2.0
    %v1149 = vadd.f32 %v1101, %v1133
    %v1150 = vadd.f32 %v1102, %v1134
    %v1151 = vadd.f32 %v1103, %v1135
    %v1152 = vadd.f32 %v1104, %v1136
    %v1153 = vadd.f32 %v1105, %v1137
    %v1154 = vadd.f32 %v1106, %v1138
    %v1155 = vadd.f32 %v1107, %v1139
    %v1156 = vadd.f32 %v1108, %v1140
    %v1157 = vadd.f32 %v1109, %v1141
    %v1158 = vadd.f32 %v1110, %v1142
    %v1159 = vadd.f32 %v1111, %v1143
    %v1160 = vadd.f32 %v1112, %v1144
    %v1161 = vadd.f32 %v1113, %v1145
    %v1162 = vadd.f32 %v1114, %v1146
    %v1163 = vadd.f32 %v1115, %v1147
    %v1164 = vadd.f32 %v1116, %v1148
    %v1165 = vmul.f32 %v941, %v1101
    %v1166 = vmul.f32 %v942, %v1102
    %v1167 = vmul.f32 %v943, %v1103
    %v1168 = vmul.f32 %v944, %v1104
    %v1169 = vmul.f32 %v945, %v1105
    %v1170 = vmul.f32 %v946, %v1106
    %v1171 = vmul.f32 %v947, %v1107
    %v1172 = vmul.f32 %v948, %v1108
    %v1173 = vmul.f32 %v949, %v1109
    %v1174 = vmul.f32 %v950, %v1110
    %v1175 = vmul.f32 %v951, %v1111
    %v1176 = vmul.f32 %v952, %v1112
    %v1177 = vmul.f32 %v953, %v1113
    %v1178 = vmul.f32 %v954, %v1114
    %v1179 = vmul.f32 %v955, %v1115
    %v1180 = vmul.f32 %v956, %v1116
    %v1181 = vrcp.pop %v1149
    %v1182 = vmul.f32 %v1165, %v1181
    %v1183 = vrcp.pop %v1150
    %v1184 = vmul.f32 %v1166, %v1183
    %v1185 = vrcp.pop %v1151
    %v1186 = vmul.f32 %v1167, %v1185
    %v1187 = vrcp.pop %v1152
    %v1188 = vmul.f32 %v1168, %v1187
    %v1189 = vrcp.pop %v1153
    %v1190 = vmul.f32 %v1169, %v1189
    %v1191 = vrcp.pop %v1154
    %v1192 = vmul.f32 %v1170, %v1191
    %v1193 = vrcp.pop %v1155
    %v1194 = vmul.f32 %v1171, %v1193
    %v1195 = vrcp.pop %v1156
    %v1196 = vmul.f32 %v1172, %v1195
    %v1197 = vrcp.pop %v1157
    %v1198 = vmul.f32 %v1173, %v1197
    %v1199 = vrcp.pop %v1158
    %v1200 = vmul.f32 %v1174, %v1199
    %v1201 = vrcp.pop %v1159
    %v1202 = vmul.f32 %v1175, %v1201
    %v1203 = vrcp.pop %v1160
    %v1204 = vmul.f32 %v1176, %v1203
    %v1205 = vrcp.pop %v1161
    %v1206 = vmul.f32 %v1177, %v1205
    %v1207 = vrcp.pop %v1162
    %v1208 = vmul.f32 %v1178, %v1207
    %v1209 = vrcp.pop %v1163
    %v1210 = vmul.f32 %v1179, %v1209
    %v1211 = vrcp.pop %v1164
    %v1212 = vmul.f32 %v1180, %v1211
    %v1213 = vld [vmem:[%s2] sm:$0x1]
    %v1214 = vld [vmem:[%s2 + $0x1] sm:$0x1]
    %v1215 = vld [vmem:[%s2 + $0x2] sm:$0x1]
    %v1216 = vld [vmem:[%s2 + $0x3] sm:$0x1]
    %v1217 = vand.u32 2147483647, %v1213
    %v1218 = vand.u32 2147483647, %v1214
    %v1219 = vand.u32 2147483647, %v1215
    %v1220 = vand.u32 2147483647, %v1216
    %v1221 = vsub.f32 0.0, %v1217
    %v1222 = vsub.f32 0.0, %v1218
    %v1223 = vsub.f32 0.0, %v1219
    %v1224 = vsub.f32 0.0, %v1220
    %v1225 = vmul.f32 %v1221, 1.442695
    %v1226 = vpow.pop %v1225
    %v1227 = vmul.f32 %v1222, 1.442695
    %v1228 = vpow.pop %v1227
    %v1229 = vmul.f32 %v1223, 1.442695
    %v1230 = vpow.pop %v1229
    %v1231 = vmul.f32 %v1224, 1.442695
    %v1232 = vpow.pop %v1231
    %vm1233 = vcmp.ge.f32.partialorder %v1213, 0.0
    %vm1234 = vcmp.ge.f32.partialorder %v1214, 0.0
    %vm1235 = vcmp.ge.f32.partialorder %v1215, 0.0
    %vm1236 = vcmp.ge.f32.partialorder %v1216, 0.0
    %v1237 = vmul.f32 %v1226, 2.0
    %v1238 = vmul.f32 %v1228, 2.0
    %v1239 = vmul.f32 %v1230, 2.0
    %v1240 = vmul.f32 %v1232, 2.0
    %v1241 = vadd.f32 %v1237, 1.0
    %v1242 = vadd.f32 %v1238, 1.0
    %v1243 = vadd.f32 %v1239, 1.0
    %v1244 = vadd.f32 %v1240, 1.0
    %v1245 = vadd.f32 %v1226, 2.0
    %v1246 = vadd.f32 %v1228, 2.0
    %v1247 = vadd.f32 %v1230, 2.0
    %v1248 = vadd.f32 %v1232, 2.0
    %v1249 = vmul.f32 %v1226, %v1245
    %v1250 = vmul.f32 %v1228, %v1246
    %v1251 = vmul.f32 %v1230, %v1247
    %v1252 = vmul.f32 %v1232, %v1248
    %v1253 = vsel %vm1233, %v1241, %v1249
    %v1254 = vsel %vm1234, %v1242, %v1250
    %v1255 = vsel %vm1235, %v1243, %v1251
    %v1256 = vsel %vm1236, %v1244, %v1252
    %v1257 = vmul.f32 %v1237, %v1226
    %v1258 = vmul.f32 %v1238, %v1228
    %v1259 = vmul.f32 %v1239, %v1230
    %v1260 = vmul.f32 %v1240, %v1232
    %v1261 = vsel %vm1233, %v1257, 2.0
    %v1262 = vsel %vm1234, %v1258, 2.0
    %v1263 = vsel %vm1235, %v1259, 2.0
    %v1264 = vsel %vm1236, %v1260, 2.0
    %v1265 = vadd.f32 %v1253, %v1261
    %v1266 = vadd.f32 %v1254, %v1262
    %v1267 = vadd.f32 %v1255, %v1263
    %v1268 = vadd.f32 %v1256, %v1264
    %v1269 = vmul.f32 %v1213, %v1253
    %v1270 = vmul.f32 %v1214, %v1254
    %v1271 = vmul.f32 %v1215, %v1255
    %v1272 = vmul.f32 %v1216, %v1256
    %v1273 = vrcp.pop %v1265
    %v1274 = vmul.f32 %v1269, %v1273
    %v1275 = vrcp.pop %v1266
    %v1276 = vmul.f32 %v1270, %v1275
    %v1277 = vrcp.pop %v1267
    %v1278 = vmul.f32 %v1271, %v1277
    %v1279 = vrcp.pop %v1268
    %v1280 = vmul.f32 %v1272, %v1279
    %v1281 = vld [vmem:[%s7] sm:$0xff]
    %v1282 = vld [vmem:[%s7 + $0x8] sm:$0xff]
    %v1283 = vld [vmem:[%s7 + $0x10] sm:$0xff]
    %v1284 = vld [vmem:[%s7 + $0x18] sm:$0xff]
    %v1285 = vld [vmem:[%s8] sm:$0x1]
    %v1287 = vlaneseq
    %v1288 = vshrl.u32 %v1287, 7
    %v1289 = vsub.s32 0, %v1288
    %v1290 = vrot.slane %v1285, %v1289
    %v1296 = vcombine.low %v1274, %v1276
    %v1297 = vcombine.low %v1278, %v1280
    %v1299 = vunpack.c.l.s4 1966171168
    %v1300 = vunpack.c.0.s8 %v1299
    %v1301 = vlaneseq
    %v1302 = vshrl.u32 %v1301, 7
    %v1303 = vsub.s32 %v1300, %v1302
    %v1304 = vrot.slane %v1296, %v1303
    %v1306 = vunpack.c.l.s4 1966171168
    %v1307 = vunpack.c.0.s8 %v1306
    %v1308 = vlaneseq
    %v1309 = vshrl.u32 %v1308, 7
    %v1310 = vsub.s32 %v1307, %v1309
    %v1311 = vrot.slane %v1297, %v1310
    %v1312 = vcombine.low %v1304, %v1311
    %v1314 = vunpack.c.l.s4 1966171168
    %v1315 = vunpack.c.0.s8 %v1314
    %v1316 = vlaneseq
    %v1317 = vshrl.u32 %v1316, 7
    %v1318 = vsub.s32 %v1315, %v1317
    %v1319 = vrot.slane %v1312, %v1318
    %vm1320 = vcmask 261120
    %v1321 = vsel %vm1320, %v1319, 0
    %1323 = vmatprep.subr.mxu0 0.0
    %1324 = vmatpush1.msra.mxu0 %v1281
    %1325 = vmatprep.subr.mxu0 0.0
    %1326 = vmatpush1.msra.mxu0 %v1282
    %1327 = vmatprep.subr.mxu0 0.0
    %1328 = vmatpush1.msra.mxu0 %v1283
    %1329 = vmatprep.subr.mxu0 0.0
    %1330 = vmatpush1.msra.mxu0 %v1284
    %1331 = vmatprep.subr.mxu0 0.0
    %1332 = vmatpush1.msra.mxu0 0.0
    %1333 = vmatprep.subr.mxu0 0.0
    %1334 = vmatpush1.msra.mxu0 0.0
    %1335 = vmatprep.subr.mxu0 0.0
    %1336 = vmatpush1.msra.mxu0 0.0
    %1337 = vmatprep.subr.mxu0 0.0
    %1338 = vmatpush1.msra.mxu0 0.0
    %1339 = vmatprep.subr.mxu0 0.0
    %1340 = vmatpush1.msra.mxu0 0.0
    %1341 = vmatprep.subr.mxu0 0.0
    %1342 = vmatpush1.msra.mxu0 0.0
    %1343 = vmatprep.subr.mxu0 0.0
    %1344 = vmatpush1.msra.mxu0 0.0
    %1345 = vmatprep.subr.mxu0 0.0
    %1346 = vmatpush1.msra.mxu0 0.0
    %1347 = vmatprep.subr.mxu0 0.0
    %1348 = vmatpush1.msra.mxu0 0.0
    %1349 = vmatprep.subr.mxu0 0.0
    %1350 = vmatpush1.msra.mxu0 0.0
    %1351 = vmatprep.subr.mxu0 0.0
    %1352 = vmatpush1.msra.mxu0 0.0
    %1353 = vmatprep.subr.mxu0 0.0
    %1354 = vmatpush1.msra.mxu0 0.0
    %1355 = vmatprep.subr.mxu0 0.0
    %1356 = vmatpush1.msra.mxu0 0.0
    %1357 = vmatprep.subr.mxu0 0.0
    %1358 = vmatpush1.msra.mxu0 0.0
    %1359 = vmatprep.subr.mxu0 0.0
    %1360 = vmatpush1.msra.mxu0 0.0
    %1361 = vmatprep.subr.mxu0 0.0
    %1362 = vmatpush1.msra.mxu0 0.0
    %1363 = vmatprep.subr.mxu0 0.0
    %1364 = vmatpush1.msra.mxu0 0.0
    %1365 = vmatprep.subr.mxu0 0.0
    %1366 = vmatpush1.msra.mxu0 0.0
    %1367 = vmatprep.subr.mxu0 0.0
    %1368 = vmatpush1.msra.mxu0 0.0
    %1369 = vmatprep.subr.mxu0 0.0
    %1370 = vmatpush1.msra.mxu0 0.0
    %1371 = vmatprep.subr.mxu0 0.0
    %1372 = vmatpush1.msra.mxu0 0.0
    %1373 = vmatprep.subr.mxu0 0.0
    %1374 = vmatpush1.msra.mxu0 0.0
    %1375 = vmatprep.subr.mxu0 0.0
    %1376 = vmatpush1.msra.mxu0 0.0
    %1377 = vmatprep.subr.mxu0 0.0
    %1378 = vmatpush1.msra.mxu0 0.0
    %1379 = vmatprep.subr.mxu0 0.0
    %1380 = vmatpush1.msra.mxu0 0.0
    %1381 = vmatprep.subr.mxu0 0.0
    %1382 = vmatpush1.msra.mxu0 0.0
    %1383 = vmatprep.subr.mxu0 0.0
    %1384 = vmatpush1.msra.mxu0 0.0
    %1385 = vmatprep.subr.mxu0 0.0
    %1386 = vmatpush1.msra.mxu0 0.0
    %1387 = vmatprep.mubr.f32.mxu0 0.0
    %1388 = vmatmul.mubr.f32.gmra.mrb[0].mxu0 %v1321
    %v1389 = vpop.f32.mrb[0].mxu0
    %v1390 = vadd.f32 %v1290, %v1389
    %v1391 = vpop.f32.mrb[0].mxu0
    %1392 = vdwg.mxu0
    %v1395 = vunpack.c.l.s4 1966171168
    %v1396 = vunpack.c.0.s8 %v1395
    %v1397 = vlaneseq
    %v1398 = vshrl.u32 %v1397, 7
    %v1399 = vsub.s32 %v1396, %v1398
    %v1400 = vrot.slane %v1390, %v1399
    %v1401 = vcombine.high %v1400, %v1400
    %v1403 = vunpack.c.l.s4 1966171168
    %v1404 = vunpack.c.0.s8 %v1403
    %v1405 = vlaneseq
    %v1406 = vshrl.u32 %v1405, 7
    %v1407 = vsub.s32 %v1404, %v1406
    %v1408 = vrot.slane %v1400, %v1407
    %v1410 = vunpack.c.l.s4 1966171168
    %v1411 = vunpack.c.0.s8 %v1410
    %v1412 = vlaneseq
    %v1413 = vshrl.u32 %v1412, 7
    %v1414 = vsub.s32 %v1411, %v1413
    %v1415 = vrot.slane %v1401, %v1414
    %v1416 = vcombine.high %v1408, %v1408
    %v1417 = vcombine.high %v1415, %v1415
    %v1418 = vlaneseq
    %v1419 = vshrl.u32 %v1418, 7
    %v1420 = vsub.s32 0, %v1419
    %v1421 = vrot.slane %v1408, %v1420
    %v1422 = vlaneseq
    %v1423 = vshrl.u32 %v1422, 7
    %v1424 = vsub.s32 0, %v1423
    %v1425 = vrot.slane %v1415, %v1424
    %v1426 = vlaneseq
    %v1427 = vshrl.u32 %v1426, 7
    %v1428 = vsub.s32 0, %v1427
    %v1429 = vrot.slane %v1416, %v1428
    %v1430 = vlaneseq
    %v1431 = vshrl.u32 %v1430, 7
    %v1432 = vsub.s32 0, %v1431
    %v1433 = vrot.slane %v1417, %v1432
    %v1438 = vadd.f32 %v1182, %v1421
    %v1439 = vadd.f32 %v1184, %v1421
    %v1440 = vadd.f32 %v1186, %v1421
    %v1441 = vadd.f32 %v1188, %v1421
    %v1442 = vadd.f32 %v1190, %v1425
    %v1443 = vadd.f32 %v1192, %v1425
    %v1444 = vadd.f32 %v1194, %v1425
    %v1445 = vadd.f32 %v1196, %v1425
    %v1446 = vadd.f32 %v1198, %v1429
    %v1447 = vadd.f32 %v1200, %v1429
    %v1448 = vadd.f32 %v1202, %v1429
    %v1449 = vadd.f32 %v1204, %v1429
    %v1450 = vadd.f32 %v1206, %v1433
    %v1451 = vadd.f32 %v1208, %v1433
    %v1452 = vadd.f32 %v1210, %v1433
    %v1453 = vadd.f32 %v1212, %v1433
    %v1454 = vlaneseq
    %v1455 = vshrl.u32 %v1454, 7
    %v1456 = vadd.s32 %v1455, 8
    %v1457 = vadd.s32 %v1455, 16
    %v1458 = vadd.s32 %v1455, 24
    %v1459 = vadd.s32 %v1455, 32
    %v1460 = vadd.s32 %v1455, 40
    %v1461 = vadd.s32 %v1455, 48
    %v1462 = vadd.s32 %v1455, 56
    %v1463 = vadd.s32 %v1455, 64
    %v1464 = vadd.s32 %v1455, 72
    %v1465 = vadd.s32 %v1455, 80
    %v1466 = vadd.s32 %v1455, 88
    %v1467 = vadd.s32 %v1455, 96
    %v1468 = vadd.s32 %v1455, 104
    %v1469 = vadd.s32 %v1455, 112
    %v1470 = vadd.s32 %v1455, 120
    %vm1471 = vcmp.lt.s32.totalorder %v1455, 0
    %v1472 = vsub.s32 0, %v1455
    %v1473 = vsel %vm1471, %v1472, %v1455
    %v1474 = vshrl.u32 %v1473, 5
    %v1475 = vand.u32 %v1473, 31
    %v1476 = vsub.s32 0, %v1475
    %v1477 = vsel %vm1471, %v1476, %v1475
    %vm1478 = vcmp.lt.s32.totalorder %v1456, 0
    %v1479 = vsub.s32 0, %v1456
    %v1480 = vsel %vm1478, %v1479, %v1456
    %v1481 = vshrl.u32 %v1480, 5
    %v1482 = vand.u32 %v1480, 31
    %v1483 = vsub.s32 0, %v1482
    %v1484 = vsel %vm1478, %v1483, %v1482
    %vm1485 = vcmp.lt.s32.totalorder %v1457, 0
    %v1486 = vsub.s32 0, %v1457
    %v1487 = vsel %vm1485, %v1486, %v1457
    %v1488 = vshrl.u32 %v1487, 5
    %v1489 = vand.u32 %v1487, 31
    %v1490 = vsub.s32 0, %v1489
    %v1491 = vsel %vm1485, %v1490, %v1489
    %vm1492 = vcmp.lt.s32.totalorder %v1458, 0
    %v1493 = vsub.s32 0, %v1458
    %v1494 = vsel %vm1492, %v1493, %v1458
    %v1495 = vshrl.u32 %v1494, 5
    %v1496 = vand.u32 %v1494, 31
    %v1497 = vsub.s32 0, %v1496
    %v1498 = vsel %vm1492, %v1497, %v1496
    %vm1499 = vcmp.lt.s32.totalorder %v1459, 0
    %v1500 = vsub.s32 0, %v1459
    %v1501 = vsel %vm1499, %v1500, %v1459
    %v1502 = vshrl.u32 %v1501, 5
    %v1503 = vand.u32 %v1501, 31
    %v1504 = vsub.s32 0, %v1503
    %v1505 = vsel %vm1499, %v1504, %v1503
    %vm1506 = vcmp.lt.s32.totalorder %v1460, 0
    %v1507 = vsub.s32 0, %v1460
    %v1508 = vsel %vm1506, %v1507, %v1460
    %v1509 = vshrl.u32 %v1508, 5
    %v1510 = vand.u32 %v1508, 31
    %v1511 = vsub.s32 0, %v1510
    %v1512 = vsel %vm1506, %v1511, %v1510
    %vm1513 = vcmp.lt.s32.totalorder %v1461, 0
    %v1514 = vsub.s32 0, %v1461
    %v1515 = vsel %vm1513, %v1514, %v1461
    %v1516 = vshrl.u32 %v1515, 5
    %v1517 = vand.u32 %v1515, 31
    %v1518 = vsub.s32 0, %v1517
    %v1519 = vsel %vm1513, %v1518, %v1517
    %vm1520 = vcmp.lt.s32.totalorder %v1462, 0
    %v1521 = vsub.s32 0, %v1462
    %v1522 = vsel %vm1520, %v1521, %v1462
    %v1523 = vshrl.u32 %v1522, 5
    %v1524 = vand.u32 %v1522, 31
    %v1525 = vsub.s32 0, %v1524
    %v1526 = vsel %vm1520, %v1525, %v1524
    %vm1527 = vcmp.lt.s32.totalorder %v1463, 0
    %v1528 = vsub.s32 0, %v1463
    %v1529 = vsel %vm1527, %v1528, %v1463
    %v1530 = vshrl.u32 %v1529, 5
    %v1531 = vand.u32 %v1529, 31
    %v1532 = vsub.s32 0, %v1531
    %v1533 = vsel %vm1527, %v1532, %v1531
    %vm1534 = vcmp.lt.s32.totalorder %v1464, 0
    %v1535 = vsub.s32 0, %v1464
    %v1536 = vsel %vm1534, %v1535, %v1464
    %v1537 = vshrl.u32 %v1536, 5
    %v1538 = vand.u32 %v1536, 31
    %v1539 = vsub.s32 0, %v1538
    %v1540 = vsel %vm1534, %v1539, %v1538
    %vm1541 = vcmp.lt.s32.totalorder %v1465, 0
    %v1542 = vsub.s32 0, %v1465
    %v1543 = vsel %vm1541, %v1542, %v1465
    %v1544 = vshrl.u32 %v1543, 5
    %v1545 = vand.u32 %v1543, 31
    %v1546 = vsub.s32 0, %v1545
    %v1547 = vsel %vm1541, %v1546, %v1545
    %vm1548 = vcmp.lt.s32.totalorder %v1466, 0
    %v1549 = vsub.s32 0, %v1466
    %v1550 = vsel %vm1548, %v1549, %v1466
    %v1551 = vshrl.u32 %v1550, 5
    %v1552 = vand.u32 %v1550, 31
    %v1553 = vsub.s32 0, %v1552
    %v1554 = vsel %vm1548, %v1553, %v1552
    %vm1555 = vcmp.lt.s32.totalorder %v1467, 0
    %v1556 = vsub.s32 0, %v1467
    %v1557 = vsel %vm1555, %v1556, %v1467
    %v1558 = vshrl.u32 %v1557, 5
    %v1559 = vand.u32 %v1557, 31
    %v1560 = vsub.s32 0, %v1559
    %v1561 = vsel %vm1555, %v1560, %v1559
    %vm1562 = vcmp.lt.s32.totalorder %v1468, 0
    %v1563 = vsub.s32 0, %v1468
    %v1564 = vsel %vm1562, %v1563, %v1468
    %v1565 = vshrl.u32 %v1564, 5
    %v1566 = vand.u32 %v1564, 31
    %v1567 = vsub.s32 0, %v1566
    %v1568 = vsel %vm1562, %v1567, %v1566
    %vm1569 = vcmp.lt.s32.totalorder %v1469, 0
    %v1570 = vsub.s32 0, %v1469
    %v1571 = vsel %vm1569, %v1570, %v1469
    %v1572 = vshrl.u32 %v1571, 5
    %v1573 = vand.u32 %v1571, 31
    %v1574 = vsub.s32 0, %v1573
    %v1575 = vsel %vm1569, %v1574, %v1573
    %vm1576 = vcmp.lt.s32.totalorder %v1470, 0
    %v1577 = vsub.s32 0, %v1470
    %v1578 = vsel %vm1576, %v1577, %v1470
    %v1579 = vshrl.u32 %v1578, 5
    %v1580 = vand.u32 %v1578, 31
    %v1581 = vsub.s32 0, %v1580
    %v1582 = vsel %vm1576, %v1581, %v1580
    %vm1583 = vcmp.ne.s32.totalorder %v1477, 0
    %vm1584 = vcmp.ne.s32.totalorder %v1484, 0
    %vm1585 = vcmp.ne.s32.totalorder %v1491, 0
    %vm1586 = vcmp.ne.s32.totalorder %v1498, 0
    %vm1587 = vcmp.ne.s32.totalorder %v1505, 0
    %vm1588 = vcmp.ne.s32.totalorder %v1512, 0
    %vm1589 = vcmp.ne.s32.totalorder %v1519, 0
    %vm1590 = vcmp.ne.s32.totalorder %v1526, 0
    %vm1591 = vcmp.ne.s32.totalorder %v1533, 0
    %vm1592 = vcmp.ne.s32.totalorder %v1540, 0
    %vm1593 = vcmp.ne.s32.totalorder %v1547, 0
    %vm1594 = vcmp.ne.s32.totalorder %v1554, 0
    %vm1595 = vcmp.ne.s32.totalorder %v1561, 0
    %vm1596 = vcmp.ne.s32.totalorder %v1568, 0
    %vm1597 = vcmp.ne.s32.totalorder %v1575, 0
    %vm1598 = vcmp.ne.s32.totalorder %v1582, 0
    %vm1599 = vcmp.lt.s32.totalorder %v1477, 0
    %vm1600 = vcmp.lt.s32.totalorder %v1484, 0
    %vm1601 = vcmp.lt.s32.totalorder %v1491, 0
    %vm1602 = vcmp.lt.s32.totalorder %v1498, 0
    %vm1603 = vcmp.lt.s32.totalorder %v1505, 0
    %vm1604 = vcmp.lt.s32.totalorder %v1512, 0
    %vm1605 = vcmp.lt.s32.totalorder %v1519, 0
    %vm1606 = vcmp.lt.s32.totalorder %v1526, 0
    %vm1607 = vcmp.lt.s32.totalorder %v1533, 0
    %vm1608 = vcmp.lt.s32.totalorder %v1540, 0
    %vm1609 = vcmp.lt.s32.totalorder %v1547, 0
    %vm1610 = vcmp.lt.s32.totalorder %v1554, 0
    %vm1611 = vcmp.lt.s32.totalorder %v1561, 0
    %vm1612 = vcmp.lt.s32.totalorder %v1568, 0
    %vm1613 = vcmp.lt.s32.totalorder %v1575, 0
    %vm1614 = vcmp.lt.s32.totalorder %v1582, 0
    %vm1615 = vmand %vm1599, %vm1583
    %vm1616 = vmand %vm1600, %vm1584
    %vm1617 = vmand %vm1601, %vm1585
    %vm1618 = vmand %vm1602, %vm1586
    %vm1619 = vmand %vm1603, %vm1587
    %vm1620 = vmand %vm1604, %vm1588
    %vm1621 = vmand %vm1605, %vm1589
    %vm1622 = vmand %vm1606, %vm1590
    %vm1623 = vmand %vm1607, %vm1591
    %vm1624 = vmand %vm1608, %vm1592
    %vm1625 = vmand %vm1609, %vm1593
    %vm1626 = vmand %vm1610, %vm1594
    %vm1627 = vmand %vm1611, %vm1595
    %vm1628 = vmand %vm1612, %vm1596
    %vm1629 = vmand %vm1613, %vm1597
    %vm1630 = vmand %vm1614, %vm1598
    %v1631 = vadd.s32 %v1477, 32
    %v1632 = vadd.s32 %v1484, 32
    %v1633 = vadd.s32 %v1491, 32
    %v1634 = vadd.s32 %v1498, 32
    %v1635 = vadd.s32 %v1505, 32
    %v1636 = vadd.s32 %v1512, 32
    %v1637 = vadd.s32 %v1519, 32
    %v1638 = vadd.s32 %v1526, 32
    %v1639 = vadd.s32 %v1533, 32
    %v1640 = vadd.s32 %v1540, 32
    %v1641 = vadd.s32 %v1547, 32
    %v1642 = vadd.s32 %v1554, 32
    %v1643 = vadd.s32 %v1561, 32
    %v1644 = vadd.s32 %v1568, 32
    %v1645 = vadd.s32 %v1575, 32
    %v1646 = vadd.s32 %v1582, 32
    %v1647 = vsel %vm1615, %v1631, %v1477
    %v1648 = vsel %vm1616, %v1632, %v1484
    %v1649 = vsel %vm1617, %v1633, %v1491
    %v1650 = vsel %vm1618, %v1634, %v1498
    %v1651 = vsel %vm1619, %v1635, %v1505
    %v1652 = vsel %vm1620, %v1636, %v1512
    %v1653 = vsel %vm1621, %v1637, %v1519
    %v1654 = vsel %vm1622, %v1638, %v1526
    %v1655 = vsel %vm1623, %v1639, %v1533
    %v1656 = vsel %vm1624, %v1640, %v1540
    %v1657 = vsel %vm1625, %v1641, %v1547
    %v1658 = vsel %vm1626, %v1642, %v1554
    %v1659 = vsel %vm1627, %v1643, %v1561
    %v1660 = vsel %vm1628, %v1644, %v1568
    %v1661 = vsel %vm1629, %v1645, %v1575
    %v1662 = vsel %vm1630, %v1646, %v1582
    %v1663 = vld [vmem:[%s10] sm:$0x1]
    %v1665 = vlaneseq
    %v1666 = vshrl.u32 %v1665, 7
    %v1667 = vsub.s32 0, %v1666
    %v1668 = vrot.slane %v1663, %v1667
    %v1670 = vadd.f32 %v1668, 0.0
    %v1671 = vrot.slane %v1438, 6
    %v1672 = vrot.slane %v1439, 6
    %v1673 = vrot.slane %v1440, 6
    %v1674 = vrot.slane %v1441, 6
    %v1675 = vrot.slane %v1442, 6
    %v1676 = vrot.slane %v1443, 6
    %v1677 = vrot.slane %v1444, 6
    %v1678 = vrot.slane %v1445, 6
    %v1679 = vrot.slane %v1446, 6
    %v1680 = vrot.slane %v1447, 6
    %v1681 = vrot.slane %v1448, 6
    %v1682 = vrot.slane %v1449, 6
    %v1683 = vrot.slane %v1450, 6
    %v1684 = vrot.slane %v1451, 6
    %v1685 = vrot.slane %v1452, 6
    %v1686 = vrot.slane %v1453, 6
    %vm1687 = vcmp.lt.s32.totalorder %v1455, 2
    %v1688 = vsel %vm1687, %v1685, %v1686
    %v1689 = vsel %vm1687, %v1684, %v1685
    %v1690 = vsel %vm1687, %v1683, %v1684
    %v1691 = vsel %vm1687, %v1682, %v1683
    %v1692 = vsel %vm1687, %v1681, %v1682
    %v1693 = vsel %vm1687, %v1680, %v1681
    %v1694 = vsel %vm1687, %v1679, %v1680
    %v1695 = vsel %vm1687, %v1678, %v1679
    %v1696 = vsel %vm1687, %v1677, %v1678
    %v1697 = vsel %vm1687, %v1676, %v1677
    %v1698 = vsel %vm1687, %v1675, %v1676
    %v1699 = vsel %vm1687, %v1674, %v1675
    %v1700 = vsel %vm1687, %v1673, %v1674
    %v1701 = vsel %vm1687, %v1672, %v1673
    %v1702 = vsel %vm1687, %v1671, %v1672
    %v1703 = vsel %vm1687, %v1686, %v1671
    %v1704 = vadd.s32 %v1647, 4294967294
    %v1705 = vadd.s32 %v1648, 4294967294
    %v1706 = vadd.s32 %v1649, 4294967294
    %v1707 = vadd.s32 %v1650, 4294967294
    %v1708 = vadd.s32 %v1651, 4294967294
    %v1709 = vadd.s32 %v1652, 4294967294
    %v1710 = vadd.s32 %v1653, 4294967294
    %v1711 = vadd.s32 %v1654, 4294967294
    %v1712 = vadd.s32 %v1655, 4294967294
    %v1713 = vadd.s32 %v1656, 4294967294
    %v1714 = vadd.s32 %v1657, 4294967294
    %v1715 = vadd.s32 %v1658, 4294967294
    %v1716 = vadd.s32 %v1659, 4294967294
    %v1717 = vadd.s32 %v1660, 4294967294
    %v1718 = vadd.s32 %v1661, 4294967294
    %v1719 = vadd.s32 %v1662, 4294967294
    %vm1720 = vcmp.ge.s32.totalorder %v1704, 0
    %vm1721 = vcmp.ge.s32.totalorder %v1705, 0
    %vm1722 = vcmp.ge.s32.totalorder %v1706, 0
    %vm1723 = vcmp.ge.s32.totalorder %v1707, 0
    %vm1724 = vcmp.ge.s32.totalorder %v1708, 0
    %vm1725 = vcmp.ge.s32.totalorder %v1709, 0
    %vm1726 = vcmp.ge.s32.totalorder %v1710, 0
    %vm1727 = vcmp.ge.s32.totalorder %v1711, 0
    %vm1728 = vcmp.ge.s32.totalorder %v1712, 0
    %vm1729 = vcmp.ge.s32.totalorder %v1713, 0
    %vm1730 = vcmp.ge.s32.totalorder %v1714, 0
    %vm1731 = vcmp.ge.s32.totalorder %v1715, 0
    %vm1732 = vcmp.ge.s32.totalorder %v1716, 0
    %vm1733 = vcmp.ge.s32.totalorder %v1717, 0
    %vm1734 = vcmp.ge.s32.totalorder %v1718, 0
    %vm1735 = vcmp.ge.s32.totalorder %v1719, 0
    %vm1736 = vcmp.lt.s32.totalorder %v1704, 32
    %vm1737 = vcmp.lt.s32.totalorder %v1705, 32
    %vm1738 = vcmp.lt.s32.totalorder %v1706, 32
    %vm1739 = vcmp.lt.s32.totalorder %v1707, 32
    %vm1740 = vcmp.lt.s32.totalorder %v1708, 32
    %vm1741 = vcmp.lt.s32.totalorder %v1709, 32
    %vm1742 = vcmp.lt.s32.totalorder %v1710, 32
    %vm1743 = vcmp.lt.s32.totalorder %v1711, 32
    %vm1744 = vcmp.lt.s32.totalorder %v1712, 32
    %vm1745 = vcmp.lt.s32.totalorder %v1713, 32
    %vm1746 = vcmp.lt.s32.totalorder %v1714, 32
    %vm1747 = vcmp.lt.s32.totalorder %v1715, 32
    %vm1748 = vcmp.lt.s32.totalorder %v1716, 32
    %vm1749 = vcmp.lt.s32.totalorder %v1717, 32
    %vm1750 = vcmp.lt.s32.totalorder %v1718, 32
    %vm1751 = vcmp.lt.s32.totalorder %v1719, 32
    %vm1752 = vmand %vm1720, %vm1736
    %vm1753 = vmand %vm1721, %vm1737
    %vm1754 = vmand %vm1722, %vm1738
    %vm1755 = vmand %vm1723, %vm1739
    %vm1756 = vmand %vm1724, %vm1740
    %vm1757 = vmand %vm1725, %vm1741
    %vm1758 = vmand %vm1726, %vm1742
    %vm1759 = vmand %vm1727, %vm1743
    %vm1760 = vmand %vm1728, %vm1744
    %vm1761 = vmand %vm1729, %vm1745
    %vm1762 = vmand %vm1730, %vm1746
    %vm1763 = vmand %vm1731, %vm1747
    %vm1764 = vmand %vm1732, %vm1748
    %vm1765 = vmand %vm1733, %vm1749
    %vm1766 = vmand %vm1734, %vm1750
    %vm1767 = vmand %vm1735, %vm1751
    %v1768 = vsel %vm1752, %v1703, 0.0
    %v1769 = vsel %vm1753, %v1702, 0.0
    %v1770 = vsel %vm1754, %v1701, 0.0
    %v1771 = vsel %vm1755, %v1700, 0.0
    %v1772 = vsel %vm1756, %v1699, 0.0
    %v1773 = vsel %vm1757, %v1698, 0.0
    %v1774 = vsel %vm1758, %v1697, 0.0
    %v1775 = vsel %vm1759, %v1696, 0.0
    %v1776 = vsel %vm1760, %v1695, 0.0
    %v1777 = vsel %vm1761, %v1694, 0.0
    %v1778 = vsel %vm1762, %v1693, 0.0
    %v1779 = vsel %vm1763, %v1692, 0.0
    %v1780 = vsel %vm1764, %v1691, 0.0
    %v1781 = vsel %vm1765, %v1690, 0.0
    %v1782 = vsel %vm1766, %v1689, 0.0
    %v1783 = vsel %vm1767, %v1688, 0.0
    %v1784 = vld [vmem:[#allocation2] sm:$0xff]
    %v1785 = vld [vmem:[#allocation2 + $0x8] sm:$0xff]
    %v1786 = vld [vmem:[#allocation2 + $0x10] sm:$0xff]
    %v1787 = vld [vmem:[#allocation2 + $0x18] sm:$0xff]
    %v1788 = vld [vmem:[#allocation2 + $0x20] sm:$0xff]
    %v1789 = vld [vmem:[#allocation2 + $0x28] sm:$0xff]
    %v1790 = vld [vmem:[#allocation2 + $0x30] sm:$0xff]
    %v1791 = vld [vmem:[#allocation2 + $0x38] sm:$0xff]
    %v1792 = vld [vmem:[#allocation2 + $0x40] sm:$0xff]
    %v1793 = vld [vmem:[#allocation2 + $0x48] sm:$0xff]
    %v1794 = vld [vmem:[#allocation2 + $0x50] sm:$0xff]
    %v1795 = vld [vmem:[#allocation2 + $0x58] sm:$0xff]
    %v1796 = vld [vmem:[#allocation2 + $0x60] sm:$0xff]
    %v1797 = vld [vmem:[#allocation2 + $0x68] sm:$0xff]
    %v1798 = vld [vmem:[#allocation2 + $0x70] sm:$0xff]
    %v1799 = vld [vmem:[#allocation2 + $0x78] sm:$0xff]
    %1800 = vmatprep.subr.mxu0 0.0
    %1801 = vmatpush1.msra.mxu0 %v1784
    %1802 = vmatprep.subr.mxu0 0.0
    %1803 = vmatpush1.msra.mxu0 %v1785
    %1804 = vmatprep.subr.mxu0 0.0
    %1805 = vmatpush1.msra.mxu0 %v1786
    %1806 = vmatprep.subr.mxu0 0.0
    %1807 = vmatpush1.msra.mxu0 %v1787
    %1808 = vmatprep.subr.mxu0 0.0
    %1809 = vmatpush1.msra.mxu0 %v1788
    %1810 = vmatprep.subr.mxu0 0.0
    %1811 = vmatpush1.msra.mxu0 %v1789
    %1812 = vmatprep.subr.mxu0 0.0
    %1813 = vmatpush1.msra.mxu0 %v1790
    %1814 = vmatprep.subr.mxu0 0.0
    %1815 = vmatpush1.msra.mxu0 %v1791
    %1816 = vmatprep.subr.mxu0 0.0
    %1817 = vmatpush1.msra.mxu0 %v1792
    %1818 = vmatprep.subr.mxu0 0.0
    %1819 = vmatpush1.msra.mxu0 %v1793
    %1820 = vmatprep.subr.mxu0 0.0
    %1821 = vmatpush1.msra.mxu0 %v1794
    %1822 = vmatprep.subr.mxu0 0.0
    %1823 = vmatpush1.msra.mxu0 %v1795
    %1824 = vmatprep.subr.mxu0 0.0
    %1825 = vmatpush1.msra.mxu0 %v1796
    %1826 = vmatprep.subr.mxu0 0.0
    %1827 = vmatpush1.msra.mxu0 %v1797
    %1828 = vmatprep.subr.mxu0 0.0
    %1829 = vmatpush1.msra.mxu0 %v1798
    %1830 = vmatprep.subr.mxu0 0.0
    %1831 = vmatpush1.msra.mxu0 %v1799
    %1832 = vmatprep.subr.mxu0 0.0
    %1833 = vmatpush1.msra.mxu0 0.0
    %1834 = vmatprep.subr.mxu0 0.0
    %1835 = vmatpush1.msra.mxu0 0.0
    %1836 = vmatprep.subr.mxu0 0.0
    %1837 = vmatpush1.msra.mxu0 0.0
    %1838 = vmatprep.subr.mxu0 0.0
    %1839 = vmatpush1.msra.mxu0 0.0
    %1840 = vmatprep.subr.mxu0 0.0
    %1841 = vmatpush1.msra.mxu0 0.0
    %1842 = vmatprep.subr.mxu0 0.0
    %1843 = vmatpush1.msra.mxu0 0.0
    %1844 = vmatprep.subr.mxu0 0.0
    %1845 = vmatpush1.msra.mxu0 0.0
    %1846 = vmatprep.subr.mxu0 0.0
    %1847 = vmatpush1.msra.mxu0 0.0
    %1848 = vmatprep.subr.mxu0 0.0
    %1849 = vmatpush1.msra.mxu0 0.0
    %1850 = vmatprep.subr.mxu0 0.0
    %1851 = vmatpush1.msra.mxu0 0.0
    %1852 = vmatprep.subr.mxu0 0.0
    %1853 = vmatpush1.msra.mxu0 0.0
    %1854 = vmatprep.subr.mxu0 0.0
    %1855 = vmatpush1.msra.mxu0 0.0
    %1856 = vmatprep.subr.mxu0 0.0
    %1857 = vmatpush1.msra.mxu0 0.0
    %1858 = vmatprep.subr.mxu0 0.0
    %1859 = vmatpush1.msra.mxu0 0.0
    %1860 = vmatprep.subr.mxu0 0.0
    %1861 = vmatpush1.msra.mxu0 0.0
    %1862 = vmatprep.subr.mxu0 0.0
    %1863 = vmatpush1.msra.mxu0 0.0
    %1864 = vmatprep.mubr.f32.mxu0 0.0
    %1865 = vmatmul.mubr.f32.gmra.mrb[0].mxu0 %v1768
    %v1866 = vpop.f32.mrb[0].mxu0
    %v1867 = vadd.f32 0.0, %v1866
    %v1868 = vpop.f32.mrb[0].mxu0
    %1869 = vmatprep.mubr.f32.mxu0 0.0
    %1870 = vmatmul.mubr.f32.gmra.mrb[0].mxu0 %v1769
    %v1871 = vpop.f32.mrb[0].mxu0
    %v1872 = vadd.f32 0.0, %v1871
    %v1873 = vpop.f32.mrb[0].mxu0
    %1874 = vmatprep.mubr.f32.mxu0 0.0
    %1875 = vmatmul.mubr.f32.gmra.mrb[0].mxu0 %v1770
    %v1876 = vpop.f32.mrb[0].mxu0
    %v1877 = vadd.f32 0.0, %v1876
    %v1878 = vpop.f32.mrb[0].mxu0
    %1879 = vmatprep.mubr.f32.mxu0 0.0
    %1880 = vmatmul.mubr.f32.gmra.mrb[0].mxu0 %v1771
    %v1881 = vpop.f32.mrb[0].mxu0
    %v1882 = vadd.f32 0.0, %v1881
    %v1883 = vpop.f32.mrb[0].mxu0
    %1884 = vmatprep.mubr.f32.mxu0 0.0
    %1885 = vmatmul.mubr.f32.gmra.mrb[0].mxu0 %v1772
    %v1886 = vpop.f32.mrb[0].mxu0
    %v1887 = vadd.f32 0.0, %v1886
    %v1888 = vpop.f32.mrb[0].mxu0
    %1889 = vmatprep.mubr.f32.mxu0 0.0
    %1890 = vmatmul.mubr.f32.gmra.mrb[0].mxu0 %v1773
    %v1891 = vpop.f32.mrb[0].mxu0
    %v1892 = vadd.f32 0.0, %v1891
    %v1893 = vpop.f32.mrb[0].mxu0
    %1894 = vmatprep.mubr.f32.mxu0 0.0
    %1895 = vmatmul.mubr.f32.gmra.mrb[0].mxu0 %v1774
    %v1896 = vpop.f32.mrb[0].mxu0
    %v1897 = vadd.f32 0.0, %v1896
    %v1898 = vpop.f32.mrb[0].mxu0
    %1899 = vmatprep.mubr.f32.mxu0 0.0
    %1900 = vmatmul.mubr.f32.gmra.mrb[0].mxu0 %v1775
    %v1901 = vpop.f32.mrb[0].mxu0
    %v1902 = vadd.f32 0.0, %v1901
    %v1903 = vpop.f32.mrb[0].mxu0
    %1904 = vmatprep.mubr.f32.mxu0 0.0
    %1905 = vmatmul.mubr.f32.gmra.mrb[0].mxu0 %v1776
    %v1906 = vpop.f32.mrb[0].mxu0
    %v1907 = vadd.f32 0.0, %v1906
    %v1908 = vpop.f32.mrb[0].mxu0
    %1909 = vmatprep.mubr.f32.mxu0 0.0
    %1910 = vmatmul.mubr.f32.gmra.mrb[0].mxu0 %v1777
    %v1911 = vpop.f32.mrb[0].mxu0
    %v1912 = vadd.f32 0.0, %v1911
    %v1913 = vpop.f32.mrb[0].mxu0
    %1914 = vmatprep.mubr.f32.mxu0 0.0
    %1915 = vmatmul.mubr.f32.gmra.mrb[0].mxu0 %v1778
    %v1916 = vpop.f32.mrb[0].mxu0
    %v1917 = vadd.f32 0.0, %v1916
    %v1918 = vpop.f32.mrb[0].mxu0
    %1919 = vmatprep.mubr.f32.mxu0 0.0
    %1920 = vmatmul.mubr.f32.gmra.mrb[0].mxu0 %v1779
    %v1921 = vpop.f32.mrb[0].mxu0
    %v1922 = vadd.f32 0.0, %v1921
    %v1923 = vpop.f32.mrb[0].mxu0
    %1924 = vmatprep.mubr.f32.mxu0 0.0
    %1925 = vmatmul.mubr.f32.gmra.mrb[0].mxu0 %v1780
    %v1926 = vpop.f32.mrb[0].mxu0
    %v1927 = vadd.f32 0.0, %v1926
    %v1928 = vpop.f32.mrb[0].mxu0
    %1929 = vmatprep.mubr.f32.mxu0 0.0
    %1930 = vmatmul.mubr.f32.gmra.mrb[0].mxu0 %v1781
    %v1931 = vpop.f32.mrb[0].mxu0
    %v1932 = vadd.f32 0.0, %v1931
    %v1933 = vpop.f32.mrb[0].mxu0
    %1934 = vmatprep.mubr.f32.mxu0 0.0
    %1935 = vmatmul.mubr.f32.gmra.mrb[0].mxu0 %v1782
    %v1936 = vpop.f32.mrb[0].mxu0
    %v1937 = vadd.f32 0.0, %v1936
    %v1938 = vpop.f32.mrb[0].mxu0
    %1939 = vmatprep.mubr.f32.mxu0 0.0
    %1940 = vmatmul.mubr.f32.gmra.mrb[0].mxu0 %v1783
    %v1941 = vpop.f32.mrb[0].mxu0
    %v1942 = vadd.f32 0.0, %v1941
    %v1943 = vpop.f32.mrb[0].mxu0
    %1944 = vdwg.mxu0
    %v1945 = vadd.f32 %v1670, %v1867
    %v1946 = vadd.f32 %v1670, %v1872
    %v1947 = vadd.f32 %v1670, %v1877
    %v1948 = vadd.f32 %v1670, %v1882
    %v1949 = vadd.f32 %v1670, %v1887
    %v1950 = vadd.f32 %v1670, %v1892
    %v1951 = vadd.f32 %v1670, %v1897
    %v1952 = vadd.f32 %v1670, %v1902
    %v1953 = vadd.f32 %v1670, %v1907
    %v1954 = vadd.f32 %v1670, %v1912
    %v1955 = vadd.f32 %v1670, %v1917
    %v1956 = vadd.f32 %v1670, %v1922
    %v1957 = vadd.f32 %v1670, %v1927
    %v1958 = vadd.f32 %v1670, %v1932
    %v1959 = vadd.f32 %v1670, %v1937
    %v1960 = vadd.f32 %v1670, %v1942
    %v1961 = vrot.slane %v1438, 7
    %v1962 = vrot.slane %v1439, 7
    %v1963 = vrot.slane %v1440, 7
    %v1964 = vrot.slane %v1441, 7
    %v1965 = vrot.slane %v1442, 7
    %v1966 = vrot.slane %v1443, 7
    %v1967 = vrot.slane %v1444, 7
    %v1968 = vrot.slane %v1445, 7
    %v1969 = vrot.slane %v1446, 7
    %v1970 = vrot.slane %v1447, 7
    %v1971 = vrot.slane %v1448, 7
    %v1972 = vrot.slane %v1449, 7
    %v1973 = vrot.slane %v1450, 7
    %v1974 = vrot.slane %v1451, 7
    %v1975 = vrot.slane %v1452, 7
    %v1976 = vrot.slane %v1453, 7
    %vm1977 = vcmp.lt.s32.totalorder %v1455, 1
    %v1978 = vsel %vm1977, %v1975, %v1976
    %v1979 = vsel %vm1977, %v1974, %v1975
    %v1980 = vsel %vm1977, %v1973, %v1974
    %v1981 = vsel %vm1977, %v1972, %v1973
    %v1982 = vsel %vm1977, %v1971, %v1972
    %v1983 = vsel %vm1977, %v1970, %v1971
    %v1984 = vsel %vm1977, %v1969, %v1970
    %v1985 = vsel %vm1977, %v1968, %v1969
    %v1986 = vsel %vm1977, %v1967, %v1968
    %v1987 = vsel %vm1977, %v1966, %v1967
    %v1988 = vsel %vm1977, %v1965, %v1966
    %v1989 = vsel %vm1977, %v1964, %v1965
    %v1990 = vsel %vm1977, %v1963, %v1964
    %v1991 = vsel %vm1977, %v1962, %v1963
    %v1992 = vsel %vm1977, %v1961, %v1962
    %v1993 = vsel %vm1977, %v1976, %v1961
    %v1994 = vadd.s32 %v1647, 4294967295
    %v1995 = vadd.s32 %v1648, 4294967295
    %v1996 = vadd.s32 %v1649, 4294967295
    %v1997 = vadd.s32 %v1650, 4294967295
    %v1998 = vadd.s32 %v1651, 4294967295
    %v1999 = vadd.s32 %v1652, 4294967295
    %v2000 = vadd.s32 %v1653, 4294967295
    %v2001 = vadd.s32 %v1654, 4294967295
    %v2002 = vadd.s32 %v1655, 4294967295
    %v2003 = vadd.s32 %v1656, 4294967295
    %v2004 = vadd.s32 %v1657, 4294967295
    %v2005 = vadd.s32 %v1658, 4294967295
    %v2006 = vadd.s32 %v1659, 4294967295
    %v2007 = vadd.s32 %v1660, 4294967295
    %v2008 = vadd.s32 %v1661, 4294967295
    %v2009 = vadd.s32 %v1662, 4294967295
    %vm2010 = vcmp.ge.s32.totalorder %v1994, 0
    %vm2011 = vcmp.ge.s32.totalorder %v1995, 0
    %vm2012 = vcmp.ge.s32.totalorder %v1996, 0
    %vm2013 = vcmp.ge.s32.totalorder %v1997, 0
    %vm2014 = vcmp.ge.s32.totalorder %v1998, 0
    %vm2015 = vcmp.ge.s32.totalorder %v1999, 0
    %vm2016 = vcmp.ge.s32.totalorder %v2000, 0
    %vm2017 = vcmp.ge.s32.totalorder %v2001, 0
    %vm2018 = vcmp.ge.s32.totalorder %v2002, 0
    %vm2019 = vcmp.ge.s32.totalorder %v2003, 0
    %vm2020 = vcmp.ge.s32.totalorder %v2004, 0
    %vm2021 = vcmp.ge.s32.totalorder %v2005, 0
    %vm2022 = vcmp.ge.s32.totalorder %v2006, 0
    %vm2023 = vcmp.ge.s32.totalorder %v2007, 0
    %vm2024 = vcmp.ge.s32.totalorder %v2008, 0
    %vm2025 = vcmp.ge.s32.totalorder %v2009, 0
    %vm2026 = vcmp.lt.s32.totalorder %v1994, 32
    %vm2027 = vcmp.lt.s32.totalorder %v1995, 32
    %vm2028 = vcmp.lt.s32.totalorder %v1996, 32
    %vm2029 = vcmp.lt.s32.totalorder %v1997, 32
    %vm2030 = vcmp.lt.s32.totalorder %v1998, 32
    %vm2031 = vcmp.lt.s32.totalorder %v1999, 32
    %vm2032 = vcmp.lt.s32.totalorder %v2000, 32
    %vm2033 = vcmp.lt.s32.totalorder %v2001, 32
    %vm2034 = vcmp.lt.s32.totalorder %v2002, 32
    %vm2035 = vcmp.lt.s32.totalorder %v2003, 32
    %vm2036 = vcmp.lt.s32.totalorder %v2004, 32
    %vm2037 = vcmp.lt.s32.totalorder %v2005, 32
    %vm2038 = vcmp.lt.s32.totalorder %v2006, 32
    %vm2039 = vcmp.lt.s32.totalorder %v2007, 32
    %vm2040 = vcmp.lt.s32.totalorder %v2008, 32
    %vm2041 = vcmp.lt.s32.totalorder %v2009, 32
    %vm2042 = vmand %vm2010, %vm2026
    %vm2043 = vmand %vm2011, %vm2027
    %vm2044 = vmand %vm2012, %vm2028
    %vm2045 = vmand %vm2013, %vm2029
    %vm2046 = vmand %vm2014, %vm2030
    %vm2047 = vmand %vm2015, %vm2031
    %vm2048 = vmand %vm2016, %vm2032
    %vm2049 = vmand %vm2017, %vm2033
    %vm2050 = vmand %vm2018, %vm2034
    %vm2051 = vmand %vm2019, %vm2035
    %vm2052 = vmand %vm2020, %vm2036
    %vm2053 = vmand %vm2021, %vm2037
    %vm2054 = vmand %vm2022, %vm2038
    %vm2055 = vmand %vm2023, %vm2039
    %vm2056 = vmand %vm2024, %vm2040
    %vm2057 = vmand %vm2025, %vm2041
    %v2058 = vsel %vm2042, %v1993, 0.0
    %v2059 = vsel %vm2043, %v1992, 0.0
    %v2060 = vsel %vm2044, %v1991, 0.0
    %v2061 = vsel %vm2045, %v1990, 0.0
    %v2062 = vsel %vm2046, %v1989, 0.0
    %v2063 = vsel %vm2047, %v1988, 0.0
    %v2064 = vsel %vm2048, %v1987, 0.0
    %v2065 = vsel %vm2049, %v1986, 0.0
    %v2066 = vsel %vm2050, %v1985, 0.0
    %v2067 = vsel %vm2051, %v1984, 0.0
    %v2068 = vsel %vm2052, %v1983, 0.0
    %v2069 = vsel %vm2053, %v1982, 0.0
    %v2070 = vsel %vm2054, %v1981, 0.0
    %v2071 = vsel %vm2055, %v1980, 0.0
    %v2072 = vsel %vm2056, %v1979, 0.0
    %v2073 = vsel %vm2057, %v1978, 0.0
    %s2074 = scalar_lea.vmem [#allocation2], 128
    %v2075 = vld [vmem:[%s2074] sm:$0xff]
    %v2076 = vld [vmem:[%s2074 + $0x8] sm:$0xff]
    %v2077 = vld [vmem:[%s2074 + $0x10] sm:$0xff]
    %v2078 = vld [vmem:[%s2074 + $0x18] sm:$0xff]
    %v2079 = vld [vmem:[%s2074 + $0x20] sm:$0xff]
    %v2080 = vld [vmem:[%s2074 + $0x28] sm:$0xff]
    %v2081 = vld [vmem:[%s2074 + $0x30] sm:$0xff]
    %v2082 = vld [vmem:[%s2074 + $0x38] sm:$0xff]
    %v2083 = vld [vmem:[%s2074 + $0x40] sm:$0xff]
    %v2084 = vld [vmem:[%s2074 + $0x48] sm:$0xff]
    %v2085 = vld [vmem:[%s2074 + $0x50] sm:$0xff]
    %v2086 = vld [vmem:[%s2074 + $0x58] sm:$0xff]
    %v2087 = vld [vmem:[%s2074 + $0x60] sm:$0xff]
    %v2088 = vld [vmem:[%s2074 + $0x68] sm:$0xff]
    %v2089 = vld [vmem:[%s2074 + $0x70] sm:$0xff]
    %v2090 = vld [vmem:[%s2074 + $0x78] sm:$0xff]
    %2091 = vmatprep.subr.mxu0 0.0
    %2092 = vmatpush1.msra.mxu0 %v2075
    %2093 = vmatprep.subr.mxu0 0.0
    %2094 = vmatpush1.msra.mxu0 %v2076
    %2095 = vmatprep.subr.mxu0 0.0
    %2096 = vmatpush1.msra.mxu0 %v2077
    %2097 = vmatprep.subr.mxu0 0.0
    %2098 = vmatpush1.msra.mxu0 %v2078
    %2099 = vmatprep.subr.mxu0 0.0
    %2100 = vmatpush1.msra.mxu0 %v2079
    %2101 = vmatprep.subr.mxu0 0.0
    %2102 = vmatpush1.msra.mxu0 %v2080
    %2103 = vmatprep.subr.mxu0 0.0
    %2104 = vmatpush1.msra.mxu0 %v2081
    %2105 = vmatprep.subr.mxu0 0.0
    %2106 = vmatpush1.msra.mxu0 %v2082
    %2107 = vmatprep.subr.mxu0 0.0
    %2108 = vmatpush1.msra.mxu0 %v2083
    %2109 = vmatprep.subr.mxu0 0.0
    %2110 = vmatpush1.msra.mxu0 %v2084
    %2111 = vmatprep.subr.mxu0 0.0
    %2112 = vmatpush1.msra.mxu0 %v2085
    %2113 = vmatprep.subr.mxu0 0.0
    %2114 = vmatpush1.msra.mxu0 %v2086
    %2115 = vmatprep.subr.mxu0 0.0
    %2116 = vmatpush1.msra.mxu0 %v2087
    %2117 = vmatprep.subr.mxu0 0.0
    %2118 = vmatpush1.msra.mxu0 %v2088
    %2119 = vmatprep.subr.mxu0 0.0
    %2120 = vmatpush1.msra.mxu0 %v2089
    %2121 = vmatprep.subr.mxu0 0.0
    %2122 = vmatpush1.msra.mxu0 %v2090
    %2123 = vmatprep.subr.mxu0 0.0
    %2124 = vmatpush1.msra.mxu0 0.0
    %2125 = vmatprep.subr.mxu0 0.0
    %2126 = vmatpush1.msra.mxu0 0.0
    %2127 = vmatprep.subr.mxu0 0.0
    %2128 = vmatpush1.msra.mxu0 0.0
    %2129 = vmatprep.subr.mxu0 0.0
    %2130 = vmatpush1.msra.mxu0 0.0
    %2131 = vmatprep.subr.mxu0 0.0
    %2132 = vmatpush1.msra.mxu0 0.0
    %2133 = vmatprep.subr.mxu0 0.0
    %2134 = vmatpush1.msra.mxu0 0.0
    %2135 = vmatprep.subr.mxu0 0.0
    %2136 = vmatpush1.msra.mxu0 0.0
    %2137 = vmatprep.subr.mxu0 0.0
    %2138 = vmatpush1.msra.mxu0 0.0
    %2139 = vmatprep.subr.mxu0 0.0
    %2140 = vmatpush1.msra.mxu0 0.0
    %2141 = vmatprep.subr.mxu0 0.0
    %2142 = vmatpush1.msra.mxu0 0.0
    %2143 = vmatprep.subr.mxu0 0.0
    %2144 = vmatpush1.msra.mxu0 0.0
    %2145 = vmatprep.subr.mxu0 0.0
    %2146 = vmatpush1.msra.mxu0 0.0
    %2147 = vmatprep.subr.mxu0 0.0
    %2148 = vmatpush1.msra.mxu0 0.0
    %2149 = vmatprep.subr.mxu0 0.0
    %2150 = vmatpush1.msra.mxu0 0.0
    %2151 = vmatprep.subr.mxu0 0.0
    %2152 = vmatpush1.msra.mxu0 0.0
    %2153 = vmatprep.subr.mxu0 0.0
    %2154 = vmatpush1.msra.mxu0 0.0
    %2155 = vmatprep.mubr.f32.mxu0 0.0
    %2156 = vmatmul.mubr.f32.gmra.mrb[0].mxu0 %v2058
    %v2157 = vpop.f32.mrb[0].mxu0
    %v2158 = vadd.f32 0.0, %v2157
    %v2159 = vpop.f32.mrb[0].mxu0
    %2160 = vmatprep.mubr.f32.mxu0 0.0
    %2161 = vmatmul.mubr.f32.gmra.mrb[0].mxu0 %v2059
    %v2162 = vpop.f32.mrb[0].mxu0
    %v2163 = vadd.f32 0.0, %v2162
    %v2164 = vpop.f32.mrb[0].mxu0
    %2165 = vmatprep.mubr.f32.mxu0 0.0
    %2166 = vmatmul.mubr.f32.gmra.mrb[0].mxu0 %v2060
    %v2167 = vpop.f32.mrb[0].mxu0
    %v2168 = vadd.f32 0.0, %v2167
    %v2169 = vpop.f32.mrb[0].mxu0
    %2170 = vmatprep.mubr.f32.mxu0 0.0
    %2171 = vmatmul.mubr.f32.gmra.mrb[0].mxu0 %v2061
    %v2172 = vpop.f32.mrb[0].mxu0
    %v2173 = vadd.f32 0.0, %v2172
    %v2174 = vpop.f32.mrb[0].mxu0
    %2175 = vmatprep.mubr.f32.mxu0 0.0
    %2176 = vmatmul.mubr.f32.gmra.mrb[0].mxu0 %v2062
    %v2177 = vpop.f32.mrb[0].mxu0
    %v2178 = vadd.f32 0.0, %v2177
    %v2179 = vpop.f32.mrb[0].mxu0
    %2180 = vmatprep.mubr.f32.mxu0 0.0
    %2181 = vmatmul.mubr.f32.gmra.mrb[0].mxu0 %v2063
    %v2182 = vpop.f32.mrb[0].mxu0
    %v2183 = vadd.f32 0.0, %v2182
    %v2184 = vpop.f32.mrb[0].mxu0
    %2185 = vmatprep.mubr.f32.mxu0 0.0
    %2186 = vmatmul.mubr.f32.gmra.mrb[0].mxu0 %v2064
    %v2187 = vpop.f32.mrb[0].mxu0
    %v2188 = vadd.f32 0.0, %v2187
    %v2189 = vpop.f32.mrb[0].mxu0
    %2190 = vmatprep.mubr.f32.mxu0 0.0
    %2191 = vmatmul.mubr.f32.gmra.mrb[0].mxu0 %v2065
    %v2192 = vpop.f32.mrb[0].mxu0
    %v2193 = vadd.f32 0.0, %v2192
    %v2194 = vpop.f32.mrb[0].mxu0
    %2195 = vmatprep.mubr.f32.mxu0 0.0
    %2196 = vmatmul.mubr.f32.gmra.mrb[0].mxu0 %v2066
    %v2197 = vpop.f32.mrb[0].mxu0
    %v2198 = vadd.f32 0.0, %v2197
    %v2199 = vpop.f32.mrb[0].mxu0
    %2200 = vmatprep.mubr.f32.mxu0 0.0
    %2201 = vmatmul.mubr.f32.gmra.mrb[0].mxu0 %v2067
    %v2202 = vpop.f32.mrb[0].mxu0
    %v2203 = vadd.f32 0.0, %v2202
    %v2204 = vpop.f32.mrb[0].mxu0
    %2205 = vmatprep.mubr.f32.mxu0 0.0
    %2206 = vmatmul.mubr.f32.gmra.mrb[0].mxu0 %v2068
    %v2207 = vpop.f32.mrb[0].mxu0
    %v2208 = vadd.f32 0.0, %v2207
    %v2209 = vpop.f32.mrb[0].mxu0
    %2210 = vmatprep.mubr.f32.mxu0 0.0
    %2211 = vmatmul.mubr.f32.gmra.mrb[0].mxu0 %v2069
    %v2212 = vpop.f32.mrb[0].mxu0
    %v2213 = vadd.f32 0.0, %v2212
    %v2214 = vpop.f32.mrb[0].mxu0
    %2215 = vmatprep.mubr.f32.mxu0 0.0
    %2216 = vmatmul.mubr.f32.gmra.mrb[0].mxu0 %v2070
    %v2217 = vpop.f32.mrb[0].mxu0
    %v2218 = vadd.f32 0.0, %v2217
    %v2219 = vpop.f32.mrb[0].mxu0
    %2220 = vmatprep.mubr.f32.mxu0 0.0
    %2221 = vmatmul.mubr.f32.gmra.mrb[0].mxu0 %v2071
    %v2222 = vpop.f32.mrb[0].mxu0
    %v2223 = vadd.f32 0.0, %v2222
    %v2224 = vpop.f32.mrb[0].mxu0
    %2225 = vmatprep.mubr.f32.mxu0 0.0
    %2226 = vmatmul.mubr.f32.gmra.mrb[0].mxu0 %v2072
    %v2227 = vpop.f32.mrb[0].mxu0
    %v2228 = vadd.f32 0.0, %v2227
    %v2229 = vpop.f32.mrb[0].mxu0
    %2230 = vmatprep.mubr.f32.mxu0 0.0
    %2231 = vmatmul.mubr.f32.gmra.mrb[0].mxu0 %v2073
    %v2232 = vpop.f32.mrb[0].mxu0
    %v2233 = vadd.f32 0.0, %v2232
    %v2234 = vpop.f32.mrb[0].mxu0
    %2235 = vdwg.mxu0
    %v2236 = vadd.f32 %v1945, %v2158
    %v2237 = vadd.f32 %v1946, %v2163
    %v2238 = vadd.f32 %v1947, %v2168
    %v2239 = vadd.f32 %v1948, %v2173
    %v2240 = vadd.f32 %v1949, %v2178
    %v2241 = vadd.f32 %v1950, %v2183
    %v2242 = vadd.f32 %v1951, %v2188
    %v2243 = vadd.f32 %v1952, %v2193
    %v2244 = vadd.f32 %v1953, %v2198
    %v2245 = vadd.f32 %v1954, %v2203
    %v2246 = vadd.f32 %v1955, %v2208
    %v2247 = vadd.f32 %v1956, %v2213
    %v2248 = vadd.f32 %v1957, %v2218
    %v2249 = vadd.f32 %v1958, %v2223
    %v2250 = vadd.f32 %v1959, %v2228
    %v2251 = vadd.f32 %v1960, %v2233
    %s2252 = scalar_lea.vmem [#allocation2], 256
    %v2253 = vld [vmem:[%s2252] sm:$0xff]
    %v2254 = vld [vmem:[%s2252 + $0x8] sm:$0xff]
    %v2255 = vld [vmem:[%s2252 + $0x10] sm:$0xff]
    %v2256 = vld [vmem:[%s2252 + $0x18] sm:$0xff]
    %v2257 = vld [vmem:[%s2252 + $0x20] sm:$0xff]
    %v2258 = vld [vmem:[%s2252 + $0x28] sm:$0xff]
    %v2259 = vld [vmem:[%s2252 + $0x30] sm:$0xff]
    %v2260 = vld [vmem:[%s2252 + $0x38] sm:$0xff]
    %v2261 = vld [vmem:[%s2252 + $0x40] sm:$0xff]
    %v2262 = vld [vmem:[%s2252 + $0x48] sm:$0xff]
    %v2263 = vld [vmem:[%s2252 + $0x50] sm:$0xff]
    %v2264 = vld [vmem:[%s2252 + $0x58] sm:$0xff]
    %v2265 = vld [vmem:[%s2252 + $0x60] sm:$0xff]
    %v2266 = vld [vmem:[%s2252 + $0x68] sm:$0xff]
    %v2267 = vld [vmem:[%s2252 + $0x70] sm:$0xff]
    %v2268 = vld [vmem:[%s2252 + $0x78] sm:$0xff]
    %2269 = vmatprep.subr.mxu0 0.0
    %2270 = vmatpush1.msra.mxu0 %v2253
    %2271 = vmatprep.subr.mxu0 0.0
    %2272 = vmatpush1.msra.mxu0 %v2254
    %2273 = vmatprep.subr.mxu0 0.0
    %2274 = vmatpush1.msra.mxu0 %v2255
    %2275 = vmatprep.subr.mxu0 0.0
    %2276 = vmatpush1.msra.mxu0 %v2256
    %2277 = vmatprep.subr.mxu0 0.0
    %2278 = vmatpush1.msra.mxu0 %v2257
    %2279 = vmatprep.subr.mxu0 0.0
    %2280 = vmatpush1.msra.mxu0 %v2258
    %2281 = vmatprep.subr.mxu0 0.0
    %2282 = vmatpush1.msra.mxu0 %v2259
    %2283 = vmatprep.subr.mxu0 0.0
    %2284 = vmatpush1.msra.mxu0 %v2260
    %2285 = vmatprep.subr.mxu0 0.0
    %2286 = vmatpush1.msra.mxu0 %v2261
    %2287 = vmatprep.subr.mxu0 0.0
    %2288 = vmatpush1.msra.mxu0 %v2262
    %2289 = vmatprep.subr.mxu0 0.0
    %2290 = vmatpush1.msra.mxu0 %v2263
    %2291 = vmatprep.subr.mxu0 0.0
    %2292 = vmatpush1.msra.mxu0 %v2264
    %2293 = vmatprep.subr.mxu0 0.0
    %2294 = vmatpush1.msra.mxu0 %v2265
    %2295 = vmatprep.subr.mxu0 0.0
    %2296 = vmatpush1.msra.mxu0 %v2266
    %2297 = vmatprep.subr.mxu0 0.0
    %2298 = vmatpush1.msra.mxu0 %v2267
    %2299 = vmatprep.subr.mxu0 0.0
    %2300 = vmatpush1.msra.mxu0 %v2268
    %2301 = vmatprep.subr.mxu0 0.0
    %2302 = vmatpush1.msra.mxu0 0.0
    %2303 = vmatprep.subr.mxu0 0.0
    %2304 = vmatpush1.msra.mxu0 0.0
    %2305 = vmatprep.subr.mxu0 0.0
    %2306 = vmatpush1.msra.mxu0 0.0
    %2307 = vmatprep.subr.mxu0 0.0
    %2308 = vmatpush1.msra.mxu0 0.0
    %2309 = vmatprep.subr.mxu0 0.0
    %2310 = vmatpush1.msra.mxu0 0.0
    %2311 = vmatprep.subr.mxu0 0.0
    %2312 = vmatpush1.msra.mxu0 0.0
    %2313 = vmatprep.subr.mxu0 0.0
    %2314 = vmatpush1.msra.mxu0 0.0
    %2315 = vmatprep.subr.mxu0 0.0
    %2316 = vmatpush1.msra.mxu0 0.0
    %2317 = vmatprep.subr.mxu0 0.0
    %2318 = vmatpush1.msra.mxu0 0.0
    %2319 = vmatprep.subr.mxu0 0.0
    %2320 = vmatpush1.msra.mxu0 0.0
    %2321 = vmatprep.subr.mxu0 0.0
    %2322 = vmatpush1.msra.mxu0 0.0
    %2323 = vmatprep.subr.mxu0 0.0
    %2324 = vmatpush1.msra.mxu0 0.0
    %2325 = vmatprep.subr.mxu0 0.0
    %2326 = vmatpush1.msra.mxu0 0.0
    %2327 = vmatprep.subr.mxu0 0.0
    %2328 = vmatpush1.msra.mxu0 0.0
    %2329 = vmatprep.subr.mxu0 0.0
    %2330 = vmatpush1.msra.mxu0 0.0
    %2331 = vmatprep.subr.mxu0 0.0
    %2332 = vmatpush1.msra.mxu0 0.0
    %2333 = vmatprep.mubr.f32.mxu0 0.0
    %2334 = vmatmul.mubr.f32.gmra.mrb[0].mxu0 %v1438
    %v2335 = vpop.f32.mrb[0].mxu0
    %v2336 = vadd.f32 0.0, %v2335
    %v2337 = vpop.f32.mrb[0].mxu0
    %2338 = vmatprep.mubr.f32.mxu0 0.0
    %2339 = vmatmul.mubr.f32.gmra.mrb[0].mxu0 %v1439
    %v2340 = vpop.f32.mrb[0].mxu0
    %v2341 = vadd.f32 0.0, %v2340
    %v2342 = vpop.f32.mrb[0].mxu0
    %2343 = vmatprep.mubr.f32.mxu0 0.0
    %2344 = vmatmul.mubr.f32.gmra.mrb[0].mxu0 %v1440
    %v2345 = vpop.f32.mrb[0].mxu0
    %v2346 = vadd.f32 0.0, %v2345
    %v2347 = vpop.f32.mrb[0].mxu0
    %2348 = vmatprep.mubr.f32.mxu0 0.0
    %2349 = vmatmul.mubr.f32.gmra.mrb[0].mxu0 %v1441
    %v2350 = vpop.f32.mrb[0].mxu0
    %v2351 = vadd.f32 0.0, %v2350
    %v2352 = vpop.f32.mrb[0].mxu0
    %2353 = vmatprep.mubr.f32.mxu0 0.0
    %2354 = vmatmul.mubr.f32.gmra.mrb[0].mxu0 %v1442
    %v2355 = vpop.f32.mrb[0].mxu0
    %v2356 = vadd.f32 0.0, %v2355
    %v2357 = vpop.f32.mrb[0].mxu0
    %2358 = vmatprep.mubr.f32.mxu0 0.0
    %2359 = vmatmul.mubr.f32.gmra.mrb[0].mxu0 %v1443
    %v2360 = vpop.f32.mrb[0].mxu0
    %v2361 = vadd.f32 0.0, %v2360
    %v2362 = vpop.f32.mrb[0].mxu0
    %2363 = vmatprep.mubr.f32.mxu0 0.0
    %2364 = vmatmul.mubr.f32.gmra.mrb[0].mxu0 %v1444
    %v2365 = vpop.f32.mrb[0].mxu0
    %v2366 = vadd.f32 0.0, %v2365
    %v2367 = vpop.f32.mrb[0].mxu0
    %2368 = vmatprep.mubr.f32.mxu0 0.0
    %2369 = vmatmul.mubr.f32.gmra.mrb[0].mxu0 %v1445
    %v2370 = vpop.f32.mrb[0].mxu0
    %v2371 = vadd.f32 0.0, %v2370
    %v2372 = vpop.f32.mrb[0].mxu0
    %2373 = vmatprep.mubr.f32.mxu0 0.0
    %2374 = vmatmul.mubr.f32.gmra.mrb[0].mxu0 %v1446
    %v2375 = vpop.f32.mrb[0].mxu0
    %v2376 = vadd.f32 0.0, %v2375
    %v2377 = vpop.f32.mrb[0].mxu0
    %2378 = vmatprep.mubr.f32.mxu0 0.0
    %2379 = vmatmul.mubr.f32.gmra.mrb[0].mxu0 %v1447
    %v2380 = vpop.f32.mrb[0].mxu0
    %v2381 = vadd.f32 0.0, %v2380
    %v2382 = vpop.f32.mrb[0].mxu0
    %2383 = vmatprep.mubr.f32.mxu0 0.0
    %2384 = vmatmul.mubr.f32.gmra.mrb[0].mxu0 %v1448
    %v2385 = vpop.f32.mrb[0].mxu0
    %v2386 = vadd.f32 0.0, %v2385
    %v2387 = vpop.f32.mrb[0].mxu0
    %2388 = vmatprep.mubr.f32.mxu0 0.0
    %2389 = vmatmul.mubr.f32.gmra.mrb[0].mxu0 %v1449
    %v2390 = vpop.f32.mrb[0].mxu0
    %v2391 = vadd.f32 0.0, %v2390
    %v2392 = vpop.f32.mrb[0].mxu0
    %2393 = vmatprep.mubr.f32.mxu0 0.0
    %2394 = vmatmul.mubr.f32.gmra.mrb[0].mxu0 %v1450
    %v2395 = vpop.f32.mrb[0].mxu0
    %v2396 = vadd.f32 0.0, %v2395
    %v2397 = vpop.f32.mrb[0].mxu0
    %2398 = vmatprep.mubr.f32.mxu0 0.0
    %2399 = vmatmul.mubr.f32.gmra.mrb[0].mxu0 %v1451
    %v2400 = vpop.f32.mrb[0].mxu0
    %v2401 = vadd.f32 0.0, %v2400
    %v2402 = vpop.f32.mrb[0].mxu0
    %2403 = vmatprep.mubr.f32.mxu0 0.0
    %2404 = vmatmul.mubr.f32.gmra.mrb[0].mxu0 %v1452
    %v2405 = vpop.f32.mrb[0].mxu0
    %v2406 = vadd.f32 0.0, %v2405
    %v2407 = vpop.f32.mrb[0].mxu0
    %2408 = vmatprep.mubr.f32.mxu0 0.0
    %2409 = vmatmul.mubr.f32.gmra.mrb[0].mxu0 %v1453
    %v2410 = vpop.f32.mrb[0].mxu0
    %v2411 = vadd.f32 0.0, %v2410
    %v2412 = vpop.f32.mrb[0].mxu0
    %2413 = vdwg.mxu0
    %v2414 = vadd.f32 %v2236, %v2336
    %v2415 = vadd.f32 %v2237, %v2341
    %v2416 = vadd.f32 %v2238, %v2346
    %v2417 = vadd.f32 %v2239, %v2351
    %v2418 = vadd.f32 %v2240, %v2356
    %v2419 = vadd.f32 %v2241, %v2361
    %v2420 = vadd.f32 %v2242, %v2366
    %v2421 = vadd.f32 %v2243, %v2371
    %v2422 = vadd.f32 %v2244, %v2376
    %v2423 = vadd.f32 %v2245, %v2381
    %v2424 = vadd.f32 %v2246, %v2386
    %v2425 = vadd.f32 %v2247, %v2391
    %v2426 = vadd.f32 %v2248, %v2396
    %v2427 = vadd.f32 %v2249, %v2401
    %v2428 = vadd.f32 %v2250, %v2406
    %v2429 = vadd.f32 %v2251, %v2411
    %v2430 = vrot.slane %v1438, 1
    %v2431 = vrot.slane %v1439, 1
    %v2432 = vrot.slane %v1440, 1
    %v2433 = vrot.slane %v1441, 1
    %v2434 = vrot.slane %v1442, 1
    %v2435 = vrot.slane %v1443, 1
    %v2436 = vrot.slane %v1444, 1
    %v2437 = vrot.slane %v1445, 1
    %v2438 = vrot.slane %v1446, 1
    %v2439 = vrot.slane %v1447, 1
    %v2440 = vrot.slane %v1448, 1
    %v2441 = vrot.slane %v1449, 1
    %v2442 = vrot.slane %v1450, 1
    %v2443 = vrot.slane %v1451, 1
    %v2444 = vrot.slane %v1452, 1
    %v2445 = vrot.slane %v1453, 1
    %vm2446 = vcmp.lt.s32.totalorder %v1455, 7
    %v2447 = vsel %vm2446, %v2444, %v2445
    %v2448 = vsel %vm2446, %v2443, %v2444
    %v2449 = vsel %vm2446, %v2442, %v2443
    %v2450 = vsel %vm2446, %v2441, %v2442
    %v2451 = vsel %vm2446, %v2440, %v2441
    %v2452 = vsel %vm2446, %v2439, %v2440
    %v2453 = vsel %vm2446, %v2438, %v2439
    %v2454 = vsel %vm2446, %v2437, %v2438
    %v2455 = vsel %vm2446, %v2436, %v2437
    %v2456 = vsel %vm2446, %v2435, %v2436
    %v2457 = vsel %vm2446, %v2434, %v2435
    %v2458 = vsel %vm2446, %v2433, %v2434
    %v2459 = vsel %vm2446, %v2432, %v2433
    %v2460 = vsel %vm2446, %v2431, %v2432
    %v2461 = vsel %vm2446, %v2430, %v2431
    %v2462 = vsel %vm2446, %v2445, %v2430
    %v2463 = vadd.s32 %v1647, 1
    %v2464 = vadd.s32 %v1648, 1
    %v2465 = vadd.s32 %v1649, 1
    %v2466 = vadd.s32 %v1650, 1
    %v2467 = vadd.s32 %v1651, 1
    %v2468 = vadd.s32 %v1652, 1
    %v2469 = vadd.s32 %v1653, 1
    %v2470 = vadd.s32 %v1654, 1
    %v2471 = vadd.s32 %v1655, 1
    %v2472 = vadd.s32 %v1656, 1
    %v2473 = vadd.s32 %v1657, 1
    %v2474 = vadd.s32 %v1658, 1
    %v2475 = vadd.s32 %v1659, 1
    %v2476 = vadd.s32 %v1660, 1
    %v2477 = vadd.s32 %v1661, 1
    %v2478 = vadd.s32 %v1662, 1
    %vm2479 = vcmp.ge.s32.totalorder %v2463, 0
    %vm2480 = vcmp.ge.s32.totalorder %v2464, 0
    %vm2481 = vcmp.ge.s32.totalorder %v2465, 0
    %vm2482 = vcmp.ge.s32.totalorder %v2466, 0
    %vm2483 = vcmp.ge.s32.totalorder %v2467, 0
    %vm2484 = vcmp.ge.s32.totalorder %v2468, 0
    %vm2485 = vcmp.ge.s32.totalorder %v2469, 0
    %vm2486 = vcmp.ge.s32.totalorder %v2470, 0
    %vm2487 = vcmp.ge.s32.totalorder %v2471, 0
    %vm2488 = vcmp.ge.s32.totalorder %v2472, 0
    %vm2489 = vcmp.ge.s32.totalorder %v2473, 0
    %vm2490 = vcmp.ge.s32.totalorder %v2474, 0
    %vm2491 = vcmp.ge.s32.totalorder %v2475, 0
    %vm2492 = vcmp.ge.s32.totalorder %v2476, 0
    %vm2493 = vcmp.ge.s32.totalorder %v2477, 0
    %vm2494 = vcmp.ge.s32.totalorder %v2478, 0
    %vm2495 = vcmp.lt.s32.totalorder %v2463, 32
    %vm2496 = vcmp.lt.s32.totalorder %v2464, 32
    %vm2497 = vcmp.lt.s32.totalorder %v2465, 32
    %vm2498 = vcmp.lt.s32.totalorder %v2466, 32
    %vm2499 = vcmp.lt.s32.totalorder %v2467, 32
    %vm2500 = vcmp.lt.s32.totalorder %v2468, 32
    %vm2501 = vcmp.lt.s32.totalorder %v2469, 32
    %vm2502 = vcmp.lt.s32.totalorder %v2470, 32
    %vm2503 = vcmp.lt.s32.totalorder %v2471, 32
    %vm2504 = vcmp.lt.s32.totalorder %v2472, 32
    %vm2505 = vcmp.lt.s32.totalorder %v2473, 32
    %vm2506 = vcmp.lt.s32.totalorder %v2474, 32
    %vm2507 = vcmp.lt.s32.totalorder %v2475, 32
    %vm2508 = vcmp.lt.s32.totalorder %v2476, 32
    %vm2509 = vcmp.lt.s32.totalorder %v2477, 32
    %vm2510 = vcmp.lt.s32.totalorder %v2478, 32
    %vm2511 = vmand %vm2479, %vm2495
    %vm2512 = vmand %vm2480, %vm2496
    %vm2513 = vmand %vm2481, %vm2497
    %vm2514 = vmand %vm2482, %vm2498
    %vm2515 = vmand %vm2483, %vm2499
    %vm2516 = vmand %vm2484, %vm2500
    %vm2517 = vmand %vm2485, %vm2501
    %vm2518 = vmand %vm2486, %vm2502
    %vm2519 = vmand %vm2487, %vm2503
    %vm2520 = vmand %vm2488, %vm2504
    %vm2521 = vmand %vm2489, %vm2505
    %vm2522 = vmand %vm2490, %vm2506
    %vm2523 = vmand %vm2491, %vm2507
    %vm2524 = vmand %vm2492, %vm2508
    %vm2525 = vmand %vm2493, %vm2509
    %vm2526 = vmand %vm2494, %vm2510
    %v2527 = vsel %vm2511, %v2461, 0.0
    %v2528 = vsel %vm2512, %v2460, 0.0
    %v2529 = vsel %vm2513, %v2459, 0.0
    %v2530 = vsel %vm2514, %v2458, 0.0
    %v2531 = vsel %vm2515, %v2457, 0.0
    %v2532 = vsel %vm2516, %v2456, 0.0
    %v2533 = vsel %vm2517, %v2455, 0.0
    %v2534 = vsel %vm2518, %v2454, 0.0
    %v2535 = vsel %vm2519, %v2453, 0.0
    %v2536 = vsel %vm2520, %v2452, 0.0
    %v2537 = vsel %vm2521, %v2451, 0.0
    %v2538 = vsel %vm2522, %v2450, 0.0
    %v2539 = vsel %vm2523, %v2449, 0.0
    %v2540 = vsel %vm2524, %v2448, 0.0
    %v2541 = vsel %vm2525, %v2447, 0.0
    %v2542 = vsel %vm2526, %v2462, 0.0
    %s2543 = scalar_lea.vmem [#allocation2], 384
    %v2544 = vld [vmem:[%s2543] sm:$0xff]
    %v2545 = vld [vmem:[%s2543 + $0x8] sm:$0xff]
    %v2546 = vld [vmem:[%s2543 + $0x10] sm:$0xff]
    %v2547 = vld [vmem:[%s2543 + $0x18] sm:$0xff]
    %v2548 = vld [vmem:[%s2543 + $0x20] sm:$0xff]
    %v2549 = vld [vmem:[%s2543 + $0x28] sm:$0xff]
    %v2550 = vld [vmem:[%s2543 + $0x30] sm:$0xff]
    %v2551 = vld [vmem:[%s2543 + $0x38] sm:$0xff]
    %v2552 = vld [vmem:[%s2543 + $0x40] sm:$0xff]
    %v2553 = vld [vmem:[%s2543 + $0x48] sm:$0xff]
    %v2554 = vld [vmem:[%s2543 + $0x50] sm:$0xff]
    %v2555 = vld [vmem:[%s2543 + $0x58] sm:$0xff]
    %v2556 = vld [vmem:[%s2543 + $0x60] sm:$0xff]
    %v2557 = vld [vmem:[%s2543 + $0x68] sm:$0xff]
    %v2558 = vld [vmem:[%s2543 + $0x70] sm:$0xff]
    %v2559 = vld [vmem:[%s2543 + $0x78] sm:$0xff]
    %2560 = vmatprep.subr.mxu0 0.0
    %2561 = vmatpush1.msra.mxu0 %v2544
    %2562 = vmatprep.subr.mxu0 0.0
    %2563 = vmatpush1.msra.mxu0 %v2545
    %2564 = vmatprep.subr.mxu0 0.0
    %2565 = vmatpush1.msra.mxu0 %v2546
    %2566 = vmatprep.subr.mxu0 0.0
    %2567 = vmatpush1.msra.mxu0 %v2547
    %2568 = vmatprep.subr.mxu0 0.0
    %2569 = vmatpush1.msra.mxu0 %v2548
    %2570 = vmatprep.subr.mxu0 0.0
    %2571 = vmatpush1.msra.mxu0 %v2549
    %2572 = vmatprep.subr.mxu0 0.0
    %2573 = vmatpush1.msra.mxu0 %v2550
    %2574 = vmatprep.subr.mxu0 0.0
    %2575 = vmatpush1.msra.mxu0 %v2551
    %2576 = vmatprep.subr.mxu0 0.0
    %2577 = vmatpush1.msra.mxu0 %v2552
    %2578 = vmatprep.subr.mxu0 0.0
    %2579 = vmatpush1.msra.mxu0 %v2553
    %2580 = vmatprep.subr.mxu0 0.0
    %2581 = vmatpush1.msra.mxu0 %v2554
    %2582 = vmatprep.subr.mxu0 0.0
    %2583 = vmatpush1.msra.mxu0 %v2555
    %2584 = vmatprep.subr.mxu0 0.0
    %2585 = vmatpush1.msra.mxu0 %v2556
    %2586 = vmatprep.subr.mxu0 0.0
    %2587 = vmatpush1.msra.mxu0 %v2557
    %2588 = vmatprep.subr.mxu0 0.0
    %2589 = vmatpush1.msra.mxu0 %v2558
    %2590 = vmatprep.subr.mxu0 0.0
    %2591 = vmatpush1.msra.mxu0 %v2559
    %2592 = vmatprep.subr.mxu0 0.0
    %2593 = vmatpush1.msra.mxu0 0.0
    %2594 = vmatprep.subr.mxu0 0.0
    %2595 = vmatpush1.msra.mxu0 0.0
    %2596 = vmatprep.subr.mxu0 0.0
    %2597 = vmatpush1.msra.mxu0 0.0
    %2598 = vmatprep.subr.mxu0 0.0
    %2599 = vmatpush1.msra.mxu0 0.0
    %2600 = vmatprep.subr.mxu0 0.0
    %2601 = vmatpush1.msra.mxu0 0.0
    %2602 = vmatprep.subr.mxu0 0.0
    %2603 = vmatpush1.msra.mxu0 0.0
    %2604 = vmatprep.subr.mxu0 0.0
    %2605 = vmatpush1.msra.mxu0 0.0
    %2606 = vmatprep.subr.mxu0 0.0
    %2607 = vmatpush1.msra.mxu0 0.0
    %2608 = vmatprep.subr.mxu0 0.0
    %2609 = vmatpush1.msra.mxu0 0.0
    %2610 = vmatprep.subr.mxu0 0.0
    %2611 = vmatpush1.msra.mxu0 0.0
    %2612 = vmatprep.subr.mxu0 0.0
    %2613 = vmatpush1.msra.mxu0 0.0
    %2614 = vmatprep.subr.mxu0 0.0
    %2615 = vmatpush1.msra.mxu0 0.0
    %2616 = vmatprep.subr.mxu0 0.0
    %2617 = vmatpush1.msra.mxu0 0.0
    %2618 = vmatprep.subr.mxu0 0.0
    %2619 = vmatpush1.msra.mxu0 0.0
    %2620 = vmatprep.subr.mxu0 0.0
    %2621 = vmatpush1.msra.mxu0 0.0
    %2622 = vmatprep.subr.mxu0 0.0
    %2623 = vmatpush1.msra.mxu0 0.0
    %2624 = vmatprep.mubr.f32.mxu0 0.0
    %2625 = vmatmul.mubr.f32.gmra.mrb[0].mxu0 %v2527
    %v2626 = vpop.f32.mrb[0].mxu0
    %v2627 = vadd.f32 0.0, %v2626
    %v2628 = vpop.f32.mrb[0].mxu0
    %2629 = vmatprep.mubr.f32.mxu0 0.0
    %2630 = vmatmul.mubr.f32.gmra.mrb[0].mxu0 %v2528
    %v2631 = vpop.f32.mrb[0].mxu0
    %v2632 = vadd.f32 0.0, %v2631
    %v2633 = vpop.f32.mrb[0].mxu0
    %2634 = vmatprep.mubr.f32.mxu0 0.0
    %2635 = vmatmul.mubr.f32.gmra.mrb[0].mxu0 %v2529
    %v2636 = vpop.f32.mrb[0].mxu0
    %v2637 = vadd.f32 0.0, %v2636
    %v2638 = vpop.f32.mrb[0].mxu0
    %2639 = vmatprep.mubr.f32.mxu0 0.0
    %2640 = vmatmul.mubr.f32.gmra.mrb[0].mxu0 %v2530
    %v2641 = vpop.f32.mrb[0].mxu0
    %v2642 = vadd.f32 0.0, %v2641
    %v2643 = vpop.f32.mrb[0].mxu0
    %2644 = vmatprep.mubr.f32.mxu0 0.0
    %2645 = vmatmul.mubr.f32.gmra.mrb[0].mxu0 %v2531
    %v2646 = vpop.f32.mrb[0].mxu0
    %v2647 = vadd.f32 0.0, %v2646
    %v2648 = vpop.f32.mrb[0].mxu0
    %2649 = vmatprep.mubr.f32.mxu0 0.0
    %2650 = vmatmul.mubr.f32.gmra.mrb[0].mxu0 %v2532
    %v2651 = vpop.f32.mrb[0].mxu0
    %v2652 = vadd.f32 0.0, %v2651
    %v2653 = vpop.f32.mrb[0].mxu0
    %2654 = vmatprep.mubr.f32.mxu0 0.0
    %2655 = vmatmul.mubr.f32.gmra.mrb[0].mxu0 %v2533
    %v2656 = vpop.f32.mrb[0].mxu0
    %v2657 = vadd.f32 0.0, %v2656
    %v2658 = vpop.f32.mrb[0].mxu0
    %2659 = vmatprep.mubr.f32.mxu0 0.0
    %2660 = vmatmul.mubr.f32.gmra.mrb[0].mxu0 %v2534
    %v2661 = vpop.f32.mrb[0].mxu0
    %v2662 = vadd.f32 0.0, %v2661
    %v2663 = vpop.f32.mrb[0].mxu0
    %2664 = vmatprep.mubr.f32.mxu0 0.0
    %2665 = vmatmul.mubr.f32.gmra.mrb[0].mxu0 %v2535
    %v2666 = vpop.f32.mrb[0].mxu0
    %v2667 = vadd.f32 0.0, %v2666
    %v2668 = vpop.f32.mrb[0].mxu0
    %2669 = vmatprep.mubr.f32.mxu0 0.0
    %2670 = vmatmul.mubr.f32.gmra.mrb[0].mxu0 %v2536
    %v2671 = vpop.f32.mrb[0].mxu0
    %v2672 = vadd.f32 0.0, %v2671
    %v2673 = vpop.f32.mrb[0].mxu0
    %2674 = vmatprep.mubr.f32.mxu0 0.0
    %2675 = vmatmul.mubr.f32.gmra.mrb[0].mxu0 %v2537
    %v2676 = vpop.f32.mrb[0].mxu0
    %v2677 = vadd.f32 0.0, %v2676
    %v2678 = vpop.f32.mrb[0].mxu0
    %2679 = vmatprep.mubr.f32.mxu0 0.0
    %2680 = vmatmul.mubr.f32.gmra.mrb[0].mxu0 %v2538
    %v2681 = vpop.f32.mrb[0].mxu0
    %v2682 = vadd.f32 0.0, %v2681
    %v2683 = vpop.f32.mrb[0].mxu0
    %2684 = vmatprep.mubr.f32.mxu0 0.0
    %2685 = vmatmul.mubr.f32.gmra.mrb[0].mxu0 %v2539
    %v2686 = vpop.f32.mrb[0].mxu0
    %v2687 = vadd.f32 0.0, %v2686
    %v2688 = vpop.f32.mrb[0].mxu0
    %2689 = vmatprep.mubr.f32.mxu0 0.0
    %2690 = vmatmul.mubr.f32.gmra.mrb[0].mxu0 %v2540
    %v2691 = vpop.f32.mrb[0].mxu0
    %v2692 = vadd.f32 0.0, %v2691
    %v2693 = vpop.f32.mrb[0].mxu0
    %2694 = vmatprep.mubr.f32.mxu0 0.0
    %2695 = vmatmul.mubr.f32.gmra.mrb[0].mxu0 %v2541
    %v2696 = vpop.f32.mrb[0].mxu0
    %v2697 = vadd.f32 0.0, %v2696
    %v2698 = vpop.f32.mrb[0].mxu0
    %2699 = vmatprep.mubr.f32.mxu0 0.0
    %2700 = vmatmul.mubr.f32.gmra.mrb[0].mxu0 %v2542
    %v2701 = vpop.f32.mrb[0].mxu0
    %v2702 = vadd.f32 0.0, %v2701
    %v2703 = vpop.f32.mrb[0].mxu0
    %2704 = vdwg.mxu0
    %v2705 = vadd.f32 %v2414, %v2627
    %v2706 = vadd.f32 %v2415, %v2632
    %v2707 = vadd.f32 %v2416, %v2637
    %v2708 = vadd.f32 %v2417, %v2642
    %v2709 = vadd.f32 %v2418, %v2647
    %v2710 = vadd.f32 %v2419, %v2652
    %v2711 = vadd.f32 %v2420, %v2657
    %v2712 = vadd.f32 %v2421, %v2662
    %v2713 = vadd.f32 %v2422, %v2667
    %v2714 = vadd.f32 %v2423, %v2672
    %v2715 = vadd.f32 %v2424, %v2677
    %v2716 = vadd.f32 %v2425, %v2682
    %v2717 = vadd.f32 %v2426, %v2687
    %v2718 = vadd.f32 %v2427, %v2692
    %v2719 = vadd.f32 %v2428, %v2697
    %v2720 = vadd.f32 %v2429, %v2702
    %v2721 = vrot.slane %v1438, 2
    %v2722 = vrot.slane %v1439, 2
    %v2723 = vrot.slane %v1440, 2
    %v2724 = vrot.slane %v1441, 2
    %v2725 = vrot.slane %v1442, 2
    %v2726 = vrot.slane %v1443, 2
    %v2727 = vrot.slane %v1444, 2
    %v2728 = vrot.slane %v1445, 2
    %v2729 = vrot.slane %v1446, 2
    %v2730 = vrot.slane %v1447, 2
    %v2731 = vrot.slane %v1448, 2
    %v2732 = vrot.slane %v1449, 2
    %v2733 = vrot.slane %v1450, 2
    %v2734 = vrot.slane %v1451, 2
    %v2735 = vrot.slane %v1452, 2
    %v2736 = vrot.slane %v1453, 2
    %vm2737 = vcmp.lt.s32.totalorder %v1455, 6
    %v2738 = vsel %vm2737, %v2735, %v2736
    %v2739 = vsel %vm2737, %v2734, %v2735
    %v2740 = vsel %vm2737, %v2733, %v2734
    %v2741 = vsel %vm2737, %v2732, %v2733
    %v2742 = vsel %vm2737, %v2731, %v2732
    %v2743 = vsel %vm2737, %v2730, %v2731
    %v2744 = vsel %vm2737, %v2729, %v2730
    %v2745 = vsel %vm2737, %v2728, %v2729
    %v2746 = vsel %vm2737, %v2727, %v2728
    %v2747 = vsel %vm2737, %v2726, %v2727
    %v2748 = vsel %vm2737, %v2725, %v2726
    %v2749 = vsel %vm2737, %v2724, %v2725
    %v2750 = vsel %vm2737, %v2723, %v2724
    %v2751 = vsel %vm2737, %v2722, %v2723
    %v2752 = vsel %vm2737, %v2721, %v2722
    %v2753 = vsel %vm2737, %v2736, %v2721
    %v2754 = vadd.s32 %v1647, 2
    %v2755 = vadd.s32 %v1648, 2
    %v2756 = vadd.s32 %v1649, 2
    %v2757 = vadd.s32 %v1650, 2
    %v2758 = vadd.s32 %v1651, 2
    %v2759 = vadd.s32 %v1652, 2
    %v2760 = vadd.s32 %v1653, 2
    %v2761 = vadd.s32 %v1654, 2
    %v2762 = vadd.s32 %v1655, 2
    %v2763 = vadd.s32 %v1656, 2
    %v2764 = vadd.s32 %v1657, 2
    %v2765 = vadd.s32 %v1658, 2
    %v2766 = vadd.s32 %v1659, 2
    %v2767 = vadd.s32 %v1660, 2
    %v2768 = vadd.s32 %v1661, 2
    %v2769 = vadd.s32 %v1662, 2
    %vm2770 = vcmp.ge.s32.totalorder %v2754, 0
    %vm2771 = vcmp.ge.s32.totalorder %v2755, 0
    %vm2772 = vcmp.ge.s32.totalorder %v2756, 0
    %vm2773 = vcmp.ge.s32.totalorder %v2757, 0
    %vm2774 = vcmp.ge.s32.totalorder %v2758, 0
    %vm2775 = vcmp.ge.s32.totalorder %v2759, 0
    %vm2776 = vcmp.ge.s32.totalorder %v2760, 0
    %vm2777 = vcmp.ge.s32.totalorder %v2761, 0
    %vm2778 = vcmp.ge.s32.totalorder %v2762, 0
    %vm2779 = vcmp.ge.s32.totalorder %v2763, 0
    %vm2780 = vcmp.ge.s32.totalorder %v2764, 0
    %vm2781 = vcmp.ge.s32.totalorder %v2765, 0
    %vm2782 = vcmp.ge.s32.totalorder %v2766, 0
    %vm2783 = vcmp.ge.s32.totalorder %v2767, 0
    %vm2784 = vcmp.ge.s32.totalorder %v2768, 0
    %vm2785 = vcmp.ge.s32.totalorder %v2769, 0
    %vm2786 = vcmp.lt.s32.totalorder %v2754, 32
    %vm2787 = vcmp.lt.s32.totalorder %v2755, 32
    %vm2788 = vcmp.lt.s32.totalorder %v2756, 32
    %vm2789 = vcmp.lt.s32.totalorder %v2757, 32
    %vm2790 = vcmp.lt.s32.totalorder %v2758, 32
    %vm2791 = vcmp.lt.s32.totalorder %v2759, 32
    %vm2792 = vcmp.lt.s32.totalorder %v2760, 32
    %vm2793 = vcmp.lt.s32.totalorder %v2761, 32
    %vm2794 = vcmp.lt.s32.totalorder %v2762, 32
    %vm2795 = vcmp.lt.s32.totalorder %v2763, 32
    %vm2796 = vcmp.lt.s32.totalorder %v2764, 32
    %vm2797 = vcmp.lt.s32.totalorder %v2765, 32
    %vm2798 = vcmp.lt.s32.totalorder %v2766, 32
    %vm2799 = vcmp.lt.s32.totalorder %v2767, 32
    %vm2800 = vcmp.lt.s32.totalorder %v2768, 32
    %vm2801 = vcmp.lt.s32.totalorder %v2769, 32
    %vm2802 = vmand %vm2770, %vm2786
    %vm2803 = vmand %vm2771, %vm2787
    %vm2804 = vmand %vm2772, %vm2788
    %vm2805 = vmand %vm2773, %vm2789
    %vm2806 = vmand %vm2774, %vm2790
    %vm2807 = vmand %vm2775, %vm2791
    %vm2808 = vmand %vm2776, %vm2792
    %vm2809 = vmand %vm2777, %vm2793
    %vm2810 = vmand %vm2778, %vm2794
    %vm2811 = vmand %vm2779, %vm2795
    %vm2812 = vmand %vm2780, %vm2796
    %vm2813 = vmand %vm2781, %vm2797
    %vm2814 = vmand %vm2782, %vm2798
    %vm2815 = vmand %vm2783, %vm2799
    %vm2816 = vmand %vm2784, %vm2800
    %vm2817 = vmand %vm2785, %vm2801
    %v2818 = vsel %vm2802, %v2752, 0.0
    %v2819 = vsel %vm2803, %v2751, 0.0
    %v2820 = vsel %vm2804, %v2750, 0.0
    %v2821 = vsel %vm2805, %v2749, 0.0
    %v2822 = vsel %vm2806, %v2748, 0.0
    %v2823 = vsel %vm2807, %v2747, 0.0
    %v2824 = vsel %vm2808, %v2746, 0.0
    %v2825 = vsel %vm2809, %v2745, 0.0
    %v2826 = vsel %vm2810, %v2744, 0.0
    %v2827 = vsel %vm2811, %v2743, 0.0
    %v2828 = vsel %vm2812, %v2742, 0.0
    %v2829 = vsel %vm2813, %v2741, 0.0
    %v2830 = vsel %vm2814, %v2740, 0.0
    %v2831 = vsel %vm2815, %v2739, 0.0
    %v2832 = vsel %vm2816, %v2738, 0.0
    %v2833 = vsel %vm2817, %v2753, 0.0
    %s2834 = scalar_lea.vmem [#allocation2], 512
    %v2835 = vld [vmem:[%s2834] sm:$0xff]
    %v2836 = vld [vmem:[%s2834 + $0x8] sm:$0xff]
    %v2837 = vld [vmem:[%s2834 + $0x10] sm:$0xff]
    %v2838 = vld [vmem:[%s2834 + $0x18] sm:$0xff]
    %v2839 = vld [vmem:[%s2834 + $0x20] sm:$0xff]
    %v2840 = vld [vmem:[%s2834 + $0x28] sm:$0xff]
    %v2841 = vld [vmem:[%s2834 + $0x30] sm:$0xff]
    %v2842 = vld [vmem:[%s2834 + $0x38] sm:$0xff]
    %v2843 = vld [vmem:[%s2834 + $0x40] sm:$0xff]
    %v2844 = vld [vmem:[%s2834 + $0x48] sm:$0xff]
    %v2845 = vld [vmem:[%s2834 + $0x50] sm:$0xff]
    %v2846 = vld [vmem:[%s2834 + $0x58] sm:$0xff]
    %v2847 = vld [vmem:[%s2834 + $0x60] sm:$0xff]
    %v2848 = vld [vmem:[%s2834 + $0x68] sm:$0xff]
    %v2849 = vld [vmem:[%s2834 + $0x70] sm:$0xff]
    %v2850 = vld [vmem:[%s2834 + $0x78] sm:$0xff]
    %2851 = vmatprep.subr.mxu0 0.0
    %2852 = vmatpush1.msra.mxu0 %v2835
    %2853 = vmatprep.subr.mxu0 0.0
    %2854 = vmatpush1.msra.mxu0 %v2836
    %2855 = vmatprep.subr.mxu0 0.0
    %2856 = vmatpush1.msra.mxu0 %v2837
    %2857 = vmatprep.subr.mxu0 0.0
    %2858 = vmatpush1.msra.mxu0 %v2838
    %2859 = vmatprep.subr.mxu0 0.0
    %2860 = vmatpush1.msra.mxu0 %v2839
    %2861 = vmatprep.subr.mxu0 0.0
    %2862 = vmatpush1.msra.mxu0 %v2840
    %2863 = vmatprep.subr.mxu0 0.0
    %2864 = vmatpush1.msra.mxu0 %v2841
    %2865 = vmatprep.subr.mxu0 0.0
    %2866 = vmatpush1.msra.mxu0 %v2842
    %2867 = vmatprep.subr.mxu0 0.0
    %2868 = vmatpush1.msra.mxu0 %v2843
    %2869 = vmatprep.subr.mxu0 0.0
    %2870 = vmatpush1.msra.mxu0 %v2844
    %2871 = vmatprep.subr.mxu0 0.0
    %2872 = vmatpush1.msra.mxu0 %v2845
    %2873 = vmatprep.subr.mxu0 0.0
    %2874 = vmatpush1.msra.mxu0 %v2846
    %2875 = vmatprep.subr.mxu0 0.0
    %2876 = vmatpush1.msra.mxu0 %v2847
    %2877 = vmatprep.subr.mxu0 0.0
    %2878 = vmatpush1.msra.mxu0 %v2848
    %2879 = vmatprep.subr.mxu0 0.0
    %2880 = vmatpush1.msra.mxu0 %v2849
    %2881 = vmatprep.subr.mxu0 0.0
    %2882 = vmatpush1.msra.mxu0 %v2850
    %2883 = vmatprep.subr.mxu0 0.0
    %2884 = vmatpush1.msra.mxu0 0.0
    %2885 = vmatprep.subr.mxu0 0.0
    %2886 = vmatpush1.msra.mxu0 0.0
    %2887 = vmatprep.subr.mxu0 0.0
    %2888 = vmatpush1.msra.mxu0 0.0
    %2889 = vmatprep.subr.mxu0 0.0
    %2890 = vmatpush1.msra.mxu0 0.0
    %2891 = vmatprep.subr.mxu0 0.0
    %2892 = vmatpush1.msra.mxu0 0.0
    %2893 = vmatprep.subr.mxu0 0.0
    %2894 = vmatpush1.msra.mxu0 0.0
    %2895 = vmatprep.subr.mxu0 0.0
    %2896 = vmatpush1.msra.mxu0 0.0
    %2897 = vmatprep.subr.mxu0 0.0
    %2898 = vmatpush1.msra.mxu0 0.0
    %2899 = vmatprep.subr.mxu0 0.0
    %2900 = vmatpush1.msra.mxu0 0.0
    %2901 = vmatprep.subr.mxu0 0.0
    %2902 = vmatpush1.msra.mxu0 0.0
    %2903 = vmatprep.subr.mxu0 0.0
    %2904 = vmatpush1.msra.mxu0 0.0
    %2905 = vmatprep.subr.mxu0 0.0
    %2906 = vmatpush1.msra.mxu0 0.0
    %2907 = vmatprep.subr.mxu0 0.0
    %2908 = vmatpush1.msra.mxu0 0.0
    %2909 = vmatprep.subr.mxu0 0.0
    %2910 = vmatpush1.msra.mxu0 0.0
    %2911 = vmatprep.subr.mxu0 0.0
    %2912 = vmatpush1.msra.mxu0 0.0
    %2913 = vmatprep.subr.mxu0 0.0
    %2914 = vmatpush1.msra.mxu0 0.0
    %2915 = vmatprep.mubr.f32.mxu0 0.0
    %2916 = vmatmul.mubr.f32.gmra.mrb[0].mxu0 %v2818
    %v2917 = vpop.f32.mrb[0].mxu0
    %v2918 = vadd.f32 0.0, %v2917
    %v2919 = vpop.f32.mrb[0].mxu0
    %2920 = vmatprep.mubr.f32.mxu0 0.0
    %2921 = vmatmul.mubr.f32.gmra.mrb[0].mxu0 %v2819
    %v2922 = vpop.f32.mrb[0].mxu0
    %v2923 = vadd.f32 0.0, %v2922
    %v2924 = vpop.f32.mrb[0].mxu0
    %2925 = vmatprep.mubr.f32.mxu0 0.0
    %2926 = vmatmul.mubr.f32.gmra.mrb[0].mxu0 %v2820
    %v2927 = vpop.f32.mrb[0].mxu0
    %v2928 = vadd.f32 0.0, %v2927
    %v2929 = vpop.f32.mrb[0].mxu0
    %2930 = vmatprep.mubr.f32.mxu0 0.0
    %2931 = vmatmul.mubr.f32.gmra.mrb[0].mxu0 %v2821
    %v2932 = vpop.f32.mrb[0].mxu0
    %v2933 = vadd.f32 0.0, %v2932
    %v2934 = vpop.f32.mrb[0].mxu0
    %2935 = vmatprep.mubr.f32.mxu0 0.0
    %2936 = vmatmul.mubr.f32.gmra.mrb[0].mxu0 %v2822
    %v2937 = vpop.f32.mrb[0].mxu0
    %v2938 = vadd.f32 0.0, %v2937
    %v2939 = vpop.f32.mrb[0].mxu0
    %2940 = vmatprep.mubr.f32.mxu0 0.0
    %2941 = vmatmul.mubr.f32.gmra.mrb[0].mxu0 %v2823
    %v2942 = vpop.f32.mrb[0].mxu0
    %v2943 = vadd.f32 0.0, %v2942
    %v2944 = vpop.f32.mrb[0].mxu0
    %2945 = vmatprep.mubr.f32.mxu0 0.0
    %2946 = vmatmul.mubr.f32.gmra.mrb[0].mxu0 %v2824
    %v2947 = vpop.f32.mrb[0].mxu0
    %v2948 = vadd.f32 0.0, %v2947
    %v2949 = vpop.f32.mrb[0].mxu0
    %2950 = vmatprep.mubr.f32.mxu0 0.0
    %2951 = vmatmul.mubr.f32.gmra.mrb[0].mxu0 %v2825
    %v2952 = vpop.f32.mrb[0].mxu0
    %v2953 = vadd.f32 0.0, %v2952
    %v2954 = vpop.f32.mrb[0].mxu0
    %2955 = vmatprep.mubr.f32.mxu0 0.0
    %2956 = vmatmul.mubr.f32.gmra.mrb[0].mxu0 %v2826
    %v2957 = vpop.f32.mrb[0].mxu0
    %v2958 = vadd.f32 0.0, %v2957
    %v2959 = vpop.f32.mrb[0].mxu0
    %2960 = vmatprep.mubr.f32.mxu0 0.0
    %2961 = vmatmul.mubr.f32.gmra.mrb[0].mxu0 %v2827
    %v2962 = vpop.f32.mrb[0].mxu0
    %v2963 = vadd.f32 0.0, %v2962
    %v2964 = vpop.f32.mrb[0].mxu0
    %2965 = vmatprep.mubr.f32.mxu0 0.0
    %2966 = vmatmul.mubr.f32.gmra.mrb[0].mxu0 %v2828
    %v2967 = vpop.f32.mrb[0].mxu0
    %v2968 = vadd.f32 0.0, %v2967
    %v2969 = vpop.f32.mrb[0].mxu0
    %2970 = vmatprep.mubr.f32.mxu0 0.0
    %2971 = vmatmul.mubr.f32.gmra.mrb[0].mxu0 %v2829
    %v2972 = vpop.f32.mrb[0].mxu0
    %v2973 = vadd.f32 0.0, %v2972
    %v2974 = vpop.f32.mrb[0].mxu0
    %2975 = vmatprep.mubr.f32.mxu0 0.0
    %2976 = vmatmul.mubr.f32.gmra.mrb[0].mxu0 %v2830
    %v2977 = vpop.f32.mrb[0].mxu0
    %v2978 = vadd.f32 0.0, %v2977
    %v2979 = vpop.f32.mrb[0].mxu0
    %2980 = vmatprep.mubr.f32.mxu0 0.0
    %2981 = vmatmul.mubr.f32.gmra.mrb[0].mxu0 %v2831
    %v2982 = vpop.f32.mrb[0].mxu0
    %v2983 = vadd.f32 0.0, %v2982
    %v2984 = vpop.f32.mrb[0].mxu0
    %2985 = vmatprep.mubr.f32.mxu0 0.0
    %2986 = vmatmul.mubr.f32.gmra.mrb[0].mxu0 %v2832
    %v2987 = vpop.f32.mrb[0].mxu0
    %v2988 = vadd.f32 0.0, %v2987
    %v2989 = vpop.f32.mrb[0].mxu0
    %2990 = vmatprep.mubr.f32.mxu0 0.0
    %2991 = vmatmul.mubr.f32.gmra.mrb[0].mxu0 %v2833
    %v2992 = vpop.f32.mrb[0].mxu0
    %v2993 = vadd.f32 0.0, %v2992
    %v2994 = vpop.f32.mrb[0].mxu0
    %2995 = vdwg.mxu0
    %v2996 = vadd.f32 %v2705, %v2918
    %v2997 = vadd.f32 %v2706, %v2923
    %v2998 = vadd.f32 %v2707, %v2928
    %v2999 = vadd.f32 %v2708, %v2933
    %v3000 = vadd.f32 %v2709, %v2938
    %v3001 = vadd.f32 %v2710, %v2943
    %v3002 = vadd.f32 %v2711, %v2948
    %v3003 = vadd.f32 %v2712, %v2953
    %v3004 = vadd.f32 %v2713, %v2958
    %v3005 = vadd.f32 %v2714, %v2963
    %v3006 = vadd.f32 %v2715, %v2968
    %v3007 = vadd.f32 %v2716, %v2973
    %v3008 = vadd.f32 %v2717, %v2978
    %v3009 = vadd.f32 %v2718, %v2983
    %v3010 = vadd.f32 %v2719, %v2988
    %v3011 = vadd.f32 %v2720, %v2993
    %v3012 = vadd.f32 %v2996, %v2997
    %v3013 = vadd.f32 %v3012, %v2998
    %v3014 = vadd.f32 %v3013, %v2999
    %v3015 = vrot.slane %v3014, 4
    %v3016 = vadd.f32 %v3014, %v3015
    %v3017 = vrot.slane %v3016, 2
    %v3018 = vadd.f32 %v3016, %v3017
    %v3019 = vrot.slane %v3018, 1
    %v3020 = vadd.f32 %v3018, %v3019
    %v3021 = vadd.f32 %v3000, %v3001
    %v3022 = vadd.f32 %v3021, %v3002
    %v3023 = vadd.f32 %v3022, %v3003
    %v3024 = vrot.slane %v3023, 4
    %v3025 = vadd.f32 %v3023, %v3024
    %v3026 = vrot.slane %v3025, 2
    %v3027 = vadd.f32 %v3025, %v3026
    %v3028 = vrot.slane %v3027, 1
    %v3029 = vadd.f32 %v3027, %v3028
    %v3030 = vadd.f32 %v3004, %v3005
    %v3031 = vadd.f32 %v3030, %v3006
    %v3032 = vadd.f32 %v3031, %v3007
    %v3033 = vrot.slane %v3032, 4
    %v3034 = vadd.f32 %v3032, %v3033
    %v3035 = vrot.slane %v3034, 2
    %v3036 = vadd.f32 %v3034, %v3035
    %v3037 = vrot.slane %v3036, 1
    %v3038 = vadd.f32 %v3036, %v3037
    %v3039 = vadd.f32 %v3008, %v3009
    %v3040 = vadd.f32 %v3039, %v3010
    %v3041 = vadd.f32 %v3040, %v3011
    %v3042 = vrot.slane %v3041, 4
    %v3043 = vadd.f32 %v3041, %v3042
    %v3044 = vrot.slane %v3043, 2
    %v3045 = vadd.f32 %v3043, %v3044
    %v3046 = vrot.slane %v3045, 1
    %v3047 = vadd.f32 %v3045, %v3046
    %v3048 = vmul.f32 %v2996, %v2996
    %v3049 = vmul.f32 %v2997, %v2997
    %v3050 = vmul.f32 %v2998, %v2998
    %v3051 = vmul.f32 %v2999, %v2999
    %v3052 = vmul.f32 %v3000, %v3000
    %v3053 = vmul.f32 %v3001, %v3001
    %v3054 = vmul.f32 %v3002, %v3002
    %v3055 = vmul.f32 %v3003, %v3003
    %v3056 = vmul.f32 %v3004, %v3004
    %v3057 = vmul.f32 %v3005, %v3005
    %v3058 = vmul.f32 %v3006, %v3006
    %v3059 = vmul.f32 %v3007, %v3007
    %v3060 = vmul.f32 %v3008, %v3008
    %v3061 = vmul.f32 %v3009, %v3009
    %v3062 = vmul.f32 %v3010, %v3010
    %v3063 = vmul.f32 %v3011, %v3011
    %v3064 = vadd.f32 %v3048, %v3049
    %v3065 = vadd.f32 %v3064, %v3050
    %v3066 = vadd.f32 %v3065, %v3051
    %v3067 = vrot.slane %v3066, 4
    %v3068 = vadd.f32 %v3066, %v3067
    %v3069 = vrot.slane %v3068, 2
    %v3070 = vadd.f32 %v3068, %v3069
    %v3071 = vrot.slane %v3070, 1
    %v3072 = vadd.f32 %v3070, %v3071
    %v3073 = vadd.f32 %v3052, %v3053
    %v3074 = vadd.f32 %v3073, %v3054
    %v3075 = vadd.f32 %v3074, %v3055
    %v3076 = vrot.slane %v3075, 4
    %v3077 = vadd.f32 %v3075, %v3076
    %v3078 = vrot.slane %v3077, 2
    %v3079 = vadd.f32 %v3077, %v3078
    %v3080 = vrot.slane %v3079, 1
    %v3081 = vadd.f32 %v3079, %v3080
    %v3082 = vadd.f32 %v3056, %v3057
    %v3083 = vadd.f32 %v3082, %v3058
    %v3084 = vadd.f32 %v3083, %v3059
    %v3085 = vrot.slane %v3084, 4
    %v3086 = vadd.f32 %v3084, %v3085
    %v3087 = vrot.slane %v3086, 2
    %v3088 = vadd.f32 %v3086, %v3087
    %v3089 = vrot.slane %v3088, 1
    %v3090 = vadd.f32 %v3088, %v3089
    %v3091 = vadd.f32 %v3060, %v3061
    %v3092 = vadd.f32 %v3091, %v3062
    %v3093 = vadd.f32 %v3092, %v3063
    %v3094 = vrot.slane %v3093, 4
    %v3095 = vadd.f32 %v3093, %v3094
    %v3096 = vrot.slane %v3095, 2
    %v3097 = vadd.f32 %v3095, %v3096
    %v3098 = vrot.slane %v3097, 1
    %v3099 = vadd.f32 %v3097, %v3098
    %v3104 = vsel %vm625, %v3029, %v3020
    %v3105 = vsel %vm627, %v3038, %v3104
    %v3106 = vsel %vm629, %v3047, %v3105
    %v3112 = vsel %vm636, %v3081, %v3072
    %v3113 = vsel %vm638, %v3090, %v3112
    %v3114 = vsel %vm640, %v3099, %v3113
    %v3116 = vsel %vm643, %v3106, %v3114
    %3117 = vmatprep.subr.mxu0 0.0
    %3118 = vmatpush1.msra.mxu0 %v645
    %3119 = vmatprep.subr.mxu0 0.0
    %3120 = vmatpush1.msra.mxu0 %v646
    %3121 = vmatprep.subr.mxu0 0.0
    %3122 = vmatpush1.msra.mxu0 %v647
    %3123 = vmatprep.subr.mxu0 0.0
    %3124 = vmatpush1.msra.mxu0 %v648
    %3125 = vmatprep.subr.mxu0 0.0
    %3126 = vmatpush1.msra.mxu0 %v649
    %3127 = vmatprep.subr.mxu0 0.0
    %3128 = vmatpush1.msra.mxu0 %v650
    %3129 = vmatprep.subr.mxu0 0.0
    %3130 = vmatpush1.msra.mxu0 %v651
    %3131 = vmatprep.subr.mxu0 0.0
    %3132 = vmatpush1.msra.mxu0 %v652
    %3133 = vmatprep.subr.mxu0 0.0
    %3134 = vmatpush1.msra.mxu0 %v653
    %3135 = vmatprep.subr.mxu0 0.0
    %3136 = vmatpush1.msra.mxu0 %v654
    %3137 = vmatprep.subr.mxu0 0.0
    %3138 = vmatpush1.msra.mxu0 %v655
    %3139 = vmatprep.subr.mxu0 0.0
    %3140 = vmatpush1.msra.mxu0 %v656
    %3141 = vmatprep.subr.mxu0 0.0
    %3142 = vmatpush1.msra.mxu0 %v657
    %3143 = vmatprep.subr.mxu0 0.0
    %3144 = vmatpush1.msra.mxu0 %v658
    %3145 = vmatprep.subr.mxu0 0.0
    %3146 = vmatpush1.msra.mxu0 %v659
    %3147 = vmatprep.subr.mxu0 0.0
    %3148 = vmatpush1.msra.mxu0 %v660
    %3149 = vmatprep.subr.mxu0 0.0
    %3150 = vmatpush1.msra.mxu0 0.0
    %3151 = vmatprep.subr.mxu0 0.0
    %3152 = vmatpush1.msra.mxu0 0.0
    %3153 = vmatprep.subr.mxu0 0.0
    %3154 = vmatpush1.msra.mxu0 0.0
    %3155 = vmatprep.subr.mxu0 0.0
    %3156 = vmatpush1.msra.mxu0 0.0
    %3157 = vmatprep.subr.mxu0 0.0
    %3158 = vmatpush1.msra.mxu0 0.0
    %3159 = vmatprep.subr.mxu0 0.0
    %3160 = vmatpush1.msra.mxu0 0.0
    %3161 = vmatprep.subr.mxu0 0.0
    %3162 = vmatpush1.msra.mxu0 0.0
    %3163 = vmatprep.subr.mxu0 0.0
    %3164 = vmatpush1.msra.mxu0 0.0
    %3165 = vmatprep.subr.mxu0 0.0
    %3166 = vmatpush1.msra.mxu0 0.0
    %3167 = vmatprep.subr.mxu0 0.0
    %3168 = vmatpush1.msra.mxu0 0.0
    %3169 = vmatprep.subr.mxu0 0.0
    %3170 = vmatpush1.msra.mxu0 0.0
    %3171 = vmatprep.subr.mxu0 0.0
    %3172 = vmatpush1.msra.mxu0 0.0
    %3173 = vmatprep.subr.mxu0 0.0
    %3174 = vmatpush1.msra.mxu0 0.0
    %3175 = vmatprep.subr.mxu0 0.0
    %3176 = vmatpush1.msra.mxu0 0.0
    %3177 = vmatprep.subr.mxu0 0.0
    %3178 = vmatpush1.msra.mxu0 0.0
    %3179 = vmatprep.subr.mxu0 0.0
    %3180 = vmatpush1.msra.mxu0 0.0
    %3181 = vmatprep.mubr.f32.mxu0 0.0
    %3182 = vmatmul.mubr.f32.gmra.mrb[0].mxu0 %v3116
    %v3183 = vpop.f32.mrb[0].mxu0
    %v3184 = vadd.f32 0.0, %v3183
    %v3185 = vpop.f32.mrb[0].mxu0
    %3186 = vdwg.mxu0
    %v3187 = vmul.f32 %v3184, 0.001953125
    %v3188 = vmul.f32 %v3187, %v3187
    %v3190 = vrot.slane %v3188, 4
    %v3192 = vsub.f32 %v3187, %v3190
    %v3193 = vadd.f32 %v3192, 1e-05
    %v3194 = vrsqrt.pop %v3193
    %v3195 = vsel %vm643, %v3187, %v3194
    %v3197 = vsel %vm741, %v3195, 0
    %3199 = vmatprep.subr.mxu0 0.0
    %3200 = vmatpush1.msra.mxu0 %v740
    %3201 = vmatprep.subr.mxu0 0.0
    %3202 = vmatpush1.msra.mxu0 0.0
    %3203 = vmatprep.subr.mxu0 0.0
    %3204 = vmatpush1.msra.mxu0 0.0
    %3205 = vmatprep.subr.mxu0 0.0
    %3206 = vmatpush1.msra.mxu0 0.0
    %3207 = vmatprep.subr.mxu0 0.0
    %3208 = vmatpush1.msra.mxu0 0.0
    %3209 = vmatprep.subr.mxu0 0.0
    %3210 = vmatpush1.msra.mxu0 0.0
    %3211 = vmatprep.subr.mxu0 0.0
    %3212 = vmatpush1.msra.mxu0 0.0
    %3213 = vmatprep.subr.mxu0 0.0
    %3214 = vmatpush1.msra.mxu0 0.0
    %3215 = vmatprep.subr.mxu0 0.0
    %3216 = vmatpush1.msra.mxu0 0.0
    %3217 = vmatprep.subr.mxu0 0.0
    %3218 = vmatpush1.msra.mxu0 0.0
    %3219 = vmatprep.subr.mxu0 0.0
    %3220 = vmatpush1.msra.mxu0 0.0
    %3221 = vmatprep.subr.mxu0 0.0
    %3222 = vmatpush1.msra.mxu0 0.0
    %3223 = vmatprep.subr.mxu0 0.0
    %3224 = vmatpush1.msra.mxu0 0.0
    %3225 = vmatprep.subr.mxu0 0.0
    %3226 = vmatpush1.msra.mxu0 0.0
    %3227 = vmatprep.subr.mxu0 0.0
    %3228 = vmatpush1.msra.mxu0 0.0
    %3229 = vmatprep.subr.mxu0 0.0
    %3230 = vmatpush1.msra.mxu0 0.0
    %3231 = vmatprep.subr.mxu0 0.0
    %3232 = vmatpush1.msra.mxu0 0.0
    %3233 = vmatprep.subr.mxu0 0.0
    %3234 = vmatpush1.msra.mxu0 0.0
    %3235 = vmatprep.subr.mxu0 0.0
    %3236 = vmatpush1.msra.mxu0 0.0
    %3237 = vmatprep.subr.mxu0 0.0
    %3238 = vmatpush1.msra.mxu0 0.0
    %3239 = vmatprep.subr.mxu0 0.0
    %3240 = vmatpush1.msra.mxu0 0.0
    %3241 = vmatprep.subr.mxu0 0.0
    %3242 = vmatpush1.msra.mxu0 0.0
    %3243 = vmatprep.subr.mxu0 0.0
    %3244 = vmatpush1.msra.mxu0 0.0
    %3245 = vmatprep.subr.mxu0 0.0
    %3246 = vmatpush1.msra.mxu0 0.0
    %3247 = vmatprep.subr.mxu0 0.0
    %3248 = vmatpush1.msra.mxu0 0.0
    %3249 = vmatprep.subr.mxu0 0.0
    %3250 = vmatpush1.msra.mxu0 0.0
    %3251 = vmatprep.subr.mxu0 0.0
    %3252 = vmatpush1.msra.mxu0 0.0
    %3253 = vmatprep.subr.mxu0 0.0
    %3254 = vmatpush1.msra.mxu0 0.0
    %3255 = vmatprep.subr.mxu0 0.0
    %3256 = vmatpush1.msra.mxu0 0.0
    %3257 = vmatprep.subr.mxu0 0.0
    %3258 = vmatpush1.msra.mxu0 0.0
    %3259 = vmatprep.subr.mxu0 0.0
    %3260 = vmatpush1.msra.mxu0 0.0
    %3261 = vmatprep.subr.mxu0 0.0
    %3262 = vmatpush1.msra.mxu0 0.0
    %3263 = vmatprep.mubr.f32.mxu0 0.0
    %3264 = vmatmul.mubr.f32.gmra.mrb[0].mxu0 %v3197
    %v3265 = vpop.f32.mrb[0].mxu0
    %v3266 = vadd.f32 0.0, %v3265
    %v3267 = vpop.f32.mrb[0].mxu0
    %3268 = vdwg.mxu0
    %v3269 = vld [vmem:[%s11] sm:$0x1]
    %v3271 = vlaneseq
    %v3272 = vshrl.u32 %v3271, 7
    %v3273 = vsub.s32 0, %v3272
    %v3274 = vrot.slane %v3269, %v3273
    %v3276 = vmul.f32 %v3266, %v3274
    %v3277 = vld [vmem:[%s12] sm:$0x1]
    %v3279 = vrot.slane %v3276, 4
    %v3281 = vmul.f32 %v3266, %v3279
    %v3283 = vlaneseq
    %v3284 = vshrl.u32 %v3283, 7
    %v3285 = vsub.s32 0, %v3284
    %v3286 = vrot.slane %v3277, %v3285
    %v3288 = vsub.f32 %v3286, %v3281
    %v3289 = vcombine.high %v3276, %v3276
    %v3291 = vunpack.c.l.s4 1966171168
    %v3292 = vunpack.c.0.s8 %v3291
    %v3293 = vlaneseq
    %v3294 = vshrl.u32 %v3293, 7
    %v3295 = vsub.s32 %v3292, %v3294
    %v3296 = vrot.slane %v3289, %v3295
    %v3297 = vcombine.high %v3296, %v3296
    %v3299 = vunpack.c.l.s4 1966171168
    %v3300 = vunpack.c.0.s8 %v3299
    %v3301 = vlaneseq
    %v3302 = vshrl.u32 %v3301, 7
    %v3303 = vsub.s32 %v3300, %v3302
    %v3304 = vrot.slane %v3296, %v3303
    %v3306 = vunpack.c.l.s4 1966171168
    %v3307 = vunpack.c.0.s8 %v3306
    %v3308 = vlaneseq
    %v3309 = vshrl.u32 %v3308, 7
    %v3310 = vsub.s32 %v3307, %v3309
    %v3311 = vrot.slane %v3297, %v3310
    %v3312 = vcombine.high %v3304, %v3304
    %v3313 = vcombine.high %v3311, %v3311
    %v3314 = vlaneseq
    %v3315 = vshrl.u32 %v3314, 7
    %v3316 = vsub.s32 0, %v3315
    %v3317 = vrot.slane %v3304, %v3316
    %v3318 = vlaneseq
    %v3319 = vshrl.u32 %v3318, 7
    %v3320 = vsub.s32 0, %v3319
    %v3321 = vrot.slane %v3311, %v3320
    %v3322 = vlaneseq
    %v3323 = vshrl.u32 %v3322, 7
    %v3324 = vsub.s32 0, %v3323
    %v3325 = vrot.slane %v3312, %v3324
    %v3326 = vlaneseq
    %v3327 = vshrl.u32 %v3326, 7
    %v3328 = vsub.s32 0, %v3327
    %v3329 = vrot.slane %v3313, %v3328
    %v3334 = vmul.f32 %v2996, %v3317
    %v3335 = vmul.f32 %v2997, %v3317
    %v3336 = vmul.f32 %v2998, %v3317
    %v3337 = vmul.f32 %v2999, %v3317
    %v3338 = vmul.f32 %v3000, %v3321
    %v3339 = vmul.f32 %v3001, %v3321
    %v3340 = vmul.f32 %v3002, %v3321
    %v3341 = vmul.f32 %v3003, %v3321
    %v3342 = vmul.f32 %v3004, %v3325
    %v3343 = vmul.f32 %v3005, %v3325
    %v3344 = vmul.f32 %v3006, %v3325
    %v3345 = vmul.f32 %v3007, %v3325
    %v3346 = vmul.f32 %v3008, %v3329
    %v3347 = vmul.f32 %v3009, %v3329
    %v3348 = vmul.f32 %v3010, %v3329
    %v3349 = vmul.f32 %v3011, %v3329
    %v3352 = vunpack.c.l.s4 1966171168
    %v3353 = vunpack.c.0.s8 %v3352
    %v3354 = vlaneseq
    %v3355 = vshrl.u32 %v3354, 7
    %v3356 = vsub.s32 %v3353, %v3355
    %v3357 = vrot.slane %v3288, %v3356
    %v3358 = vcombine.high %v3357, %v3357
    %v3360 = vunpack.c.l.s4 1966171168
    %v3361 = vunpack.c.0.s8 %v3360
    %v3362 = vlaneseq
    %v3363 = vshrl.u32 %v3362, 7
    %v3364 = vsub.s32 %v3361, %v3363
    %v3365 = vrot.slane %v3357, %v3364
    %v3367 = vunpack.c.l.s4 1966171168
    %v3368 = vunpack.c.0.s8 %v3367
    %v3369 = vlaneseq
    %v3370 = vshrl.u32 %v3369, 7
    %v3371 = vsub.s32 %v3368, %v3370
    %v3372 = vrot.slane %v3358, %v3371
    %v3373 = vcombine.high %v3365, %v3365
    %v3374 = vcombine.high %v3372, %v3372
    %v3375 = vlaneseq
    %v3376 = vshrl.u32 %v3375, 7
    %v3377 = vsub.s32 0, %v3376
    %v3378 = vrot.slane %v3365, %v3377
    %v3379 = vlaneseq
    %v3380 = vshrl.u32 %v3379, 7
    %v3381 = vsub.s32 0, %v3380
    %v3382 = vrot.slane %v3372, %v3381
    %v3383 = vlaneseq
    %v3384 = vshrl.u32 %v3383, 7
    %v3385 = vsub.s32 0, %v3384
    %v3386 = vrot.slane %v3373, %v3385
    %v3387 = vlaneseq
    %v3388 = vshrl.u32 %v3387, 7
    %v3389 = vsub.s32 0, %v3388
    %v3390 = vrot.slane %v3374, %v3389
    %v3395 = vadd.f32 %v3334, %v3378
    %v3396 = vadd.f32 %v3335, %v3378
    %v3397 = vadd.f32 %v3336, %v3378
    %v3398 = vadd.f32 %v3337, %v3378
    %v3399 = vadd.f32 %v3338, %v3382
    %v3400 = vadd.f32 %v3339, %v3382
    %v3401 = vadd.f32 %v3340, %v3382
    %v3402 = vadd.f32 %v3341, %v3382
    %v3403 = vadd.f32 %v3342, %v3386
    %v3404 = vadd.f32 %v3343, %v3386
    %v3405 = vadd.f32 %v3344, %v3386
    %v3406 = vadd.f32 %v3345, %v3386
    %v3407 = vadd.f32 %v3346, %v3390
    %v3408 = vadd.f32 %v3347, %v3390
    %v3409 = vadd.f32 %v3348, %v3390
    %v3410 = vadd.f32 %v3349, %v3390
    %v3411 = vand.u32 2147483647, %v3395
    %v3412 = vand.u32 2147483647, %v3396
    %v3413 = vand.u32 2147483647, %v3397
    %v3414 = vand.u32 2147483647, %v3398
    %v3415 = vand.u32 2147483647, %v3399
    %v3416 = vand.u32 2147483647, %v3400
    %v3417 = vand.u32 2147483647, %v3401
    %v3418 = vand.u32 2147483647, %v3402
    %v3419 = vand.u32 2147483647, %v3403
    %v3420 = vand.u32 2147483647, %v3404
    %v3421 = vand.u32 2147483647, %v3405
    %v3422 = vand.u32 2147483647, %v3406
    %v3423 = vand.u32 2147483647, %v3407
    %v3424 = vand.u32 2147483647, %v3408
    %v3425 = vand.u32 2147483647, %v3409
    %v3426 = vand.u32 2147483647, %v3410
    %v3427 = vsub.f32 0.0, %v3411
    %v3428 = vsub.f32 0.0, %v3412
    %v3429 = vsub.f32 0.0, %v3413
    %v3430 = vsub.f32 0.0, %v3414
    %v3431 = vsub.f32 0.0, %v3415
    %v3432 = vsub.f32 0.0, %v3416
    %v3433 = vsub.f32 0.0, %v3417
    %v3434 = vsub.f32 0.0, %v3418
    %v3435 = vsub.f32 0.0, %v3419
    %v3436 = vsub.f32 0.0, %v3420
    %v3437 = vsub.f32 0.0, %v3421
    %v3438 = vsub.f32 0.0, %v3422
    %v3439 = vsub.f32 0.0, %v3423
    %v3440 = vsub.f32 0.0, %v3424
    %v3441 = vsub.f32 0.0, %v3425
    %v3442 = vsub.f32 0.0, %v3426
    %v3443 = vmul.f32 %v3427, 1.442695
    %v3444 = vpow.pop %v3443
    %v3445 = vmul.f32 %v3428, 1.442695
    %v3446 = vpow.pop %v3445
    %v3447 = vmul.f32 %v3429, 1.442695
    %v3448 = vpow.pop %v3447
    %v3449 = vmul.f32 %v3430, 1.442695
    %v3450 = vpow.pop %v3449
    %v3451 = vmul.f32 %v3431, 1.442695
    %v3452 = vpow.pop %v3451
    %v3453 = vmul.f32 %v3432, 1.442695
    %v3454 = vpow.pop %v3453
    %v3455 = vmul.f32 %v3433, 1.442695
    %v3456 = vpow.pop %v3455
    %v3457 = vmul.f32 %v3434, 1.442695
    %v3458 = vpow.pop %v3457
    %v3459 = vmul.f32 %v3435, 1.442695
    %v3460 = vpow.pop %v3459
    %v3461 = vmul.f32 %v3436, 1.442695
    %v3462 = vpow.pop %v3461
    %v3463 = vmul.f32 %v3437, 1.442695
    %v3464 = vpow.pop %v3463
    %v3465 = vmul.f32 %v3438, 1.442695
    %v3466 = vpow.pop %v3465
    %v3467 = vmul.f32 %v3439, 1.442695
    %v3468 = vpow.pop %v3467
    %v3469 = vmul.f32 %v3440, 1.442695
    %v3470 = vpow.pop %v3469
    %v3471 = vmul.f32 %v3441, 1.442695
    %v3472 = vpow.pop %v3471
    %v3473 = vmul.f32 %v3442, 1.442695
    %v3474 = vpow.pop %v3473
    %vm3475 = vcmp.ge.f32.partialorder %v3395, 0.0
    %vm3476 = vcmp.ge.f32.partialorder %v3396, 0.0
    %vm3477 = vcmp.ge.f32.partialorder %v3397, 0.0
    %vm3478 = vcmp.ge.f32.partialorder %v3398, 0.0
    %vm3479 = vcmp.ge.f32.partialorder %v3399, 0.0
    %vm3480 = vcmp.ge.f32.partialorder %v3400, 0.0
    %vm3481 = vcmp.ge.f32.partialorder %v3401, 0.0
    %vm3482 = vcmp.ge.f32.partialorder %v3402, 0.0
    %vm3483 = vcmp.ge.f32.partialorder %v3403, 0.0
    %vm3484 = vcmp.ge.f32.partialorder %v3404, 0.0
    %vm3485 = vcmp.ge.f32.partialorder %v3405, 0.0
    %vm3486 = vcmp.ge.f32.partialorder %v3406, 0.0
    %vm3487 = vcmp.ge.f32.partialorder %v3407, 0.0
    %vm3488 = vcmp.ge.f32.partialorder %v3408, 0.0
    %vm3489 = vcmp.ge.f32.partialorder %v3409, 0.0
    %vm3490 = vcmp.ge.f32.partialorder %v3410, 0.0
    %v3491 = vmul.f32 %v3444, 2.0
    %v3492 = vmul.f32 %v3446, 2.0
    %v3493 = vmul.f32 %v3448, 2.0
    %v3494 = vmul.f32 %v3450, 2.0
    %v3495 = vmul.f32 %v3452, 2.0
    %v3496 = vmul.f32 %v3454, 2.0
    %v3497 = vmul.f32 %v3456, 2.0
    %v3498 = vmul.f32 %v3458, 2.0
    %v3499 = vmul.f32 %v3460, 2.0
    %v3500 = vmul.f32 %v3462, 2.0
    %v3501 = vmul.f32 %v3464, 2.0
    %v3502 = vmul.f32 %v3466, 2.0
    %v3503 = vmul.f32 %v3468, 2.0
    %v3504 = vmul.f32 %v3470, 2.0
    %v3505 = vmul.f32 %v3472, 2.0
    %v3506 = vmul.f32 %v3474, 2.0
    %v3507 = vadd.f32 %v3491, 1.0
    %v3508 = vadd.f32 %v3492, 1.0
    %v3509 = vadd.f32 %v3493, 1.0
    %v3510 = vadd.f32 %v3494, 1.0
    %v3511 = vadd.f32 %v3495, 1.0
    %v3512 = vadd.f32 %v3496, 1.0
    %v3513 = vadd.f32 %v3497, 1.0
    %v3514 = vadd.f32 %v3498, 1.0
    %v3515 = vadd.f32 %v3499, 1.0
    %v3516 = vadd.f32 %v3500, 1.0
    %v3517 = vadd.f32 %v3501, 1.0
    %v3518 = vadd.f32 %v3502, 1.0
    %v3519 = vadd.f32 %v3503, 1.0
    %v3520 = vadd.f32 %v3504, 1.0
    %v3521 = vadd.f32 %v3505, 1.0
    %v3522 = vadd.f32 %v3506, 1.0
    %v3523 = vadd.f32 %v3444, 2.0
    %v3524 = vadd.f32 %v3446, 2.0
    %v3525 = vadd.f32 %v3448, 2.0
    %v3526 = vadd.f32 %v3450, 2.0
    %v3527 = vadd.f32 %v3452, 2.0
    %v3528 = vadd.f32 %v3454, 2.0
    %v3529 = vadd.f32 %v3456, 2.0
    %v3530 = vadd.f32 %v3458, 2.0
    %v3531 = vadd.f32 %v3460, 2.0
    %v3532 = vadd.f32 %v3462, 2.0
    %v3533 = vadd.f32 %v3464, 2.0
    %v3534 = vadd.f32 %v3466, 2.0
    %v3535 = vadd.f32 %v3468, 2.0
    %v3536 = vadd.f32 %v3470, 2.0
    %v3537 = vadd.f32 %v3472, 2.0
    %v3538 = vadd.f32 %v3474, 2.0
    %v3539 = vmul.f32 %v3444, %v3523
    %v3540 = vmul.f32 %v3446, %v3524
    %v3541 = vmul.f32 %v3448, %v3525
    %v3542 = vmul.f32 %v3450, %v3526
    %v3543 = vmul.f32 %v3452, %v3527
    %v3544 = vmul.f32 %v3454, %v3528
    %v3545 = vmul.f32 %v3456, %v3529
    %v3546 = vmul.f32 %v3458, %v3530
    %v3547 = vmul.f32 %v3460, %v3531
    %v3548 = vmul.f32 %v3462, %v3532
    %v3549 = vmul.f32 %v3464, %v3533
    %v3550 = vmul.f32 %v3466, %v3534
    %v3551 = vmul.f32 %v3468, %v3535
    %v3552 = vmul.f32 %v3470, %v3536
    %v3553 = vmul.f32 %v3472, %v3537
    %v3554 = vmul.f32 %v3474, %v3538
    %v3555 = vsel %vm3475, %v3507, %v3539
    %v3556 = vsel %vm3476, %v3508, %v3540
    %v3557 = vsel %vm3477, %v3509, %v3541
    %v3558 = vsel %vm3478, %v3510, %v3542
    %v3559 = vsel %vm3479, %v3511, %v3543
    %v3560 = vsel %vm3480, %v3512, %v3544
    %v3561 = vsel %vm3481, %v3513, %v3545
    %v3562 = vsel %vm3482, %v3514, %v3546
    %v3563 = vsel %vm3483, %v3515, %v3547
    %v3564 = vsel %vm3484, %v3516, %v3548
    %v3565 = vsel %vm3485, %v3517, %v3549
    %v3566 = vsel %vm3486, %v3518, %v3550
    %v3567 = vsel %vm3487, %v3519, %v3551
    %v3568 = vsel %vm3488, %v3520, %v3552
    %v3569 = vsel %vm3489, %v3521, %v3553
    %v3570 = vsel %vm3490, %v3522, %v3554
    %v3571 = vmul.f32 %v3491, %v3444
    %v3572 = vmul.f32 %v3492, %v3446
    %v3573 = vmul.f32 %v3493, %v3448
    %v3574 = vmul.f32 %v3494, %v3450
    %v3575 = vmul.f32 %v3495, %v3452
    %v3576 = vmul.f32 %v3496, %v3454
    %v3577 = vmul.f32 %v3497, %v3456
    %v3578 = vmul.f32 %v3498, %v3458
    %v3579 = vmul.f32 %v3499, %v3460
    %v3580 = vmul.f32 %v3500, %v3462
    %v3581 = vmul.f32 %v3501, %v3464
    %v3582 = vmul.f32 %v3502, %v3466
    %v3583 = vmul.f32 %v3503, %v3468
    %v3584 = vmul.f32 %v3504, %v3470
    %v3585 = vmul.f32 %v3505, %v3472
    %v3586 = vmul.f32 %v3506, %v3474
    %v3587 = vsel %vm3475, %v3571, 2.0
    %v3588 = vsel %vm3476, %v3572, 2.0
    %v3589 = vsel %vm3477, %v3573, 2.0
    %v3590 = vsel %vm3478, %v3574, 2.0
    %v3591 = vsel %vm3479, %v3575, 2.0
    %v3592 = vsel %vm3480, %v3576, 2.0
    %v3593 = vsel %vm3481, %v3577, 2.0
    %v3594 = vsel %vm3482, %v3578, 2.0
    %v3595 = vsel %vm3483, %v3579, 2.0
    %v3596 = vsel %vm3484, %v3580, 2.0
    %v3597 = vsel %vm3485, %v3581, 2.0
    %v3598 = vsel %vm3486, %v3582, 2.0
    %v3599 = vsel %vm3487, %v3583, 2.0
    %v3600 = vsel %vm3488, %v3584, 2.0
    %v3601 = vsel %vm3489, %v3585, 2.0
    %v3602 = vsel %vm3490, %v3586, 2.0
    %v3603 = vadd.f32 %v3555, %v3587
    %v3604 = vadd.f32 %v3556, %v3588
    %v3605 = vadd.f32 %v3557, %v3589
    %v3606 = vadd.f32 %v3558, %v3590
    %v3607 = vadd.f32 %v3559, %v3591
    %v3608 = vadd.f32 %v3560, %v3592
    %v3609 = vadd.f32 %v3561, %v3593
    %v3610 = vadd.f32 %v3562, %v3594
    %v3611 = vadd.f32 %v3563, %v3595
    %v3612 = vadd.f32 %v3564, %v3596
    %v3613 = vadd.f32 %v3565, %v3597
    %v3614 = vadd.f32 %v3566, %v3598
    %v3615 = vadd.f32 %v3567, %v3599
    %v3616 = vadd.f32 %v3568, %v3600
    %v3617 = vadd.f32 %v3569, %v3601
    %v3618 = vadd.f32 %v3570, %v3602
    %v3619 = vmul.f32 %v3395, %v3555
    %v3620 = vmul.f32 %v3396, %v3556
    %v3621 = vmul.f32 %v3397, %v3557
    %v3622 = vmul.f32 %v3398, %v3558
    %v3623 = vmul.f32 %v3399, %v3559
    %v3624 = vmul.f32 %v3400, %v3560
    %v3625 = vmul.f32 %v3401, %v3561
    %v3626 = vmul.f32 %v3402, %v3562
    %v3627 = vmul.f32 %v3403, %v3563
    %v3628 = vmul.f32 %v3404, %v3564
    %v3629 = vmul.f32 %v3405, %v3565
    %v3630 = vmul.f32 %v3406, %v3566
    %v3631 = vmul.f32 %v3407, %v3567
    %v3632 = vmul.f32 %v3408, %v3568
    %v3633 = vmul.f32 %v3409, %v3569
    %v3634 = vmul.f32 %v3410, %v3570
    %v3635 = vrcp.pop %v3603
    %v3636 = vmul.f32 %v3619, %v3635
    %v3637 = vrcp.pop %v3604
    %v3638 = vmul.f32 %v3620, %v3637
    %v3639 = vrcp.pop %v3605
    %v3640 = vmul.f32 %v3621, %v3639
    %v3641 = vrcp.pop %v3606
    %v3642 = vmul.f32 %v3622, %v3641
    %v3643 = vrcp.pop %v3607
    %v3644 = vmul.f32 %v3623, %v3643
    %v3645 = vrcp.pop %v3608
    %v3646 = vmul.f32 %v3624, %v3645
    %v3647 = vrcp.pop %v3609
    %v3648 = vmul.f32 %v3625, %v3647
    %v3649 = vrcp.pop %v3610
    %v3650 = vmul.f32 %v3626, %v3649
    %v3651 = vrcp.pop %v3611
    %v3652 = vmul.f32 %v3627, %v3651
    %v3653 = vrcp.pop %v3612
    %v3654 = vmul.f32 %v3628, %v3653
    %v3655 = vrcp.pop %v3613
    %v3656 = vmul.f32 %v3629, %v3655
    %v3657 = vrcp.pop %v3614
    %v3658 = vmul.f32 %v3630, %v3657
    %v3659 = vrcp.pop %v3615
    %v3660 = vmul.f32 %v3631, %v3659
    %v3661 = vrcp.pop %v3616
    %v3662 = vmul.f32 %v3632, %v3661
    %v3663 = vrcp.pop %v3617
    %v3664 = vmul.f32 %v3633, %v3663
    %v3665 = vrcp.pop %v3618
    %v3666 = vmul.f32 %v3634, %v3665
    %v3667 = vld [vmem:[#allocation5] sm:$0xff]
    %v3668 = vld [vmem:[#allocation5 + $0x8] sm:$0xff]
    %v3669 = vld [vmem:[#allocation5 + $0x10] sm:$0xff]
    %v3670 = vld [vmem:[#allocation5 + $0x18] sm:$0xff]
    %v3671 = vld [vmem:[#allocation5 + $0x20] sm:$0xff]
    %v3672 = vld [vmem:[#allocation5 + $0x28] sm:$0xff]
    %v3673 = vld [vmem:[#allocation5 + $0x30] sm:$0xff]
    %v3674 = vld [vmem:[#allocation5 + $0x38] sm:$0xff]
    %v3675 = vld [vmem:[#allocation5 + $0x40] sm:$0xff]
    %v3676 = vld [vmem:[#allocation5 + $0x48] sm:$0xff]
    %v3677 = vld [vmem:[#allocation5 + $0x50] sm:$0xff]
    %v3678 = vld [vmem:[#allocation5 + $0x58] sm:$0xff]
    %v3679 = vld [vmem:[#allocation5 + $0x60] sm:$0xff]
    %v3680 = vld [vmem:[#allocation5 + $0x68] sm:$0xff]
    %v3681 = vld [vmem:[#allocation5 + $0x70] sm:$0xff]
    %v3682 = vld [vmem:[#allocation5 + $0x78] sm:$0xff]
    %v3683 = vadd.f32 %v3667, %v3636
    %v3684 = vadd.f32 %v3668, %v3638
    %v3685 = vadd.f32 %v3669, %v3640
    %v3686 = vadd.f32 %v3670, %v3642
    %v3687 = vadd.f32 %v3671, %v3644
    %v3688 = vadd.f32 %v3672, %v3646
    %v3689 = vadd.f32 %v3673, %v3648
    %v3690 = vadd.f32 %v3674, %v3650
    %v3691 = vadd.f32 %v3675, %v3652
    %v3692 = vadd.f32 %v3676, %v3654
    %v3693 = vadd.f32 %v3677, %v3656
    %v3694 = vadd.f32 %v3678, %v3658
    %v3695 = vadd.f32 %v3679, %v3660
    %v3696 = vadd.f32 %v3680, %v3662
    %v3697 = vadd.f32 %v3681, %v3664
    %v3698 = vadd.f32 %v3682, %v3666
    %3699 = vst [vmem:[#allocation5] sm:$0xff] %v3683
    %3700 = vst [vmem:[#allocation5 + $0x8] sm:$0xff] %v3684
    %3701 = vst [vmem:[#allocation5 + $0x10] sm:$0xff] %v3685
    %3702 = vst [vmem:[#allocation5 + $0x18] sm:$0xff] %v3686
    %3703 = vst [vmem:[#allocation5 + $0x20] sm:$0xff] %v3687
    %3704 = vst [vmem:[#allocation5 + $0x28] sm:$0xff] %v3688
    %3705 = vst [vmem:[#allocation5 + $0x30] sm:$0xff] %v3689
    %3706 = vst [vmem:[#allocation5 + $0x38] sm:$0xff] %v3690
    %3707 = vst [vmem:[#allocation5 + $0x40] sm:$0xff] %v3691
    %3708 = vst [vmem:[#allocation5 + $0x48] sm:$0xff] %v3692
    %3709 = vst [vmem:[#allocation5 + $0x50] sm:$0xff] %v3693
    %3710 = vst [vmem:[#allocation5 + $0x58] sm:$0xff] %v3694
    %3711 = vst [vmem:[#allocation5 + $0x60] sm:$0xff] %v3695
    %3712 = vst [vmem:[#allocation5 + $0x68] sm:$0xff] %v3696
    %3713 = vst [vmem:[#allocation5 + $0x70] sm:$0xff] %v3697
    %3714 = vst [vmem:[#allocation5 + $0x78] sm:$0xff] %v3698
    // Predicated region
    $region74: #{tpu_custom_call.1} parent=1 // pred_check
      _
    $region75: #{tpu_custom_call.1} parent=1 // pred_check_branch
      %3716 = sbr.rel (0) target = $region77
    $region76: #{tpu_custom_call.1} parent=1 // pred_region
      %s3718 = ssub.s32 2048, 2048
      %3719 = vsyncadd [#allocation4], %s3718
      %s3720 = sshll.u32 [#allocation5], 4
      %s3721 = int_to_ptr.vmem [resolvable:$true] %s3720
      %3726 = dma.vmem_to_hbm [thread:$0]  %s3721, 2048, %s17, [#allocation4], 128, 128, 8
    $region77: #{tpu_custom_call.1} parent=1 // pred_fallthru
      _
    // Predicated region
    $region78: #{tpu_custom_call.1} parent=1 // pred_check
      _
    $region79: #{tpu_custom_call.1} parent=1 // pred_check_branch
      %3728 = sbr.rel (0) target = $region81
    $region80: #{tpu_custom_call.1} parent=1 // pred_region
      %3729 = dma.done [#allocation4], 2048
    $region81: #{tpu_custom_call.1} parent=1 // pred_fallthru
      _
    %3730 = vsyncpa [#allocation3], 1
    %3731 = vsyncpa [#allocation4], 1

</llo_original>
